<compile_context>
chip_gen: v6e
topology: v6e:2x2x1
jax: 0.10.0
libtpu: 0.0.40
codegen_flags: <defaults>
</compile_context>

<pallas_src>
import functools

import jax
import jax.numpy as jnp
from jax.experimental import pallas as pl
from jax.experimental.pallas import tpu as pltpu


def _round_up(v, m):
    return (v + m - 1) // m * m


# --------------------------------------------------------------------------- kernel
def _fused_matmul_kernel(*refs, mode, slope, valid_rows, eps):
    """acc += x @ w (bf16 MXU, f32 acc in o_ref); epilogue on last K step."""
    if mode == "bn_leaky":
        x_ref, w_ref, g_ref, b_ref, o_ref = refs
    else:
        x_ref, w_ref, b_ref, o_ref = refs
        g_ref = None

    k = pl.program_id(1)

    @pl.when(k == 0)
    def _():
        o_ref[...] = jnp.zeros_like(o_ref)

    o_ref[...] += jnp.dot(x_ref[...], w_ref[...],
                          preferred_element_type=jnp.float32)

    @pl.when(k == pl.num_programs(1) - 1)
    def _():
        acc = o_ref[...]
        if mode == "bn_leaky":
            # Training-mode BatchNorm over the rows (rows == N*H*W), one-pass stats.
            n = float(valid_rows)
            if valid_rows < acc.shape[0]:
                rows = jax.lax.broadcasted_iota(jnp.int32, acc.shape, 0)
                m = (rows < valid_rows).astype(acc.dtype)
                s1 = jnp.sum(acc * m, axis=0, keepdims=True)
                s2 = jnp.sum(acc * acc * m, axis=0, keepdims=True)
            else:
                s1 = jnp.sum(acc, axis=0, keepdims=True)
                s2 = jnp.sum(acc * acc, axis=0, keepdims=True)
            mean = s1 * (1.0 / n)
            var = s2 * (1.0 / n) - mean * mean
            inv = jax.lax.rsqrt(var + eps)
            y = (acc - mean) * (inv * g_ref[...]) + b_ref[...]
            y = jnp.where(y >= 0, y, slope * y)
        elif mode == "bias_leaky":
            y = acc + b_ref[...]
            y = jnp.where(y >= 0, y, slope * y)
        elif mode == "bias_relu":
            y = jnp.maximum(acc + b_ref[...], 0.0)
        else:
            y = acc
        o_ref[...] = y.astype(o_ref.dtype)


# --------------------------------------------------------------------------- wrapper
def fused_matmul_act(x, w, shift, *, gamma=None, mode="bias_leaky",
                     slope=0.1, eps=1e-5, tk=None, tc_max=512):
    """out = epilogue(x @ w)   x:[M,K] f32, w:[K,C] f32, shift/gamma:[C].

    mode: "bias_leaky" | "bias_relu"  -> epilogue = act(acc + shift)
          "bn_leaky"                  -> epilogue = leaky(BN(acc; gamma, shift))
    """
    M, K = x.shape
    Kw, C = w.shape
    assert Kw == K
    Mp = _round_up(M, 8)
    Cp = _round_up(C, 128)
    tc = min(Cp, tc_max)

    if tk is None or tk >= K:
        tk = Kp = K          # single K step; full-extent blocks need no K padding
    else:
        assert tk % 128 == 0, "K tile must be lane aligned unless full extent"
        Kp = _round_up(K, tk)
    nk = Kp // tk
    nc = Cp // tc

    # bf16 operands for the MXU; f32 accumulation happens inside the kernel.
    xp = jnp.pad(x, ((0, Mp - M), (0, Kp - K))).astype(jnp.bfloat16)
    wp = jnp.pad(w, ((0, Kp - K), (0, Cp - C))).astype(jnp.bfloat16)
    bp = jnp.pad(shift.reshape(1, -1).astype(jnp.float32), ((0, 0), (0, Cp - C)))

    inputs = [xp, wp]
    in_specs = [
        pl.BlockSpec((Mp, tk), lambda j, k: (0, k)),
        pl.BlockSpec((tk, tc), lambda j, k: (k, j)),
    ]
    if mode == "bn_leaky":
        gp = jnp.pad(gamma.reshape(1, -1).astype(jnp.float32),
                     ((0, 0), (0, Cp - C)))
        inputs.append(gp)
        in_specs.append(pl.BlockSpec((1, tc), lambda j, k: (0, j)))
    inputs.append(bp)
    in_specs.append(pl.BlockSpec((1, tc), lambda j, k: (0, j)))

    out = pl.pallas_call(
        functools.partial(_fused_matmul_kernel, mode=mode, slope=slope,
                          valid_rows=M, eps=eps),
        out_shape=jax.ShapeDtypeStruct((Mp, Cp), jnp.float32),
        grid_spec=pltpu.PrefetchScalarGridSpec(
            num_scalar_prefetch=0,
            grid=(nc, nk),
            in_specs=in_specs,
            out_specs=pl.BlockSpec((Mp, tc), lambda j, k: (0, j)),
        ),
        compiler_params=pltpu.CompilerParams(
            dimension_semantics=("parallel", "arbitrary")),
    )(*inputs)
    return out[:M, :C]


# --------------------------------------------------------------------------- glue
def im2col_nhwc(x, kh, kw, stride, pad):
    """x: [N, H, W, C] -> patches [N*OH*OW, kh*kw*C] (K ordered as (kh, kw, C))."""
    N, H, W, C = x.shape
    xp = jnp.pad(x, ((0, 0), (pad, pad), (pad, pad), (0, 0)))
    OH = (H + 2 * pad - kh) // stride + 1
    OW = (W + 2 * pad - kw) // stride + 1
    pieces = []
    for i in range(kh):
        for j in range(kw):
            pieces.append(xp[:, i:i + stride * OH:stride, j:j + stride * OW:stride, :])
    p = jnp.stack(pieces, axis=3)                   # [N, OH, OW, kh*kw, C]
    return p.reshape(N * OH * OW, kh * kw * C), OH, OW


def encoder_forward(x, params):
    """x: [N, 1, 28, 28] (NCHW public interface). Returns [N, 256]."""
    N = x.shape[0]
    xn = jnp.transpose(x, (0, 2, 3, 1))                       # NHWC, once, tiny

    # conv1: Conv2d(1, 64, 4, 2, 1) + leaky_relu(0.1)   (K = 16, not padded)
    p1, oh1, ow1 = im2col_nhwc(xn, 4, 4, 2, 1)                # [N*14*14, 16]
    w1 = params["w1"].transpose(2, 3, 1, 0).reshape(16, 64)
    y1 = fused_matmul_act(p1, w1, params["b1"], mode="bias_leaky")
    h1 = y1.reshape(N, oh1, ow1, 64)                          # NHWC, no transpose

    # conv2: Conv2d(64, 128, 4, 2, 1, bias=False) -> BN2 -> leaky (fused epilogue)
    p2, oh2, ow2 = im2col_nhwc(h1, 4, 4, 2, 1)                # [N*7*7, 1024]
    w2 = params["w2"].transpose(2, 3, 1, 0).reshape(1024, 128)
    y2 = fused_matmul_act(p2, w2, params["be2"], gamma=params["g2"],
                          mode="bn_leaky")
    h2 = y2.reshape(N, oh2, ow2, 128)

    # conv3: Conv2d(128, 1024, 7, bias=False) on a 7x7 map == flatten + matmul
    #        -> BN3 -> leaky (fused epilogue).  K = 6272 tiled at tk=896 (7 steps).
    p3 = h2.reshape(N, 7 * 7 * 128)
    w3 = params["w3"].transpose(2, 3, 1, 0).reshape(7 * 7 * 128, 1024)
    y3 = fused_matmul_act(p3, w3, params["be3"], gamma=params["g3"],
                          mode="bn_leaky", tk=896)            # == x.view(-1, 1024)

    # fc1: Linear(1024, 256) + relu
    out = fused_matmul_act(y3, params["wf"].T, params["bf"], mode="bias_relu")
    return out


def make_params(key):
    ks = jax.random.split(key, 10)
    s = 0.05
    return {
        "w1": jax.random.normal(ks[0], (64, 1, 4, 4), jnp.float32) * s,
        "b1": jax.random.normal(ks[1], (64,), jnp.float32) * s,
        "w2": jax.random.normal(ks[2], (128, 64, 4, 4), jnp.float32) * s,
        "g2": 1.0 + jax.random.normal(ks[3], (128,), jnp.float32) * s,
        "be2": jax.random.normal(ks[4], (128,), jnp.float32) * s,
        "w3": jax.random.normal(ks[5], (1024, 128, 7, 7), jnp.float32) * s,
        "g3": 1.0 + jax.random.normal(ks[6], (1024,), jnp.float32) * s,
        "be3": jax.random.normal(ks[7], (1024,), jnp.float32) * s,
        "wf": jax.random.normal(ks[8], (256, 1024), jnp.float32) * s,
        "bf": jax.random.normal(ks[9], (256,), jnp.float32) * s,
    }


def ref_forward(x, p):
    """Pure-JAX f32 reference replicating the PyTorch forward (training-mode BN)."""
    hi = jax.lax.Precision.HIGHEST

    def conv(h, w, stride, pad):
        return jax.lax.conv_general_dilated(
            h, w, (stride, stride), [(pad, pad), (pad, pad)],
            dimension_numbers=("NCHW", "OIHW", "NCHW"), precision=hi)

    def bn(h, g, b, eps=1e-5):
        mean = h.mean(axis=(0, 2, 3), keepdims=True)
        var = h.var(axis=(0, 2, 3), keepdims=True)
        return (h - mean) * jax.lax.rsqrt(var + eps) * g.reshape(1, -1, 1, 1) \
            + b.reshape(1, -1, 1, 1)

    lrelu = lambda v: jnp.where(v >= 0, v, 0.1 * v)
    h = lrelu(conv(x, p["w1"], 2, 1) + p["b1"].reshape(1, -1, 1, 1))
    h = lrelu(bn(conv(h, p["w2"], 2, 1), p["g2"], p["be2"]))
    h = lrelu(bn(conv(h, p["w3"], 1, 0), p["g3"], p["be3"]))
    h = h.reshape(-1, 1024)
    return jax.nn.relu(jnp.dot(h, p["wf"].T, precision=hi) + p["bf"])


if __name__ == "__main__":
    key = jax.random.PRNGKey(0)
    kx, kp = jax.random.split(key)
    # MNIST-shaped input (28x28 is required: conv3 is a 7x7 kernel on the 7x7 map).
    x = jax.random.normal(kx, (2, 1, 28, 28), jnp.float32)
    params = make_params(kp)

    out = jax.block_until_ready(jax.jit(encoder_forward)(x, params))
    assert out.shape == (2, 256), out.shape

    ref = jax.block_until_ready(ref_forward(x, params))
    err = float(jnp.max(jnp.abs(out - ref)))
    scale = float(jnp.max(jnp.abs(ref)))
    # bf16 MXU operands (f32 accumulation) vs. a full-f32 reference.
    assert err <= 5e-2 * scale + 5e-2, (err, scale)

    print("KERNEL_OK")
</pallas_src>

<mosaic_0001>
module attributes {stable_mosaic.version = 11 : i64} {
  func.func @_fused_matmul_kernel(%arg0: i32, %arg1: i32, %arg2: memref<392x16xbf16, #tpu.memory_space<vmem>>, %arg3: memref<16x128xbf16, #tpu.memory_space<vmem>>, %arg4: memref<1x128xf32, #tpu.memory_space<vmem>>, %arg5: memref<392x128xf32, #tpu.memory_space<vmem>>) attributes {dimension_semantics = [#tpu.dimension_semantics<parallel>, #tpu.dimension_semantics<arbitrary>], iteration_bounds = array<i64: 1, 1>, scalar_prefetch = 0 : i64, scratch_operands = 0 : i64, tpu.core_type = #tpu.core_type<tc>, window_params = [{transform_indices = @transform_0, window_bounds = array<i64: 392, 16>}, {transform_indices = @transform_1, window_bounds = array<i64: 16, 128>}, {transform_indices = @transform_2, window_bounds = array<i64: 1, 128>}, {transform_indices = @transform_3, window_bounds = array<i64: 392, 128>}]} {
    %c0_i32 = arith.constant 0 : i32
    %0 = arith.cmpi eq, %arg1, %c0_i32 : i32
    %1 = arith.extui %0 : i1 to i32
    %c0_i32_0 = arith.constant 0 : i32
    %2 = arith.cmpi ne, %1, %c0_i32_0 : i32
    scf.if %2 {
      %cst_10 = arith.constant 0.000000e+00 : f32
      %12 = vector.broadcast %cst_10 : f32 to vector<392x128xf32>
      %c0_11 = arith.constant 0 : index
      %c0_12 = arith.constant 0 : index
      %13 = vector.load %arg5[%c0_11, %c0_12] : memref<392x128xf32, #tpu.memory_space<vmem>>, vector<392x128xf32>
      tpu.vector_store %arg5[%c0_11, %c0_12], %12 {strides = array<i32>} : memref<392x128xf32, #tpu.memory_space<vmem>>, vector<392x128xf32>,
    } else {
    }
    %c0 = arith.constant 0 : index
    %c0_1 = arith.constant 0 : index
    %3 = vector.load %arg5[%c0, %c0_1] : memref<392x128xf32, #tpu.memory_space<vmem>>, vector<392x128xf32>
    %c0_2 = arith.constant 0 : index
    %c0_3 = arith.constant 0 : index
    %4 = vector.load %arg2[%c0_2, %c0_3] : memref<392x16xbf16, #tpu.memory_space<vmem>>, vector<392x16xbf16>
    %c0_4 = arith.constant 0 : index
    %c0_5 = arith.constant 0 : index
    %5 = vector.load %arg3[%c0_4, %c0_5] : memref<16x128xbf16, #tpu.memory_space<vmem>>, vector<16x128xbf16>
    %cst = arith.constant dense<0.000000e+00> : vector<392x128xf32>
    %6 = tpu.matmul %4, %5, %cst {dimension_numbers = #tpu.dot_dimension_numbers<[1], [0], [0], [1], [0, 0, 1, 1], [], []>} : vector<392x16xbf16>, vector<16x128xbf16>, vector<392x128xf32> -> vector<392x128xf32>
    %7 = arith.addf %3, %6 : vector<392x128xf32>
    %c0_6 = arith.constant 0 : index
    %c0_7 = arith.constant 0 : index
    %8 = vector.load %arg5[%c0_6, %c0_7] : memref<392x128xf32, #tpu.memory_space<vmem>>, vector<392x128xf32>
    tpu.vector_store %arg5[%c0_6, %c0_7], %7 {strides = array<i32>} : memref<392x128xf32, #tpu.memory_space<vmem>>, vector<392x128xf32>,
    %c0_i32_8 = arith.constant 0 : i32
    %9 = arith.cmpi eq, %arg1, %c0_i32_8 : i32
    %10 = arith.extui %9 : i1 to i32
    %c0_i32_9 = arith.constant 0 : i32
    %11 = arith.cmpi ne, %10, %c0_i32_9 : i32
    scf.if %11 {
      %c0_10 = arith.constant 0 : index
      %c0_11 = arith.constant 0 : index
      %12 = vector.load %arg5[%c0_10, %c0_11] : memref<392x128xf32, #tpu.memory_space<vmem>>, vector<392x128xf32>
      %c0_12 = arith.constant 0 : index
      %c0_13 = arith.constant 0 : index
      %13 = vector.load %arg4[%c0_12, %c0_13] : memref<1x128xf32, #tpu.memory_space<vmem>>, vector<1x128xf32>
      %14 = vector.broadcast %13 : vector<1x128xf32> to vector<392x128xf32>
      %15 = arith.addf %12, %14 : vector<392x128xf32>
      %cst_14 = arith.constant 0.000000e+00 : f32
      %16 = vector.broadcast %cst_14 : f32 to vector<392x128xf32>
      %17 = arith.cmpf oge, %15, %16 : vector<392x128xf32>
      %cst_15 = arith.constant 1.000000e-01 : f32
      %18 = vector.broadcast %cst_15 : f32 to vector<392x128xf32>
      %19 = arith.mulf %18, %15 : vector<392x128xf32>
      %20 = arith.select %17, %15, %19 : vector<392x128xi1>, vector<392x128xf32>
      %c0_16 = arith.constant 0 : index
      %c0_17 = arith.constant 0 : index
      %21 = vector.load %arg5[%c0_16, %c0_17] : memref<392x128xf32, #tpu.memory_space<vmem>>, vector<392x128xf32>
      tpu.vector_store %arg5[%c0_16, %c0_17], %20 {strides = array<i32>} : memref<392x128xf32, #tpu.memory_space<vmem>>, vector<392x128xf32>,
    } else {
    }
    return
  }
  func.func @transform_0(%arg0: i32, %arg1: i32) -> (i32, i32) {
    %c0_i32 = arith.constant 0 : i32
    %c0_i32_0 = arith.constant 0 : i32
    return %c0_i32, %arg1 : i32, i32
  }
  func.func @transform_1(%arg0: i32, %arg1: i32) -> (i32, i32) {
    %c0_i32 = arith.constant 0 : i32
    return %arg1, %arg0 : i32, i32
  }
  func.func @transform_2(%arg0: i32, %arg1: i32) -> (i32, i32) {
    %c0_i32 = arith.constant 0 : i32
    %c0_i32_0 = arith.constant 0 : i32
    return %c0_i32, %arg0 : i32, i32
  }
  func.func @transform_3(%arg0: i32, %arg1: i32) -> (i32, i32) {
    %c0_i32 = arith.constant 0 : i32
    %c0_i32_0 = arith.constant 0 : i32
    return %c0_i32, %arg0 : i32, i32
  }
}

module attributes {stable_mosaic.version = 11 : i64} {
  func.func @_fused_matmul_kernel(%arg0: i32, %arg1: i32, %arg2: memref<104x1024xbf16, #tpu.memory_space<vmem>>, %arg3: memref<1024x128xbf16, #tpu.memory_space<vmem>>, %arg4: memref<1x128xf32, #tpu.memory_space<vmem>>, %arg5: memref<1x128xf32, #tpu.memory_space<vmem>>, %arg6: memref<104x128xf32, #tpu.memory_space<vmem>>) attributes {dimension_semantics = [#tpu.dimension_semantics<parallel>, #tpu.dimension_semantics<arbitrary>], iteration_bounds = array<i64: 1, 1>, scalar_prefetch = 0 : i64, scratch_operands = 0 : i64, tpu.core_type = #tpu.core_type<tc>, window_params = [{transform_indices = @transform_0, window_bounds = array<i64: 104, 1024>}, {transform_indices = @transform_1, window_bounds = array<i64: 1024, 128>}, {transform_indices = @transform_2, window_bounds = array<i64: 1, 128>}, {transform_indices = @transform_3, window_bounds = array<i64: 1, 128>}, {transform_indices = @transform_4, window_bounds = array<i64: 104, 128>}]} {
    %c0_i32 = arith.constant 0 : i32
    %0 = arith.cmpi eq, %arg1, %c0_i32 : i32
    %1 = arith.extui %0 : i1 to i32
    %c0_i32_0 = arith.constant 0 : i32
    %2 = arith.cmpi ne, %1, %c0_i32_0 : i32
    scf.if %2 {
      %cst_10 = arith.constant 0.000000e+00 : f32
      %12 = vector.broadcast %cst_10 : f32 to vector<104x128xf32>
      %c0_11 = arith.constant 0 : index
      %c0_12 = arith.constant 0 : index
      %13 = vector.load %arg6[%c0_11, %c0_12] : memref<104x128xf32, #tpu.memory_space<vmem>>, vector<104x128xf32>
      tpu.vector_store %arg6[%c0_11, %c0_12], %12 {strides = array<i32>} : memref<104x128xf32, #tpu.memory_space<vmem>>, vector<104x128xf32>,
    } else {
    }
    %c0 = arith.constant 0 : index
    %c0_1 = arith.constant 0 : index
    %3 = vector.load %arg6[%c0, %c0_1] : memref<104x128xf32, #tpu.memory_space<vmem>>, vector<104x128xf32>
    %c0_2 = arith.constant 0 : index
    %c0_3 = arith.constant 0 : index
    %4 = vector.load %arg2[%c0_2, %c0_3] : memref<104x1024xbf16, #tpu.memory_space<vmem>>, vector<104x1024xbf16>
    %c0_4 = arith.constant 0 : index
    %c0_5 = arith.constant 0 : index
    %5 = vector.load %arg3[%c0_4, %c0_5] : memref<1024x128xbf16, #tpu.memory_space<vmem>>, vector<1024x128xbf16>
    %cst = arith.constant dense<0.000000e+00> : vector<104x128xf32>
    %6 = tpu.matmul %4, %5, %cst {dimension_numbers = #tpu.dot_dimension_numbers<[1], [0], [0], [1], [0, 0, 1, 1], [], []>} : vector<104x1024xbf16>, vector<1024x128xbf16>, vector<104x128xf32> -> vector<104x128xf32>
    %7 = arith.addf %3, %6 : vector<104x128xf32>
    %c0_6 = arith.constant 0 : index
    %c0_7 = arith.constant 0 : index
    %8 = vector.load %arg6[%c0_6, %c0_7] : memref<104x128xf32, #tpu.memory_space<vmem>>, vector<104x128xf32>
    tpu.vector_store %arg6[%c0_6, %c0_7], %7 {strides = array<i32>} : memref<104x128xf32, #tpu.memory_space<vmem>>, vector<104x128xf32>,
    %c0_i32_8 = arith.constant 0 : i32
    %9 = arith.cmpi eq, %arg1, %c0_i32_8 : i32
    %10 = arith.extui %9 : i1 to i32
    %c0_i32_9 = arith.constant 0 : i32
    %11 = arith.cmpi ne, %10, %c0_i32_9 : i32
    scf.if %11 {
      %c0_10 = arith.constant 0 : index
      %c0_11 = arith.constant 0 : index
      %12 = vector.load %arg6[%c0_10, %c0_11] : memref<104x128xf32, #tpu.memory_space<vmem>>, vector<104x128xf32>
      %13 = tpu.iota {dimensions = array<i32: 0>} : vector<104x128xi32>
      %c98_i32 = arith.constant 98 : i32
      %14 = vector.broadcast %c98_i32 : i32 to vector<104x128xi32>
      %15 = arith.cmpi slt, %13, %14 : vector<104x128xi32>
      %16 = arith.extui %15 : vector<104x128xi1> to vector<104x128xi32>
      %17 = arith.sitofp %16 : vector<104x128xi32> to vector<104x128xf32>
      %18 = arith.mulf %12, %17 : vector<104x128xf32>
      %cst_12 = arith.constant dense<0.000000e+00> : vector<128xf32>
      %19 = vector.multi_reduction <add>, %18, %cst_12 [0] : vector<104x128xf32> to vector<128xf32>
      %20 = vector.shape_cast %19 : vector<128xf32> to vector<1x128xf32>
      %21 = arith.mulf %12, %12 : vector<104x128xf32>
      %22 = arith.mulf %21, %17 : vector<104x128xf32>
      %cst_13 = arith.constant dense<0.000000e+00> : vector<128xf32>
      %23 = vector.multi_reduction <add>, %22, %cst_13 [0] : vector<104x128xf32> to vector<128xf32>
      %24 = vector.shape_cast %23 : vector<128xf32> to vector<1x128xf32>
      %cst_14 = arith.constant 0.0102040814 : f32
      %25 = vector.broadcast %cst_14 : f32 to vector<1x128xf32>
      %26 = arith.mulf %20, %25 : vector<1x128xf32>
      %cst_15 = arith.constant 0.0102040814 : f32
      %27 = vector.broadcast %cst_15 : f32 to vector<1x128xf32>
      %28 = arith.mulf %24, %27 : vector<1x128xf32>
      %29 = arith.mulf %26, %26 : vector<1x128xf32>
      %30 = arith.subf %28, %29 : vector<1x128xf32>
      %cst_16 = arith.constant 9.99999974E-6 : f32
      %31 = vector.broadcast %cst_16 : f32 to vector<1x128xf32>
      %32 = arith.addf %30, %31 : vector<1x128xf32>
      %33 = math.rsqrt %32 : vector<1x128xf32>
      %34 = vector.broadcast %26 : vector<1x128xf32> to vector<104x128xf32>
      %35 = arith.subf %12, %34 : vector<104x128xf32>
      %c0_17 = arith.constant 0 : index
      %c0_18 = arith.constant 0 : index
      %36 = vector.load %arg4[%c0_17, %c0_18] : memref<1x128xf32, #tpu.memory_space<vmem>>, vector<1x128xf32>
      %37 = arith.mulf %33, %36 : vector<1x128xf32>
      %38 = vector.broadcast %37 : vector<1x128xf32> to vector<104x128xf32>
      %39 = arith.mulf %35, %38 : vector<104x128xf32>
      %c0_19 = arith.constant 0 : index
      %c0_20 = arith.constant 0 : index
      %40 = vector.load %arg5[%c0_19, %c0_20] : memref<1x128xf32, #tpu.memory_space<vmem>>, vector<1x128xf32>
      %41 = vector.broadcast %40 : vector<1x128xf32> to vector<104x128xf32>
      %42 = arith.addf %39, %41 : vector<104x128xf32>
      %cst_21 = arith.constant 0.000000e+00 : f32
      %43 = vector.broadcast %cst_21 : f32 to vector<104x128xf32>
      %44 = arith.cmpf oge, %42, %43 : vector<104x128xf32>
      %cst_22 = arith.constant 1.000000e-01 : f32
      %45 = vector.broadcast %cst_22 : f32 to vector<104x128xf32>
      %46 = arith.mulf %45, %42 : vector<104x128xf32>
      %47 = arith.select %44, %42, %46 : vector<104x128xi1>, vector<104x128xf32>
      %c0_23 = arith.constant 0 : index
      %c0_24 = arith.constant 0 : index
      %48 = vector.load %arg6[%c0_23, %c0_24] : memref<104x128xf32, #tpu.memory_space<vmem>>, vector<104x128xf32>
      tpu.vector_store %arg6[%c0_23, %c0_24], %47 {strides = array<i32>} : memref<104x128xf32, #tpu.memory_space<vmem>>, vector<104x128xf32>,
    } else {
    }
    return
  }
  func.func @transform_0(%arg0: i32, %arg1: i32) -> (i32, i32) {
    %c0_i32 = arith.constant 0 : i32
    %c0_i32_0 = arith.constant 0 : i32
    return %c0_i32, %arg1 : i32, i32
  }
  func.func @transform_1(%arg0: i32, %arg1: i32) -> (i32, i32) {
    %c0_i32 = arith.constant 0 : i32
    return %arg1, %arg0 : i32, i32
  }
  func.func @transform_2(%arg0: i32, %arg1: i32) -> (i32, i32) {
    %c0_i32 = arith.constant 0 : i32
    %c0_i32_0 = arith.constant 0 : i32
    return %c0_i32, %arg0 : i32, i32
  }
  func.func @transform_3(%arg0: i32, %arg1: i32) -> (i32, i32) {
    %c0_i32 = arith.constant 0 : i32
    %c0_i32_0 = arith.constant 0 : i32
    return %c0_i32, %arg0 : i32, i32
  }
  func.func @transform_4(%arg0: i32, %arg1: i32) -> (i32, i32) {
    %c0_i32 = arith.constant 0 : i32
    %c0_i32_0 = arith.constant 0 : i32
    return %c0_i32, %arg0 : i32, i32
  }
}

module attributes {stable_mosaic.version = 11 : i64} {
  func.func @_fused_matmul_kernel(%arg0: i32, %arg1: i32, %arg2: memref<8x896xbf16, #tpu.memory_space<vmem>>, %arg3: memref<896x512xbf16, #tpu.memory_space<vmem>>, %arg4: memref<1x512xf32, #tpu.memory_space<vmem>>, %arg5: memref<1x512xf32, #tpu.memory_space<vmem>>, %arg6: memref<8x512xf32, #tpu.memory_space<vmem>>) attributes {dimension_semantics = [#tpu.dimension_semantics<parallel>, #tpu.dimension_semantics<arbitrary>], iteration_bounds = array<i64: 2, 7>, scalar_prefetch = 0 : i64, scratch_operands = 0 : i64, tpu.core_type = #tpu.core_type<tc>, window_params = [{transform_indices = @transform_0, window_bounds = array<i64: 8, 896>}, {transform_indices = @transform_1, window_bounds = array<i64: 896, 512>}, {transform_indices = @transform_2, window_bounds = array<i64: 1, 512>}, {transform_indices = @transform_3, window_bounds = array<i64: 1, 512>}, {transform_indices = @transform_4, window_bounds = array<i64: 8, 512>}]} {
    %c0_i32 = arith.constant 0 : i32
    %0 = arith.cmpi eq, %arg1, %c0_i32 : i32
    %1 = arith.extui %0 : i1 to i32
    %c0_i32_0 = arith.constant 0 : i32
    %2 = arith.cmpi ne, %1, %c0_i32_0 : i32
    scf.if %2 {
      %cst_9 = arith.constant 0.000000e+00 : f32
      %12 = vector.broadcast %cst_9 : f32 to vector<8x512xf32>
      %c0_10 = arith.constant 0 : index
      %c0_11 = arith.constant 0 : index
      %13 = vector.load %arg6[%c0_10, %c0_11] : memref<8x512xf32, #tpu.memory_space<vmem>>, vector<8x512xf32>
      tpu.vector_store %arg6[%c0_10, %c0_11], %12 {strides = array<i32>} : memref<8x512xf32, #tpu.memory_space<vmem>>, vector<8x512xf32>,
    } else {
    }
    %c0 = arith.constant 0 : index
    %c0_1 = arith.constant 0 : index
    %3 = vector.load %arg6[%c0, %c0_1] : memref<8x512xf32, #tpu.memory_space<vmem>>, vector<8x512xf32>
    %c0_2 = arith.constant 0 : index
    %c0_3 = arith.constant 0 : index
    %4 = vector.load %arg2[%c0_2, %c0_3] : memref<8x896xbf16, #tpu.memory_space<vmem>>, vector<8x896xbf16>
    %c0_4 = arith.constant 0 : index
    %c0_5 = arith.constant 0 : index
    %5 = vector.load %arg3[%c0_4, %c0_5] : memref<896x512xbf16, #tpu.memory_space<vmem>>, vector<896x512xbf16>
    %cst = arith.constant dense<0.000000e+00> : vector<8x512xf32>
    %6 = tpu.matmul %4, %5, %cst {dimension_numbers = #tpu.dot_dimension_numbers<[1], [0], [0], [1], [0, 0, 1, 1], [], []>} : vector<8x896xbf16>, vector<896x512xbf16>, vector<8x512xf32> -> vector<8x512xf32>
    %7 = arith.addf %3, %6 : vector<8x512xf32>
    %c0_6 = arith.constant 0 : index
    %c0_7 = arith.constant 0 : index
    %8 = vector.load %arg6[%c0_6, %c0_7] : memref<8x512xf32, #tpu.memory_space<vmem>>, vector<8x512xf32>
    tpu.vector_store %arg6[%c0_6, %c0_7], %7 {strides = array<i32>} : memref<8x512xf32, #tpu.memory_space<vmem>>, vector<8x512xf32>,
    %c6_i32 = arith.constant 6 : i32
    %9 = arith.cmpi eq, %arg1, %c6_i32 : i32
    %10 = arith.extui %9 : i1 to i32
    %c0_i32_8 = arith.constant 0 : i32
    %11 = arith.cmpi ne, %10, %c0_i32_8 : i32
    scf.if %11 {
      %c0_9 = arith.constant 0 : index
      %c0_10 = arith.constant 0 : index
      %12 = vector.load %arg6[%c0_9, %c0_10] : memref<8x512xf32, #tpu.memory_space<vmem>>, vector<8x512xf32>
      %13 = tpu.iota {dimensions = array<i32: 0>} : vector<8x512xi32>
      %c2_i32 = arith.constant 2 : i32
      %14 = vector.broadcast %c2_i32 : i32 to vector<8x512xi32>
      %15 = arith.cmpi slt, %13, %14 : vector<8x512xi32>
      %16 = arith.extui %15 : vector<8x512xi1> to vector<8x512xi32>
      %17 = arith.sitofp %16 : vector<8x512xi32> to vector<8x512xf32>
      %18 = arith.mulf %12, %17 : vector<8x512xf32>
      %cst_11 = arith.constant dense<0.000000e+00> : vector<512xf32>
      %19 = vector.multi_reduction <add>, %18, %cst_11 [0] : vector<8x512xf32> to vector<512xf32>
      %20 = vector.shape_cast %19 : vector<512xf32> to vector<1x512xf32>
      %21 = arith.mulf %12, %12 : vector<8x512xf32>
      %22 = arith.mulf %21, %17 : vector<8x512xf32>
      %cst_12 = arith.constant dense<0.000000e+00> : vector<512xf32>
      %23 = vector.multi_reduction <add>, %22, %cst_12 [0] : vector<8x512xf32> to vector<512xf32>
      %24 = vector.shape_cast %23 : vector<512xf32> to vector<1x512xf32>
      %cst_13 = arith.constant 5.000000e-01 : f32
      %25 = vector.broadcast %cst_13 : f32 to vector<1x512xf32>
      %26 = arith.mulf %20, %25 : vector<1x512xf32>
      %cst_14 = arith.constant 5.000000e-01 : f32
      %27 = vector.broadcast %cst_14 : f32 to vector<1x512xf32>
      %28 = arith.mulf %24, %27 : vector<1x512xf32>
      %29 = arith.mulf %26, %26 : vector<1x512xf32>
      %30 = arith.subf %28, %29 : vector<1x512xf32>
      %cst_15 = arith.constant 9.99999974E-6 : f32
      %31 = vector.broadcast %cst_15 : f32 to vector<1x512xf32>
      %32 = arith.addf %30, %31 : vector<1x512xf32>
      %33 = math.rsqrt %32 : vector<1x512xf32>
      %34 = vector.broadcast %26 : vector<1x512xf32> to vector<8x512xf32>
      %35 = arith.subf %12, %34 : vector<8x512xf32>
      %c0_16 = arith.constant 0 : index
      %c0_17 = arith.constant 0 : index
      %36 = vector.load %arg4[%c0_16, %c0_17] : memref<1x512xf32, #tpu.memory_space<vmem>>, vector<1x512xf32>
      %37 = arith.mulf %33, %36 : vector<1x512xf32>
      %38 = vector.broadcast %37 : vector<1x512xf32> to vector<8x512xf32>
      %39 = arith.mulf %35, %38 : vector<8x512xf32>
      %c0_18 = arith.constant 0 : index
      %c0_19 = arith.constant 0 : index
      %40 = vector.load %arg5[%c0_18, %c0_19] : memref<1x512xf32, #tpu.memory_space<vmem>>, vector<1x512xf32>
      %41 = vector.broadcast %40 : vector<1x512xf32> to vector<8x512xf32>
      %42 = arith.addf %39, %41 : vector<8x512xf32>
      %cst_20 = arith.constant 0.000000e+00 : f32
      %43 = vector.broadcast %cst_20 : f32 to vector<8x512xf32>
      %44 = arith.cmpf oge, %42, %43 : vector<8x512xf32>
      %cst_21 = arith.constant 1.000000e-01 : f32
      %45 = vector.broadcast %cst_21 : f32 to vector<8x512xf32>
      %46 = arith.mulf %45, %42 : vector<8x512xf32>
      %47 = arith.select %44, %42, %46 : vector<8x512xi1>, vector<8x512xf32>
      %c0_22 = arith.constant 0 : index
      %c0_23 = arith.constant 0 : index
      %48 = vector.load %arg6[%c0_22, %c0_23] : memref<8x512xf32, #tpu.memory_space<vmem>>, vector<8x512xf32>
      tpu.vector_store %arg6[%c0_22, %c0_23], %47 {strides = array<i32>} : memref<8x512xf32, #tpu.memory_space<vmem>>, vector<8x512xf32>,
    } else {
    }
    return
  }
  func.func @transform_0(%arg0: i32, %arg1: i32) -> (i32, i32) {
    %c0_i32 = arith.constant 0 : i32
    %c0_i32_0 = arith.constant 0 : i32
    return %c0_i32, %arg1 : i32, i32
  }
  func.func @transform_1(%arg0: i32, %arg1: i32) -> (i32, i32) {
    %c0_i32 = arith.constant 0 : i32
    return %arg1, %arg0 : i32, i32
  }
  func.func @transform_2(%arg0: i32, %arg1: i32) -> (i32, i32) {
    %c0_i32 = arith.constant 0 : i32
    %c0_i32_0 = arith.constant 0 : i32
    return %c0_i32, %arg0 : i32, i32
  }
  func.func @transform_3(%arg0: i32, %arg1: i32) -> (i32, i32) {
    %c0_i32 = arith.constant 0 : i32
    %c0_i32_0 = arith.constant 0 : i32
    return %c0_i32, %arg0 : i32, i32
  }
  func.func @transform_4(%arg0: i32, %arg1: i32) -> (i32, i32) {
    %c0_i32 = arith.constant 0 : i32
    %c0_i32_0 = arith.constant 0 : i32
    return %c0_i32, %arg0 : i32, i32
  }
}

module attributes {stable_mosaic.version = 11 : i64} {
  func.func @_fused_matmul_kernel(%arg0: i32, %arg1: i32, %arg2: memref<8x1024xbf16, #tpu.memory_space<vmem>>, %arg3: memref<1024x256xbf16, #tpu.memory_space<vmem>>, %arg4: memref<1x256xf32, #tpu.memory_space<vmem>>, %arg5: memref<8x256xf32, #tpu.memory_space<vmem>>) attributes {dimension_semantics = [#tpu.dimension_semantics<parallel>, #tpu.dimension_semantics<arbitrary>], iteration_bounds = array<i64: 1, 1>, scalar_prefetch = 0 : i64, scratch_operands = 0 : i64, tpu.core_type = #tpu.core_type<tc>, window_params = [{transform_indices = @transform_0, window_bounds = array<i64: 8, 1024>}, {transform_indices = @transform_1, window_bounds = array<i64: 1024, 256>}, {transform_indices = @transform_2, window_bounds = array<i64: 1, 256>}, {transform_indices = @transform_3, window_bounds = array<i64: 8, 256>}]} {
    %c0_i32 = arith.constant 0 : i32
    %0 = arith.cmpi eq, %arg1, %c0_i32 : i32
    %1 = arith.extui %0 : i1 to i32
    %c0_i32_0 = arith.constant 0 : i32
    %2 = arith.cmpi ne, %1, %c0_i32_0 : i32
    scf.if %2 {
      %cst_10 = arith.constant 0.000000e+00 : f32
      %12 = vector.broadcast %cst_10 : f32 to vector<8x256xf32>
      %c0_11 = arith.constant 0 : index
      %c0_12 = arith.constant 0 : index
      %13 = vector.load %arg5[%c0_11, %c0_12] : memref<8x256xf32, #tpu.memory_space<vmem>>, vector<8x256xf32>
      tpu.vector_store %arg5[%c0_11, %c0_12], %12 {strides = array<i32>} : memref<8x256xf32, #tpu.memory_space<vmem>>, vector<8x256xf32>,
    } else {
    }
    %c0 = arith.constant 0 : index
    %c0_1 = arith.constant 0 : index
    %3 = vector.load %arg5[%c0, %c0_1] : memref<8x256xf32, #tpu.memory_space<vmem>>, vector<8x256xf32>
    %c0_2 = arith.constant 0 : index
    %c0_3 = arith.constant 0 : index
    %4 = vector.load %arg2[%c0_2, %c0_3] : memref<8x1024xbf16, #tpu.memory_space<vmem>>, vector<8x1024xbf16>
    %c0_4 = arith.constant 0 : index
    %c0_5 = arith.constant 0 : index
    %5 = vector.load %arg3[%c0_4, %c0_5] : memref<1024x256xbf16, #tpu.memory_space<vmem>>, vector<1024x256xbf16>
    %cst = arith.constant dense<0.000000e+00> : vector<8x256xf32>
    %6 = tpu.matmul %4, %5, %cst {dimension_numbers = #tpu.dot_dimension_numbers<[1], [0], [0], [1], [0, 0, 1, 1], [], []>} : vector<8x1024xbf16>, vector<1024x256xbf16>, vector<8x256xf32> -> vector<8x256xf32>
    %7 = arith.addf %3, %6 : vector<8x256xf32>
    %c0_6 = arith.constant 0 : index
    %c0_7 = arith.constant 0 : index
    %8 = vector.load %arg5[%c0_6, %c0_7] : memref<8x256xf32, #tpu.memory_space<vmem>>, vector<8x256xf32>
    tpu.vector_store %arg5[%c0_6, %c0_7], %7 {strides = array<i32>} : memref<8x256xf32, #tpu.memory_space<vmem>>, vector<8x256xf32>,
    %c0_i32_8 = arith.constant 0 : i32
    %9 = arith.cmpi eq, %arg1, %c0_i32_8 : i32
    %10 = arith.extui %9 : i1 to i32
    %c0_i32_9 = arith.constant 0 : i32
    %11 = arith.cmpi ne, %10, %c0_i32_9 : i32
    scf.if %11 {
      %c0_10 = arith.constant 0 : index
      %c0_11 = arith.constant 0 : index
      %12 = vector.load %arg5[%c0_10, %c0_11] : memref<8x256xf32, #tpu.memory_space<vmem>>, vector<8x256xf32>
      %c0_12 = arith.constant 0 : index
      %c0_13 = arith.constant 0 : index
      %13 = vector.load %arg4[%c0_12, %c0_13] : memref<1x256xf32, #tpu.memory_space<vmem>>, vector<1x256xf32>
      %14 = vector.broadcast %13 : vector<1x256xf32> to vector<8x256xf32>
      %15 = arith.addf %12, %14 : vector<8x256xf32>
      %cst_14 = arith.constant 0.000000e+00 : f32
      %16 = vector.broadcast %cst_14 : f32 to vector<8x256xf32>
      %17 = arith.maximumf %15, %16 : vector<8x256xf32>
      %c0_15 = arith.constant 0 : index
      %c0_16 = arith.constant 0 : index
      %18 = vector.load %arg5[%c0_15, %c0_16] : memref<8x256xf32, #tpu.memory_space<vmem>>, vector<8x256xf32>
      tpu.vector_store %arg5[%c0_15, %c0_16], %17 {strides = array<i32>} : memref<8x256xf32, #tpu.memory_space<vmem>>, vector<8x256xf32>,
    } else {
    }
    return
  }
  func.func @transform_0(%arg0: i32, %arg1: i32) -> (i32, i32) {
    %c0_i32 = arith.constant 0 : i32
    %c0_i32_0 = arith.constant 0 : i32
    return %c0_i32, %arg1 : i32, i32
  }
  func.func @transform_1(%arg0: i32, %arg1: i32) -> (i32, i32) {
    %c0_i32 = arith.constant 0 : i32
    return %arg1, %arg0 : i32, i32
  }
  func.func @transform_2(%arg0: i32, %arg1: i32) -> (i32, i32) {
    %c0_i32 = arith.constant 0 : i32
    %c0_i32_0 = arith.constant 0 : i32
    return %c0_i32, %arg0 : i32, i32
  }
  func.func @transform_3(%arg0: i32, %arg1: i32) -> (i32, i32) {
    %c0_i32 = arith.constant 0 : i32
    %c0_i32_0 = arith.constant 0 : i32
    return %c0_i32, %arg0 : i32, i32
  }
}

</mosaic_0001>

<llo_original>
// kernel: encoder_forward.4
$region0: #{encoder_forward.4}
  #allocation0 [shape = 'u32[]', space=smem, size = 0x4, offset = 0x4, fixed_abs, tag = 'smem constant byte address 0x4 - core index']
  #allocation1 [shape = 'u32[144,128]{1,0:T(1,128)}', space=vmem, size = 0x12000, scoped, tag = 'internal scratch']
  %s0 = inlined_call_operand.vmem [shape: bf16[392,16], index: 0, kind: input, shape index: {}]
  %s1 = inlined_call_operand.vmem [shape: bf16[16,128], index: 1, kind: input, shape index: {}]
  %s2 = inlined_call_operand.vmem [shape: f32[1,128], index: 2, kind: input, shape index: {}]
  %s3 = inlined_call_operand.vmem [shape: f32[392,128], index: 3, kind: output, shape index: {}]
  %s4 = sld [smem:[#allocation0]]
  $region30: #{encoder_forward.4} parent=0
    _
  %s6 = ssub.s32 1, %s4
  %s7 = scalar_select 0, %s6, %s4
  // Predicated region
  $region2: #{encoder_forward.4} parent=0 // pred_check
    _
  $region3: #{encoder_forward.4} parent=0 // pred_check_branch
    %9 = sbr.rel (0) target = $region5
  $region4: #{encoder_forward.4} parent=0 // pred_region
    _
  $region5: #{encoder_forward.4} parent=0 // pred_fallthru
    _
  // Predicated region
  $region6: #{encoder_forward.4} parent=0 // pred_check
    _
  $region7: #{encoder_forward.4} parent=0 // pred_check_branch
    %11 = sbr.rel (0) target = $region9
  $region8: #{encoder_forward.4} parent=0 // pred_region
    _
  $region9: #{encoder_forward.4} parent=0 // pred_fallthru
    _
  // Predicated region
  $region10: #{encoder_forward.4} parent=0 // pred_check
    _
  $region11: #{encoder_forward.4} parent=0 // pred_check_branch
    %13 = sbr.rel (0) target = $region13
  $region12: #{encoder_forward.4} parent=0 // pred_region
    _
  $region13: #{encoder_forward.4} parent=0 // pred_fallthru
    _
  %p15 = scmp.eq.s32.totalorder 0, 0
  // Predicated region
  $region14: #{encoder_forward.4} parent=0 // pred_check
    %p16 = pneg %p15
  $region15: #{encoder_forward.4} parent=0 // pred_check_branch
    %18 = sbr.rel (%p16) target = $region17
  $region16: #{encoder_forward.4} parent=0 // pred_region
    %19 = vst [vmem:[%s3] sm:$0xff] 0.0
    %20 = vst [vmem:[%s3 + $0x8] sm:$0xff] 0.0
    %21 = vst [vmem:[%s3 + $0x10] sm:$0xff] 0.0
    %22 = vst [vmem:[%s3 + $0x18] sm:$0xff] 0.0
    %23 = vst [vmem:[%s3 + $0x20] sm:$0xff] 0.0
    %24 = vst [vmem:[%s3 + $0x28] sm:$0xff] 0.0
    %25 = vst [vmem:[%s3 + $0x30] sm:$0xff] 0.0
    %26 = vst [vmem:[%s3 + $0x38] sm:$0xff] 0.0
    %27 = vst [vmem:[%s3 + $0x40] sm:$0xff] 0.0
    %28 = vst [vmem:[%s3 + $0x48] sm:$0xff] 0.0
    %29 = vst [vmem:[%s3 + $0x50] sm:$0xff] 0.0
    %30 = vst [vmem:[%s3 + $0x58] sm:$0xff] 0.0
    %31 = vst [vmem:[%s3 + $0x60] sm:$0xff] 0.0
    %32 = vst [vmem:[%s3 + $0x68] sm:$0xff] 0.0
    %33 = vst [vmem:[%s3 + $0x70] sm:$0xff] 0.0
    %34 = vst [vmem:[%s3 + $0x78] sm:$0xff] 0.0
    %35 = vst [vmem:[%s3 + $0x80] sm:$0xff] 0.0
    %36 = vst [vmem:[%s3 + $0x88] sm:$0xff] 0.0
    %37 = vst [vmem:[%s3 + $0x90] sm:$0xff] 0.0
    %38 = vst [vmem:[%s3 + $0x98] sm:$0xff] 0.0
    %39 = vst [vmem:[%s3 + $0xa0] sm:$0xff] 0.0
    %40 = vst [vmem:[%s3 + $0xa8] sm:$0xff] 0.0
    %41 = vst [vmem:[%s3 + $0xb0] sm:$0xff] 0.0
    %42 = vst [vmem:[%s3 + $0xb8] sm:$0xff] 0.0
    %43 = vst [vmem:[%s3 + $0xc0] sm:$0xff] 0.0
    %44 = vst [vmem:[%s3 + $0xc8] sm:$0xff] 0.0
    %45 = vst [vmem:[%s3 + $0xd0] sm:$0xff] 0.0
    %46 = vst [vmem:[%s3 + $0xd8] sm:$0xff] 0.0
    %47 = vst [vmem:[%s3 + $0xe0] sm:$0xff] 0.0
    %48 = vst [vmem:[%s3 + $0xe8] sm:$0xff] 0.0
    %49 = vst [vmem:[%s3 + $0xf0] sm:$0xff] 0.0
    %50 = vst [vmem:[%s3 + $0xf8] sm:$0xff] 0.0
    %51 = vst [vmem:[%s3 + $0x100] sm:$0xff] 0.0
    %52 = vst [vmem:[%s3 + $0x108] sm:$0xff] 0.0
    %53 = vst [vmem:[%s3 + $0x110] sm:$0xff] 0.0
    %54 = vst [vmem:[%s3 + $0x118] sm:$0xff] 0.0
    %55 = vst [vmem:[%s3 + $0x120] sm:$0xff] 0.0
    %56 = vst [vmem:[%s3 + $0x128] sm:$0xff] 0.0
    %57 = vst [vmem:[%s3 + $0x130] sm:$0xff] 0.0
    %58 = vst [vmem:[%s3 + $0x138] sm:$0xff] 0.0
    %59 = vst [vmem:[%s3 + $0x140] sm:$0xff] 0.0
    %60 = vst [vmem:[%s3 + $0x148] sm:$0xff] 0.0
    %61 = vst [vmem:[%s3 + $0x150] sm:$0xff] 0.0
    %62 = vst [vmem:[%s3 + $0x158] sm:$0xff] 0.0
    %63 = vst [vmem:[%s3 + $0x160] sm:$0xff] 0.0
    %64 = vst [vmem:[%s3 + $0x168] sm:$0xff] 0.0
    %65 = vst [vmem:[%s3 + $0x170] sm:$0xff] 0.0
    %66 = vst [vmem:[%s3 + $0x178] sm:$0xff] 0.0
    %67 = vst [vmem:[%s3 + $0x180] sm:$0xff] 0.0
  $region17: #{encoder_forward.4} parent=0 // pred_fallthru
    _
  %v68 = vld [vmem:[%s3] sm:$0xff]
  %v69 = vld [vmem:[%s3 + $0x8] sm:$0xff]
  %v70 = vld [vmem:[%s3 + $0x10] sm:$0xff]
  %v71 = vld [vmem:[%s3 + $0x18] sm:$0xff]
  %v72 = vld [vmem:[%s3 + $0x20] sm:$0xff]
  %v73 = vld [vmem:[%s3 + $0x28] sm:$0xff]
  %v74 = vld [vmem:[%s3 + $0x30] sm:$0xff]
  %v75 = vld [vmem:[%s3 + $0x38] sm:$0xff]
  %v76 = vld [vmem:[%s3 + $0x40] sm:$0xff]
  %v77 = vld [vmem:[%s3 + $0x48] sm:$0xff]
  %v78 = vld [vmem:[%s3 + $0x50] sm:$0xff]
  %v79 = vld [vmem:[%s3 + $0x58] sm:$0xff]
  %v80 = vld [vmem:[%s3 + $0x60] sm:$0xff]
  %v81 = vld [vmem:[%s3 + $0x68] sm:$0xff]
  %v82 = vld [vmem:[%s3 + $0x70] sm:$0xff]
  %v83 = vld [vmem:[%s3 + $0x78] sm:$0xff]
  %v84 = vld [vmem:[%s3 + $0x80] sm:$0xff]
  %v85 = vld [vmem:[%s3 + $0x88] sm:$0xff]
  %v86 = vld [vmem:[%s3 + $0x90] sm:$0xff]
  %v87 = vld [vmem:[%s3 + $0x98] sm:$0xff]
  %v88 = vld [vmem:[%s3 + $0xa0] sm:$0xff]
  %v89 = vld [vmem:[%s3 + $0xa8] sm:$0xff]
  %v90 = vld [vmem:[%s3 + $0xb0] sm:$0xff]
  %v91 = vld [vmem:[%s3 + $0xb8] sm:$0xff]
  %v92 = vld [vmem:[%s3 + $0xc0] sm:$0xff]
  %v93 = vld [vmem:[%s3 + $0xc8] sm:$0xff]
  %v94 = vld [vmem:[%s3 + $0xd0] sm:$0xff]
  %v95 = vld [vmem:[%s3 + $0xd8] sm:$0xff]
  %v96 = vld [vmem:[%s3 + $0xe0] sm:$0xff]
  %v97 = vld [vmem:[%s3 + $0xe8] sm:$0xff]
  %v98 = vld [vmem:[%s3 + $0xf0] sm:$0xff]
  %v99 = vld [vmem:[%s3 + $0xf8] sm:$0xff]
  %v100 = vld [vmem:[%s3 + $0x100] sm:$0xff]
  %v101 = vld [vmem:[%s3 + $0x108] sm:$0xff]
  %v102 = vld [vmem:[%s3 + $0x110] sm:$0xff]
  %v103 = vld [vmem:[%s3 + $0x118] sm:$0xff]
  %v104 = vld [vmem:[%s3 + $0x120] sm:$0xff]
  %v105 = vld [vmem:[%s3 + $0x128] sm:$0xff]
  %v106 = vld [vmem:[%s3 + $0x130] sm:$0xff]
  %v107 = vld [vmem:[%s3 + $0x138] sm:$0xff]
  %v108 = vld [vmem:[%s3 + $0x140] sm:$0xff]
  %v109 = vld [vmem:[%s3 + $0x148] sm:$0xff]
  %v110 = vld [vmem:[%s3 + $0x150] sm:$0xff]
  %v111 = vld [vmem:[%s3 + $0x158] sm:$0xff]
  %v112 = vld [vmem:[%s3 + $0x160] sm:$0xff]
  %v113 = vld [vmem:[%s3 + $0x168] sm:$0xff]
  %v114 = vld [vmem:[%s3 + $0x170] sm:$0xff]
  %v115 = vld [vmem:[%s3 + $0x178] sm:$0xff]
  %v116 = vld [vmem:[%s3 + $0x180] sm:$0xff]
  %v117 = vld [vmem:[%s0] sm:$0xf]
  %v118 = vld [vmem:[%s0 + $0x4] sm:$0xf]
  %v119 = vld [vmem:[%s0 + $0x8] sm:$0xf]
  %v120 = vld [vmem:[%s0 + $0xc] sm:$0xf]
  %v121 = vld [vmem:[%s0 + $0x10] sm:$0xf]
  %v122 = vld [vmem:[%s0 + $0x14] sm:$0xf]
  %v123 = vld [vmem:[%s0 + $0x18] sm:$0xf]
  %v124 = vld [vmem:[%s0 + $0x1c] sm:$0xf]
  %v125 = vld [vmem:[%s0 + $0x20] sm:$0xf]
  %v126 = vld [vmem:[%s0 + $0x24] sm:$0xf]
  %v127 = vld [vmem:[%s0 + $0x28] sm:$0xf]
  %v128 = vld [vmem:[%s0 + $0x2c] sm:$0xf]
  %v129 = vld [vmem:[%s0 + $0x30] sm:$0xf]
  %v130 = vld [vmem:[%s0 + $0x34] sm:$0xf]
  %v131 = vld [vmem:[%s0 + $0x38] sm:$0xf]
  %v132 = vld [vmem:[%s0 + $0x3c] sm:$0xf]
  %v133 = vld [vmem:[%s0 + $0x40] sm:$0xf]
  %v134 = vld [vmem:[%s0 + $0x44] sm:$0xf]
  %v135 = vld [vmem:[%s0 + $0x48] sm:$0xf]
  %v136 = vld [vmem:[%s0 + $0x4c] sm:$0xf]
  %v137 = vld [vmem:[%s0 + $0x50] sm:$0xf]
  %v138 = vld [vmem:[%s0 + $0x54] sm:$0xf]
  %v139 = vld [vmem:[%s0 + $0x58] sm:$0xf]
  %v140 = vld [vmem:[%s0 + $0x5c] sm:$0xf]
  %v141 = vld [vmem:[%s0 + $0x60] sm:$0xf]
  %v142 = vld [vmem:[%s0 + $0x64] sm:$0xf]
  %v143 = vld [vmem:[%s0 + $0x68] sm:$0xf]
  %v144 = vld [vmem:[%s0 + $0x6c] sm:$0xf]
  %v145 = vld [vmem:[%s0 + $0x70] sm:$0xf]
  %v146 = vld [vmem:[%s0 + $0x74] sm:$0xf]
  %v147 = vld [vmem:[%s0 + $0x78] sm:$0xf]
  %v148 = vld [vmem:[%s0 + $0x7c] sm:$0xf]
  %v149 = vld [vmem:[%s0 + $0x80] sm:$0xf]
  %v150 = vld [vmem:[%s0 + $0x84] sm:$0xf]
  %v151 = vld [vmem:[%s0 + $0x88] sm:$0xf]
  %v152 = vld [vmem:[%s0 + $0x8c] sm:$0xf]
  %v153 = vld [vmem:[%s0 + $0x90] sm:$0xf]
  %v154 = vld [vmem:[%s0 + $0x94] sm:$0xf]
  %v155 = vld [vmem:[%s0 + $0x98] sm:$0xf]
  %v156 = vld [vmem:[%s0 + $0x9c] sm:$0xf]
  %v157 = vld [vmem:[%s0 + $0xa0] sm:$0xf]
  %v158 = vld [vmem:[%s0 + $0xa4] sm:$0xf]
  %v159 = vld [vmem:[%s0 + $0xa8] sm:$0xf]
  %v160 = vld [vmem:[%s0 + $0xac] sm:$0xf]
  %v161 = vld [vmem:[%s0 + $0xb0] sm:$0xf]
  %v162 = vld [vmem:[%s0 + $0xb4] sm:$0xf]
  %v163 = vld [vmem:[%s0 + $0xb8] sm:$0xf]
  %v164 = vld [vmem:[%s0 + $0xbc] sm:$0xf]
  %v165 = vld [vmem:[%s0 + $0xc0] sm:$0xf]
  %v166 = vld [vmem:[%s1] sm:$0xf]
  %v167 = vld [vmem:[%s1 + $0x4] sm:$0xf]
  %v217 = vunpack.c.l.b16 %v117
  %v218 = vunpack.c.l.b16 %v118
  %v219 = vunpack.c.l.b16 %v119
  %v220 = vunpack.c.l.b16 %v120
  %v221 = vunpack.c.l.b16 %v121
  %v222 = vunpack.c.l.b16 %v122
  %v223 = vunpack.c.l.b16 %v123
  %v224 = vunpack.c.l.b16 %v124
  %v225 = vunpack.c.l.b16 %v125
  %v226 = vunpack.c.l.b16 %v126
  %v227 = vunpack.c.l.b16 %v127
  %v228 = vunpack.c.l.b16 %v128
  %v229 = vunpack.c.l.b16 %v129
  %v230 = vunpack.c.l.b16 %v130
  %v231 = vunpack.c.l.b16 %v131
  %v232 = vunpack.c.l.b16 %v132
  %v233 = vunpack.c.l.b16 %v133
  %v234 = vunpack.c.l.b16 %v134
  %v235 = vunpack.c.l.b16 %v135
  %v236 = vunpack.c.l.b16 %v136
  %v237 = vunpack.c.l.b16 %v137
  %v238 = vunpack.c.l.b16 %v138
  %v239 = vunpack.c.l.b16 %v139
  %v240 = vunpack.c.l.b16 %v140
  %v241 = vunpack.c.l.b16 %v141
  %v242 = vunpack.c.l.b16 %v142
  %v243 = vunpack.c.l.b16 %v143
  %v244 = vunpack.c.l.b16 %v144
  %v245 = vunpack.c.l.b16 %v145
  %v246 = vunpack.c.l.b16 %v146
  %v247 = vunpack.c.l.b16 %v147
  %v248 = vunpack.c.l.b16 %v148
  %v249 = vunpack.c.l.b16 %v149
  %v250 = vunpack.c.l.b16 %v150
  %v251 = vunpack.c.l.b16 %v151
  %v252 = vunpack.c.l.b16 %v152
  %v253 = vunpack.c.l.b16 %v153
  %v254 = vunpack.c.l.b16 %v154
  %v255 = vunpack.c.l.b16 %v155
  %v256 = vunpack.c.l.b16 %v156
  %v257 = vunpack.c.l.b16 %v157
  %v258 = vunpack.c.l.b16 %v158
  %v259 = vunpack.c.l.b16 %v159
  %v260 = vunpack.c.l.b16 %v160
  %v261 = vunpack.c.l.b16 %v161
  %v262 = vunpack.c.l.b16 %v162
  %v263 = vunpack.c.l.b16 %v163
  %v264 = vunpack.c.l.b16 %v164
  %v265 = vunpack.c.l.b16 %v165
  %v266 = vpack.c.b16 %v218, %v217
  %v267 = vpack.c.b16 %v220, %v219
  %v268 = vpack.c.b16 %v222, %v221
  %v269 = vpack.c.b16 %v224, %v223
  %v270 = vpack.c.b16 %v226, %v225
  %v271 = vpack.c.b16 %v228, %v227
  %v272 = vpack.c.b16 %v230, %v229
  %v273 = vpack.c.b16 %v232, %v231
  %v274 = vpack.c.b16 %v234, %v233
  %v275 = vpack.c.b16 %v236, %v235
  %v276 = vpack.c.b16 %v238, %v237
  %v277 = vpack.c.b16 %v240, %v239
  %v278 = vpack.c.b16 %v242, %v241
  %v279 = vpack.c.b16 %v244, %v243
  %v280 = vpack.c.b16 %v246, %v245
  %v281 = vpack.c.b16 %v248, %v247
  %v282 = vpack.c.b16 %v250, %v249
  %v283 = vpack.c.b16 %v252, %v251
  %v284 = vpack.c.b16 %v254, %v253
  %v285 = vpack.c.b16 %v256, %v255
  %v286 = vpack.c.b16 %v258, %v257
  %v287 = vpack.c.b16 %v260, %v259
  %v288 = vpack.c.b16 %v262, %v261
  %v289 = vpack.c.b16 %v264, %v263
  %v290 = vpack.c.b16 %v265, %v265
  %v293 = vunpack.c.l.b16 %v166
  %v294 = vunpack.c.l.b16 %v167
  %v295 = vpack.c.b16 %v294, %v293
  %vm297 = vcmask 130048
  %v299 = vsel %vm297, %v266, 0
  %v302 = vsel %vm297, %v267, 0
  %v305 = vsel %vm297, %v268, 0
  %v308 = vsel %vm297, %v269, 0
  %v311 = vsel %vm297, %v270, 0
  %v314 = vsel %vm297, %v271, 0
  %v317 = vsel %vm297, %v272, 0
  %v320 = vsel %vm297, %v273, 0
  %v323 = vsel %vm297, %v274, 0
  %v326 = vsel %vm297, %v275, 0
  %v329 = vsel %vm297, %v276, 0
  %v332 = vsel %vm297, %v277, 0
  %v335 = vsel %vm297, %v278, 0
  %v338 = vsel %vm297, %v279, 0
  %v341 = vsel %vm297, %v280, 0
  %v344 = vsel %vm297, %v281, 0
  %v347 = vsel %vm297, %v282, 0
  %v350 = vsel %vm297, %v283, 0
  %v353 = vsel %vm297, %v284, 0
  %v356 = vsel %vm297, %v285, 0
  %v359 = vsel %vm297, %v286, 0
  %v362 = vsel %vm297, %v287, 0
  %v365 = vsel %vm297, %v288, 0
  %v368 = vsel %vm297, %v289, 0
  %v371 = vsel %vm297, %v290, 0
  %373 = vmatprep.subr.bf16.mxu0 0
  %374 = vmatpush1.bf16.msra.mxu0 0
  %375 = vmatprep.subr.bf16.mxu0 0
  %376 = vmatpush1.bf16.msra.mxu0 0
  %377 = vmatprep.subr.bf16.mxu0 0
  %378 = vmatpush1.bf16.msra.mxu0 0
  %379 = vmatprep.subr.bf16.mxu0 0
  %380 = vmatpush1.bf16.msra.mxu0 0
  %381 = vmatprep.subr.bf16.mxu0 0
  %382 = vmatpush1.bf16.msra.mxu0 0
  %383 = vmatprep.subr.bf16.mxu0 0
  %384 = vmatpush1.bf16.msra.mxu0 0
  %385 = vmatprep.subr.bf16.mxu0 0
  %386 = vmatpush1.bf16.msra.mxu0 0
  %387 = vmatprep.subr.bf16.mxu0 0
  %388 = vmatpush1.bf16.msra.mxu0 %v295
  %389 = vmatprep.subr.bf16.mxu0 0
  %390 = vmatpush2.bf16.msra.mxu0 0
  %391 = vmatprep.subr.bf16.mxu0 0
  %392 = vmatpush2.bf16.msra.mxu0 0
  %393 = vmatprep.subr.bf16.mxu0 0
  %394 = vmatpush2.bf16.msra.mxu0 0
  %395 = vmatprep.subr.bf16.mxu0 0
  %396 = vmatpush2.bf16.msra.mxu0 0
  %397 = vmatprep.subr.bf16.mxu0 0
  %398 = vmatpush2.bf16.msra.mxu0 0
  %399 = vmatprep.subr.bf16.mxu0 0
  %400 = vmatpush2.bf16.msra.mxu0 0
  %401 = vmatprep.subr.bf16.mxu0 0
  %402 = vmatpush2.bf16.msra.mxu0 0
  %403 = vmatprep.subr.bf16.mxu0 0
  %404 = vmatpush2.bf16.msra.mxu0 0
  %405 = vmatprep.mubr.bf16.mxu0 0
  %406 = vmatmul.mubr.bf16.gmra.mxu0 %v299
  %v407 = vpop.f32.mrf.mxu0
  %v408 = vadd.f32 0.0, %v407
  %v409 = vpop.f32.mrf.mxu0
  %v410 = vpop.f32.mrf.mxu0
  %v411 = vadd.f32 0.0, %v410
  %v412 = vpop.f32.mrf.mxu0
  %413 = vmatprep.mubr.bf16.mxu0 0
  %414 = vmatmul.mubr.bf16.gmra.mxu0 %v302
  %v415 = vpop.f32.mrf.mxu0
  %v416 = vadd.f32 0.0, %v415
  %v417 = vpop.f32.mrf.mxu0
  %v418 = vpop.f32.mrf.mxu0
  %v419 = vadd.f32 0.0, %v418
  %v420 = vpop.f32.mrf.mxu0
  %421 = vmatprep.mubr.bf16.mxu0 0
  %422 = vmatmul.mubr.bf16.gmra.mxu0 %v305
  %v423 = vpop.f32.mrf.mxu0
  %v424 = vadd.f32 0.0, %v423
  %v425 = vpop.f32.mrf.mxu0
  %v426 = vpop.f32.mrf.mxu0
  %v427 = vadd.f32 0.0, %v426
  %v428 = vpop.f32.mrf.mxu0
  %429 = vmatprep.mubr.bf16.mxu0 0
  %430 = vmatmul.mubr.bf16.gmra.mxu0 %v308
  %v431 = vpop.f32.mrf.mxu0
  %v432 = vadd.f32 0.0, %v431
  %v433 = vpop.f32.mrf.mxu0
  %v434 = vpop.f32.mrf.mxu0
  %v435 = vadd.f32 0.0, %v434
  %v436 = vpop.f32.mrf.mxu0
  %437 = vmatprep.mubr.bf16.mxu0 0
  %438 = vmatmul.mubr.bf16.gmra.mxu0 %v311
  %v439 = vpop.f32.mrf.mxu0
  %v440 = vadd.f32 0.0, %v439
  %v441 = vpop.f32.mrf.mxu0
  %v442 = vpop.f32.mrf.mxu0
  %v443 = vadd.f32 0.0, %v442
  %v444 = vpop.f32.mrf.mxu0
  %445 = vmatprep.mubr.bf16.mxu0 0
  %446 = vmatmul.mubr.bf16.gmra.mxu0 %v314
  %v447 = vpop.f32.mrf.mxu0
  %v448 = vadd.f32 0.0, %v447
  %v449 = vpop.f32.mrf.mxu0
  %v450 = vpop.f32.mrf.mxu0
  %v451 = vadd.f32 0.0, %v450
  %v452 = vpop.f32.mrf.mxu0
  %453 = vmatprep.mubr.bf16.mxu0 0
  %454 = vmatmul.mubr.bf16.gmra.mxu0 %v317
  %v455 = vpop.f32.mrf.mxu0
  %v456 = vadd.f32 0.0, %v455
  %v457 = vpop.f32.mrf.mxu0
  %v458 = vpop.f32.mrf.mxu0
  %v459 = vadd.f32 0.0, %v458
  %v460 = vpop.f32.mrf.mxu0
  %461 = vmatprep.mubr.bf16.mxu0 0
  %462 = vmatmul.mubr.bf16.gmra.mxu0 %v320
  %v463 = vpop.f32.mrf.mxu0
  %v464 = vadd.f32 0.0, %v463
  %v465 = vpop.f32.mrf.mxu0
  %v466 = vpop.f32.mrf.mxu0
  %v467 = vadd.f32 0.0, %v466
  %v468 = vpop.f32.mrf.mxu0
  %469 = vmatprep.mubr.bf16.mxu0 0
  %470 = vmatmul.mubr.bf16.gmra.mxu0 %v323
  %v471 = vpop.f32.mrf.mxu0
  %v472 = vadd.f32 0.0, %v471
  %v473 = vpop.f32.mrf.mxu0
  %v474 = vpop.f32.mrf.mxu0
  %v475 = vadd.f32 0.0, %v474
  %v476 = vpop.f32.mrf.mxu0
  %477 = vmatprep.mubr.bf16.mxu0 0
  %478 = vmatmul.mubr.bf16.gmra.mxu0 %v326
  %v479 = vpop.f32.mrf.mxu0
  %v480 = vadd.f32 0.0, %v479
  %v481 = vpop.f32.mrf.mxu0
  %v482 = vpop.f32.mrf.mxu0
  %v483 = vadd.f32 0.0, %v482
  %v484 = vpop.f32.mrf.mxu0
  %485 = vmatprep.mubr.bf16.mxu0 0
  %486 = vmatmul.mubr.bf16.gmra.mxu0 %v329
  %v487 = vpop.f32.mrf.mxu0
  %v488 = vadd.f32 0.0, %v487
  %v489 = vpop.f32.mrf.mxu0
  %v490 = vpop.f32.mrf.mxu0
  %v491 = vadd.f32 0.0, %v490
  %v492 = vpop.f32.mrf.mxu0
  %493 = vmatprep.mubr.bf16.mxu0 0
  %494 = vmatmul.mubr.bf16.gmra.mxu0 %v332
  %v495 = vpop.f32.mrf.mxu0
  %v496 = vadd.f32 0.0, %v495
  %v497 = vpop.f32.mrf.mxu0
  %v498 = vpop.f32.mrf.mxu0
  %v499 = vadd.f32 0.0, %v498
  %v500 = vpop.f32.mrf.mxu0
  %501 = vmatprep.mubr.bf16.mxu0 0
  %502 = vmatmul.mubr.bf16.gmra.mxu0 %v335
  %v503 = vpop.f32.mrf.mxu0
  %v504 = vadd.f32 0.0, %v503
  %v505 = vpop.f32.mrf.mxu0
  %v506 = vpop.f32.mrf.mxu0
  %v507 = vadd.f32 0.0, %v506
  %v508 = vpop.f32.mrf.mxu0
  %509 = vmatprep.mubr.bf16.mxu0 0
  %510 = vmatmul.mubr.bf16.gmra.mxu0 %v338
  %v511 = vpop.f32.mrf.mxu0
  %v512 = vadd.f32 0.0, %v511
  %v513 = vpop.f32.mrf.mxu0
  %v514 = vpop.f32.mrf.mxu0
  %v515 = vadd.f32 0.0, %v514
  %v516 = vpop.f32.mrf.mxu0
  %517 = vmatprep.mubr.bf16.mxu0 0
  %518 = vmatmul.mubr.bf16.gmra.mxu0 %v341
  %v519 = vpop.f32.mrf.mxu0
  %v520 = vadd.f32 0.0, %v519
  %v521 = vpop.f32.mrf.mxu0
  %v522 = vpop.f32.mrf.mxu0
  %v523 = vadd.f32 0.0, %v522
  %v524 = vpop.f32.mrf.mxu0
  %525 = vmatprep.mubr.bf16.mxu0 0
  %526 = vmatmul.mubr.bf16.gmra.mxu0 %v344
  %v527 = vpop.f32.mrf.mxu0
  %v528 = vadd.f32 0.0, %v527
  %v529 = vpop.f32.mrf.mxu0
  %v530 = vpop.f32.mrf.mxu0
  %v531 = vadd.f32 0.0, %v530
  %v532 = vpop.f32.mrf.mxu0
  %533 = vmatprep.mubr.bf16.mxu0 0
  %534 = vmatmul.mubr.bf16.gmra.mxu0 %v347
  %v535 = vpop.f32.mrf.mxu0
  %v536 = vadd.f32 0.0, %v535
  %v537 = vpop.f32.mrf.mxu0
  %v538 = vpop.f32.mrf.mxu0
  %v539 = vadd.f32 0.0, %v538
  %v540 = vpop.f32.mrf.mxu0
  %541 = vmatprep.mubr.bf16.mxu0 0
  %542 = vmatmul.mubr.bf16.gmra.mxu0 %v350
  %v543 = vpop.f32.mrf.mxu0
  %v544 = vadd.f32 0.0, %v543
  %v545 = vpop.f32.mrf.mxu0
  %v546 = vpop.f32.mrf.mxu0
  %v547 = vadd.f32 0.0, %v546
  %v548 = vpop.f32.mrf.mxu0
  %549 = vmatprep.mubr.bf16.mxu0 0
  %550 = vmatmul.mubr.bf16.gmra.mxu0 %v353
  %v551 = vpop.f32.mrf.mxu0
  %v552 = vadd.f32 0.0, %v551
  %v553 = vpop.f32.mrf.mxu0
  %v554 = vpop.f32.mrf.mxu0
  %v555 = vadd.f32 0.0, %v554
  %v556 = vpop.f32.mrf.mxu0
  %557 = vmatprep.mubr.bf16.mxu0 0
  %558 = vmatmul.mubr.bf16.gmra.mxu0 %v356
  %v559 = vpop.f32.mrf.mxu0
  %v560 = vadd.f32 0.0, %v559
  %v561 = vpop.f32.mrf.mxu0
  %v562 = vpop.f32.mrf.mxu0
  %v563 = vadd.f32 0.0, %v562
  %v564 = vpop.f32.mrf.mxu0
  %565 = vmatprep.mubr.bf16.mxu0 0
  %566 = vmatmul.mubr.bf16.gmra.mxu0 %v359
  %v567 = vpop.f32.mrf.mxu0
  %v568 = vadd.f32 0.0, %v567
  %v569 = vpop.f32.mrf.mxu0
  %v570 = vpop.f32.mrf.mxu0
  %v571 = vadd.f32 0.0, %v570
  %v572 = vpop.f32.mrf.mxu0
  %573 = vmatprep.mubr.bf16.mxu0 0
  %574 = vmatmul.mubr.bf16.gmra.mxu0 %v362
  %v575 = vpop.f32.mrf.mxu0
  %v576 = vadd.f32 0.0, %v575
  %v577 = vpop.f32.mrf.mxu0
  %v578 = vpop.f32.mrf.mxu0
  %v579 = vadd.f32 0.0, %v578
  %v580 = vpop.f32.mrf.mxu0
  %581 = vmatprep.mubr.bf16.mxu0 0
  %582 = vmatmul.mubr.bf16.gmra.mxu0 %v365
  %v583 = vpop.f32.mrf.mxu0
  %v584 = vadd.f32 0.0, %v583
  %v585 = vpop.f32.mrf.mxu0
  %v586 = vpop.f32.mrf.mxu0
  %v587 = vadd.f32 0.0, %v586
  %v588 = vpop.f32.mrf.mxu0
  %589 = vmatprep.mubr.bf16.mxu0 0
  %590 = vmatmul.mubr.bf16.gmra.mxu0 %v368
  %v591 = vpop.f32.mrf.mxu0
  %v592 = vadd.f32 0.0, %v591
  %v593 = vpop.f32.mrf.mxu0
  %v594 = vpop.f32.mrf.mxu0
  %v595 = vadd.f32 0.0, %v594
  %v596 = vpop.f32.mrf.mxu0
  %597 = vmatprep.mubr.bf16.mxu0 0
  %598 = vmatmul.mubr.bf16.gmra.mxu0 %v371
  %v599 = vpop.f32.mrf.mxu0
  %v600 = vadd.f32 0.0, %v599
  %v601 = vpop.f32.mrf.mxu0
  %v602 = vpop.f32.mrf.mxu0
  %v603 = vpop.f32.mrf.mxu0
  %604 = vdwg.mxu0
  %v605 = vadd.f32 %v68, %v408
  %v606 = vadd.f32 %v69, %v411
  %v607 = vadd.f32 %v70, %v416
  %v608 = vadd.f32 %v71, %v419
  %v609 = vadd.f32 %v72, %v424
  %v610 = vadd.f32 %v73, %v427
  %v611 = vadd.f32 %v74, %v432
  %v612 = vadd.f32 %v75, %v435
  %v613 = vadd.f32 %v76, %v440
  %v614 = vadd.f32 %v77, %v443
  %v615 = vadd.f32 %v78, %v448
  %v616 = vadd.f32 %v79, %v451
  %v617 = vadd.f32 %v80, %v456
  %v618 = vadd.f32 %v81, %v459
  %v619 = vadd.f32 %v82, %v464
  %v620 = vadd.f32 %v83, %v467
  %v621 = vadd.f32 %v84, %v472
  %v622 = vadd.f32 %v85, %v475
  %v623 = vadd.f32 %v86, %v480
  %v624 = vadd.f32 %v87, %v483
  %v625 = vadd.f32 %v88, %v488
  %v626 = vadd.f32 %v89, %v491
  %v627 = vadd.f32 %v90, %v496
  %v628 = vadd.f32 %v91, %v499
  %v629 = vadd.f32 %v92, %v504
  %v630 = vadd.f32 %v93, %v507
  %v631 = vadd.f32 %v94, %v512
  %v632 = vadd.f32 %v95, %v515
  %v633 = vadd.f32 %v96, %v520
  %v634 = vadd.f32 %v97, %v523
  %v635 = vadd.f32 %v98, %v528
  %v636 = vadd.f32 %v99, %v531
  %v637 = vadd.f32 %v100, %v536
  %v638 = vadd.f32 %v101, %v539
  %v639 = vadd.f32 %v102, %v544
  %v640 = vadd.f32 %v103, %v547
  %v641 = vadd.f32 %v104, %v552
  %v642 = vadd.f32 %v105, %v555
  %v643 = vadd.f32 %v106, %v560
  %v644 = vadd.f32 %v107, %v563
  %v645 = vadd.f32 %v108, %v568
  %v646 = vadd.f32 %v109, %v571
  %v647 = vadd.f32 %v110, %v576
  %v648 = vadd.f32 %v111, %v579
  %v649 = vadd.f32 %v112, %v584
  %v650 = vadd.f32 %v113, %v587
  %v651 = vadd.f32 %v114, %v592
  %v652 = vadd.f32 %v115, %v595
  %v653 = vadd.f32 %v116, %v600
  %654 = vst [vmem:[%s3] sm:$0xff] %v605
  %655 = vst [vmem:[%s3 + $0x8] sm:$0xff] %v606
  %656 = vst [vmem:[%s3 + $0x10] sm:$0xff] %v607
  %657 = vst [vmem:[%s3 + $0x18] sm:$0xff] %v608
  %658 = vst [vmem:[%s3 + $0x20] sm:$0xff] %v609
  %659 = vst [vmem:[%s3 + $0x28] sm:$0xff] %v610
  %660 = vst [vmem:[%s3 + $0x30] sm:$0xff] %v611
  %661 = vst [vmem:[%s3 + $0x38] sm:$0xff] %v612
  %662 = vst [vmem:[%s3 + $0x40] sm:$0xff] %v613
  %663 = vst [vmem:[%s3 + $0x48] sm:$0xff] %v614
  %664 = vst [vmem:[%s3 + $0x50] sm:$0xff] %v615
  %665 = vst [vmem:[%s3 + $0x58] sm:$0xff] %v616
  %666 = vst [vmem:[%s3 + $0x60] sm:$0xff] %v617
  %667 = vst [vmem:[%s3 + $0x68] sm:$0xff] %v618
  %668 = vst [vmem:[%s3 + $0x70] sm:$0xff] %v619
  %669 = vst [vmem:[%s3 + $0x78] sm:$0xff] %v620
  %670 = vst [vmem:[%s3 + $0x80] sm:$0xff] %v621
  %671 = vst [vmem:[%s3 + $0x88] sm:$0xff] %v622
  %672 = vst [vmem:[%s3 + $0x90] sm:$0xff] %v623
  %673 = vst [vmem:[%s3 + $0x98] sm:$0xff] %v624
  %674 = vst [vmem:[%s3 + $0xa0] sm:$0xff] %v625
  %675 = vst [vmem:[%s3 + $0xa8] sm:$0xff] %v626
  %676 = vst [vmem:[%s3 + $0xb0] sm:$0xff] %v627
  %677 = vst [vmem:[%s3 + $0xb8] sm:$0xff] %v628
  %678 = vst [vmem:[%s3 + $0xc0] sm:$0xff] %v629
  %679 = vst [vmem:[%s3 + $0xc8] sm:$0xff] %v630
  %680 = vst [vmem:[%s3 + $0xd0] sm:$0xff] %v631
  %681 = vst [vmem:[%s3 + $0xd8] sm:$0xff] %v632
  %682 = vst [vmem:[%s3 + $0xe0] sm:$0xff] %v633
  %683 = vst [vmem:[%s3 + $0xe8] sm:$0xff] %v634
  %684 = vst [vmem:[%s3 + $0xf0] sm:$0xff] %v635
  %685 = vst [vmem:[%s3 + $0xf8] sm:$0xff] %v636
  %686 = vst [vmem:[%s3 + $0x100] sm:$0xff] %v637
  %687 = vst [vmem:[%s3 + $0x108] sm:$0xff] %v638
  %688 = vst [vmem:[%s3 + $0x110] sm:$0xff] %v639
  %689 = vst [vmem:[%s3 + $0x118] sm:$0xff] %v640
  %690 = vst [vmem:[%s3 + $0x120] sm:$0xff] %v641
  %691 = vst [vmem:[%s3 + $0x128] sm:$0xff] %v642
  %692 = vst [vmem:[%s3 + $0x130] sm:$0xff] %v643
  %693 = vst [vmem:[%s3 + $0x138] sm:$0xff] %v644
  %694 = vst [vmem:[%s3 + $0x140] sm:$0xff] %v645
  %695 = vst [vmem:[%s3 + $0x148] sm:$0xff] %v646
  %696 = vst [vmem:[%s3 + $0x150] sm:$0xff] %v647
  %697 = vst [vmem:[%s3 + $0x158] sm:$0xff] %v648
  %698 = vst [vmem:[%s3 + $0x160] sm:$0xff] %v649
  %699 = vst [vmem:[%s3 + $0x168] sm:$0xff] %v650
  %700 = vst [vmem:[%s3 + $0x170] sm:$0xff] %v651
  %701 = vst [vmem:[%s3 + $0x178] sm:$0xff] %v652
  %702 = vst [vmem:[%s3 + $0x180] sm:$0xff] %v653
  // Predicated region
  $region18: #{encoder_forward.4} parent=0 // pred_check
    %p703 = pneg %p15
  $region19: #{encoder_forward.4} parent=0 // pred_check_branch
    %705 = sbr.rel (%p703) target = $region21
  $region20: #{encoder_forward.4} parent=0 // pred_region
    %v706 = vld [vmem:[%s3] sm:$0xff]
    %v707 = vld [vmem:[%s3 + $0x8] sm:$0xff]
    %v708 = vld [vmem:[%s3 + $0x10] sm:$0xff]
    %v709 = vld [vmem:[%s3 + $0x18] sm:$0xff]
    %v710 = vld [vmem:[%s3 + $0x20] sm:$0xff]
    %v711 = vld [vmem:[%s3 + $0x28] sm:$0xff]
    %v712 = vld [vmem:[%s3 + $0x30] sm:$0xff]
    %v713 = vld [vmem:[%s3 + $0x38] sm:$0xff]
    %v714 = vld [vmem:[%s3 + $0x40] sm:$0xff]
    %v715 = vld [vmem:[%s3 + $0x48] sm:$0xff]
    %v716 = vld [vmem:[%s3 + $0x50] sm:$0xff]
    %v717 = vld [vmem:[%s3 + $0x58] sm:$0xff]
    %v718 = vld [vmem:[%s3 + $0x60] sm:$0xff]
    %v719 = vld [vmem:[%s3 + $0x68] sm:$0xff]
    %v720 = vld [vmem:[%s3 + $0x70] sm:$0xff]
    %v721 = vld [vmem:[%s3 + $0x78] sm:$0xff]
    %v722 = vld [vmem:[%s3 + $0x80] sm:$0xff]
    %v723 = vld [vmem:[%s3 + $0x88] sm:$0xff]
    %v724 = vld [vmem:[%s3 + $0x90] sm:$0xff]
    %v725 = vld [vmem:[%s3 + $0x98] sm:$0xff]
    %v726 = vld [vmem:[%s3 + $0xa0] sm:$0xff]
    %v727 = vld [vmem:[%s3 + $0xa8] sm:$0xff]
    %v728 = vld [vmem:[%s3 + $0xb0] sm:$0xff]
    %v729 = vld [vmem:[%s3 + $0xb8] sm:$0xff]
    %v730 = vld [vmem:[%s3 + $0xc0] sm:$0xff]
    %v731 = vld [vmem:[%s3 + $0xc8] sm:$0xff]
    %v732 = vld [vmem:[%s3 + $0xd0] sm:$0xff]
    %v733 = vld [vmem:[%s3 + $0xd8] sm:$0xff]
    %v734 = vld [vmem:[%s3 + $0xe0] sm:$0xff]
    %v735 = vld [vmem:[%s3 + $0xe8] sm:$0xff]
    %v736 = vld [vmem:[%s3 + $0xf0] sm:$0xff]
    %v737 = vld [vmem:[%s3 + $0xf8] sm:$0xff]
    %v738 = vld [vmem:[%s3 + $0x100] sm:$0xff]
    %v739 = vld [vmem:[%s3 + $0x108] sm:$0xff]
    %v740 = vld [vmem:[%s3 + $0x110] sm:$0xff]
    %v741 = vld [vmem:[%s3 + $0x118] sm:$0xff]
    %v742 = vld [vmem:[%s3 + $0x120] sm:$0xff]
    %v743 = vld [vmem:[%s3 + $0x128] sm:$0xff]
    %v744 = vld [vmem:[%s3 + $0x130] sm:$0xff]
    %v745 = vld [vmem:[%s3 + $0x138] sm:$0xff]
    %v746 = vld [vmem:[%s3 + $0x140] sm:$0xff]
    %v747 = vld [vmem:[%s3 + $0x148] sm:$0xff]
    %v748 = vld [vmem:[%s3 + $0x150] sm:$0xff]
    %v749 = vld [vmem:[%s3 + $0x158] sm:$0xff]
    %v750 = vld [vmem:[%s3 + $0x160] sm:$0xff]
    %v751 = vld [vmem:[%s3 + $0x168] sm:$0xff]
    %v752 = vld [vmem:[%s3 + $0x170] sm:$0xff]
    %v753 = vld [vmem:[%s3 + $0x178] sm:$0xff]
    %v754 = vld [vmem:[%s3 + $0x180] sm:$0xff]
    %v755 = vld [vmem:[%s2] sm:$0x1]
    %v757 = vlaneseq
    %v758 = vshrl.u32 %v757, 7
    %v759 = vsub.s32 0, %v758
    %v760 = vrot.slane %v755, %v759
    %v762 = vadd.f32 %v706, %v760
    %v763 = vadd.f32 %v707, %v760
    %v764 = vadd.f32 %v708, %v760
    %v765 = vadd.f32 %v709, %v760
    %v766 = vadd.f32 %v710, %v760
    %v767 = vadd.f32 %v711, %v760
    %v768 = vadd.f32 %v712, %v760
    %v769 = vadd.f32 %v713, %v760
    %v770 = vadd.f32 %v714, %v760
    %v771 = vadd.f32 %v715, %v760
    %v772 = vadd.f32 %v716, %v760
    %v773 = vadd.f32 %v717, %v760
    %v774 = vadd.f32 %v718, %v760
    %v775 = vadd.f32 %v719, %v760
    %v776 = vadd.f32 %v720, %v760
    %v777 = vadd.f32 %v721, %v760
    %v778 = vadd.f32 %v722, %v760
    %v779 = vadd.f32 %v723, %v760
    %v780 = vadd.f32 %v724, %v760
    %v781 = vadd.f32 %v725, %v760
    %v782 = vadd.f32 %v726, %v760
    %v783 = vadd.f32 %v727, %v760
    %v784 = vadd.f32 %v728, %v760
    %v785 = vadd.f32 %v729, %v760
    %v786 = vadd.f32 %v730, %v760
    %v787 = vadd.f32 %v731, %v760
    %v788 = vadd.f32 %v732, %v760
    %v789 = vadd.f32 %v733, %v760
    %v790 = vadd.f32 %v734, %v760
    %v791 = vadd.f32 %v735, %v760
    %v792 = vadd.f32 %v736, %v760
    %v793 = vadd.f32 %v737, %v760
    %v794 = vadd.f32 %v738, %v760
    %v795 = vadd.f32 %v739, %v760
    %v796 = vadd.f32 %v740, %v760
    %v797 = vadd.f32 %v741, %v760
    %v798 = vadd.f32 %v742, %v760
    %v799 = vadd.f32 %v743, %v760
    %v800 = vadd.f32 %v744, %v760
    %v801 = vadd.f32 %v745, %v760
    %v802 = vadd.f32 %v746, %v760
    %v803 = vadd.f32 %v747, %v760
    %v804 = vadd.f32 %v748, %v760
    %v805 = vadd.f32 %v749, %v760
    %v806 = vadd.f32 %v750, %v760
    %v807 = vadd.f32 %v751, %v760
    %v808 = vadd.f32 %v752, %v760
    %v809 = vadd.f32 %v753, %v760
    %v810 = vadd.f32 %v754, %v760
    %vm811 = vcmp.ge.f32.partialorder %v762, 0.0
    %vm812 = vcmp.ge.f32.partialorder %v763, 0.0
    %vm813 = vcmp.ge.f32.partialorder %v764, 0.0
    %vm814 = vcmp.ge.f32.partialorder %v765, 0.0
    %vm815 = vcmp.ge.f32.partialorder %v766, 0.0
    %vm816 = vcmp.ge.f32.partialorder %v767, 0.0
    %vm817 = vcmp.ge.f32.partialorder %v768, 0.0
    %vm818 = vcmp.ge.f32.partialorder %v769, 0.0
    %vm819 = vcmp.ge.f32.partialorder %v770, 0.0
    %vm820 = vcmp.ge.f32.partialorder %v771, 0.0
    %vm821 = vcmp.ge.f32.partialorder %v772, 0.0
    %vm822 = vcmp.ge.f32.partialorder %v773, 0.0
    %vm823 = vcmp.ge.f32.partialorder %v774, 0.0
    %vm824 = vcmp.ge.f32.partialorder %v775, 0.0
    %vm825 = vcmp.ge.f32.partialorder %v776, 0.0
    %vm826 = vcmp.ge.f32.partialorder %v777, 0.0
    %vm827 = vcmp.ge.f32.partialorder %v778, 0.0
    %vm828 = vcmp.ge.f32.partialorder %v779, 0.0
    %vm829 = vcmp.ge.f32.partialorder %v780, 0.0
    %vm830 = vcmp.ge.f32.partialorder %v781, 0.0
    %vm831 = vcmp.ge.f32.partialorder %v782, 0.0
    %vm832 = vcmp.ge.f32.partialorder %v783, 0.0
    %vm833 = vcmp.ge.f32.partialorder %v784, 0.0
    %vm834 = vcmp.ge.f32.partialorder %v785, 0.0
    %vm835 = vcmp.ge.f32.partialorder %v786, 0.0
    %vm836 = vcmp.ge.f32.partialorder %v787, 0.0
    %vm837 = vcmp.ge.f32.partialorder %v788, 0.0
    %vm838 = vcmp.ge.f32.partialorder %v789, 0.0
    %vm839 = vcmp.ge.f32.partialorder %v790, 0.0
    %vm840 = vcmp.ge.f32.partialorder %v791, 0.0
    %vm841 = vcmp.ge.f32.partialorder %v792, 0.0
    %vm842 = vcmp.ge.f32.partialorder %v793, 0.0
    %vm843 = vcmp.ge.f32.partialorder %v794, 0.0
    %vm844 = vcmp.ge.f32.partialorder %v795, 0.0
    %vm845 = vcmp.ge.f32.partialorder %v796, 0.0
    %vm846 = vcmp.ge.f32.partialorder %v797, 0.0
    %vm847 = vcmp.ge.f32.partialorder %v798, 0.0
    %vm848 = vcmp.ge.f32.partialorder %v799, 0.0
    %vm849 = vcmp.ge.f32.partialorder %v800, 0.0
    %vm850 = vcmp.ge.f32.partialorder %v801, 0.0
    %vm851 = vcmp.ge.f32.partialorder %v802, 0.0
    %vm852 = vcmp.ge.f32.partialorder %v803, 0.0
    %vm853 = vcmp.ge.f32.partialorder %v804, 0.0
    %vm854 = vcmp.ge.f32.partialorder %v805, 0.0
    %vm855 = vcmp.ge.f32.partialorder %v806, 0.0
    %vm856 = vcmp.ge.f32.partialorder %v807, 0.0
    %vm857 = vcmp.ge.f32.partialorder %v808, 0.0
    %vm858 = vcmp.ge.f32.partialorder %v809, 0.0
    %vm859 = vcmp.ge.f32.partialorder %v810, 0.0
    %v860 = vmul.f32 %v762, 0.1
    %v861 = vmul.f32 %v763, 0.1
    %v862 = vmul.f32 %v764, 0.1
    %v863 = vmul.f32 %v765, 0.1
    %v864 = vmul.f32 %v766, 0.1
    %v865 = vmul.f32 %v767, 0.1
    %v866 = vmul.f32 %v768, 0.1
    %v867 = vmul.f32 %v769, 0.1
    %v868 = vmul.f32 %v770, 0.1
    %v869 = vmul.f32 %v771, 0.1
    %v870 = vmul.f32 %v772, 0.1
    %v871 = vmul.f32 %v773, 0.1
    %v872 = vmul.f32 %v774, 0.1
    %v873 = vmul.f32 %v775, 0.1
    %v874 = vmul.f32 %v776, 0.1
    %v875 = vmul.f32 %v777, 0.1
    %v876 = vmul.f32 %v778, 0.1
    %v877 = vmul.f32 %v779, 0.1
    %v878 = vmul.f32 %v780, 0.1
    %v879 = vmul.f32 %v781, 0.1
    %v880 = vmul.f32 %v782, 0.1
    %v881 = vmul.f32 %v783, 0.1
    %v882 = vmul.f32 %v784, 0.1
    %v883 = vmul.f32 %v785, 0.1
    %v884 = vmul.f32 %v786, 0.1
    %v885 = vmul.f32 %v787, 0.1
    %v886 = vmul.f32 %v788, 0.1
    %v887 = vmul.f32 %v789, 0.1
    %v888 = vmul.f32 %v790, 0.1
    %v889 = vmul.f32 %v791, 0.1
    %v890 = vmul.f32 %v792, 0.1
    %v891 = vmul.f32 %v793, 0.1
    %v892 = vmul.f32 %v794, 0.1
    %v893 = vmul.f32 %v795, 0.1
    %v894 = vmul.f32 %v796, 0.1
    %v895 = vmul.f32 %v797, 0.1
    %v896 = vmul.f32 %v798, 0.1
    %v897 = vmul.f32 %v799, 0.1
    %v898 = vmul.f32 %v800, 0.1
    %v899 = vmul.f32 %v801, 0.1
    %v900 = vmul.f32 %v802, 0.1
    %v901 = vmul.f32 %v803, 0.1
    %v902 = vmul.f32 %v804, 0.1
    %v903 = vmul.f32 %v805, 0.1
    %v904 = vmul.f32 %v806, 0.1
    %v905 = vmul.f32 %v807, 0.1
    %v906 = vmul.f32 %v808, 0.1
    %v907 = vmul.f32 %v809, 0.1
    %v908 = vmul.f32 %v810, 0.1
    %v909 = vsel %vm811, %v762, %v860
    %v910 = vsel %vm812, %v763, %v861
    %v911 = vsel %vm813, %v764, %v862
    %v912 = vsel %vm814, %v765, %v863
    %v913 = vsel %vm815, %v766, %v864
    %v914 = vsel %vm816, %v767, %v865
    %v915 = vsel %vm817, %v768, %v866
    %v916 = vsel %vm818, %v769, %v867
    %v917 = vsel %vm819, %v770, %v868
    %v918 = vsel %vm820, %v771, %v869
    %v919 = vsel %vm821, %v772, %v870
    %v920 = vsel %vm822, %v773, %v871
    %v921 = vsel %vm823, %v774, %v872
    %v922 = vsel %vm824, %v775, %v873
    %v923 = vsel %vm825, %v776, %v874
    %v924 = vsel %vm826, %v777, %v875
    %v925 = vsel %vm827, %v778, %v876
    %v926 = vsel %vm828, %v779, %v877
    %v927 = vsel %vm829, %v780, %v878
    %v928 = vsel %vm830, %v781, %v879
    %v929 = vsel %vm831, %v782, %v880
    %v930 = vsel %vm832, %v783, %v881
    %v931 = vsel %vm833, %v784, %v882
    %v932 = vsel %vm834, %v785, %v883
    %v933 = vsel %vm835, %v786, %v884
    %v934 = vsel %vm836, %v787, %v885
    %v935 = vsel %vm837, %v788, %v886
    %v936 = vsel %vm838, %v789, %v887
    %v937 = vsel %vm839, %v790, %v888
    %v938 = vsel %vm840, %v791, %v889
    %v939 = vsel %vm841, %v792, %v890
    %v940 = vsel %vm842, %v793, %v891
    %v941 = vsel %vm843, %v794, %v892
    %v942 = vsel %vm844, %v795, %v893
    %v943 = vsel %vm845, %v796, %v894
    %v944 = vsel %vm846, %v797, %v895
    %v945 = vsel %vm847, %v798, %v896
    %v946 = vsel %vm848, %v799, %v897
    %v947 = vsel %vm849, %v800, %v898
    %v948 = vsel %vm850, %v801, %v899
    %v949 = vsel %vm851, %v802, %v900
    %v950 = vsel %vm852, %v803, %v901
    %v951 = vsel %vm853, %v804, %v902
    %v952 = vsel %vm854, %v805, %v903
    %v953 = vsel %vm855, %v806, %v904
    %v954 = vsel %vm856, %v807, %v905
    %v955 = vsel %vm857, %v808, %v906
    %v956 = vsel %vm858, %v809, %v907
    %v957 = vsel %vm859, %v810, %v908
    %958 = vst [vmem:[%s3] sm:$0xff] %v909
    %959 = vst [vmem:[%s3 + $0x8] sm:$0xff] %v910
    %960 = vst [vmem:[%s3 + $0x10] sm:$0xff] %v911
    %961 = vst [vmem:[%s3 + $0x18] sm:$0xff] %v912
    %962 = vst [vmem:[%s3 + $0x20] sm:$0xff] %v913
    %963 = vst [vmem:[%s3 + $0x28] sm:$0xff] %v914
    %964 = vst [vmem:[%s3 + $0x30] sm:$0xff] %v915
    %965 = vst [vmem:[%s3 + $0x38] sm:$0xff] %v916
    %966 = vst [vmem:[%s3 + $0x40] sm:$0xff] %v917
    %967 = vst [vmem:[%s3 + $0x48] sm:$0xff] %v918
    %968 = vst [vmem:[%s3 + $0x50] sm:$0xff] %v919
    %969 = vst [vmem:[%s3 + $0x58] sm:$0xff] %v920
    %970 = vst [vmem:[%s3 + $0x60] sm:$0xff] %v921
    %971 = vst [vmem:[%s3 + $0x68] sm:$0xff] %v922
    %972 = vst [vmem:[%s3 + $0x70] sm:$0xff] %v923
    %973 = vst [vmem:[%s3 + $0x78] sm:$0xff] %v924
    %974 = vst [vmem:[%s3 + $0x80] sm:$0xff] %v925
    %975 = vst [vmem:[%s3 + $0x88] sm:$0xff] %v926
    %976 = vst [vmem:[%s3 + $0x90] sm:$0xff] %v927
    %977 = vst [vmem:[%s3 + $0x98] sm:$0xff] %v928
    %978 = vst [vmem:[%s3 + $0xa0] sm:$0xff] %v929
    %979 = vst [vmem:[%s3 + $0xa8] sm:$0xff] %v930
    %980 = vst [vmem:[%s3 + $0xb0] sm:$0xff] %v931
    %981 = vst [vmem:[%s3 + $0xb8] sm:$0xff] %v932
    %982 = vst [vmem:[%s3 + $0xc0] sm:$0xff] %v933
    %983 = vst [vmem:[%s3 + $0xc8] sm:$0xff] %v934
    %984 = vst [vmem:[%s3 + $0xd0] sm:$0xff] %v935
    %985 = vst [vmem:[%s3 + $0xd8] sm:$0xff] %v936
    %986 = vst [vmem:[%s3 + $0xe0] sm:$0xff] %v937
    %987 = vst [vmem:[%s3 + $0xe8] sm:$0xff] %v938
    %988 = vst [vmem:[%s3 + $0xf0] sm:$0xff] %v939
    %989 = vst [vmem:[%s3 + $0xf8] sm:$0xff] %v940
    %990 = vst [vmem:[%s3 + $0x100] sm:$0xff] %v941
    %991 = vst [vmem:[%s3 + $0x108] sm:$0xff] %v942
    %992 = vst [vmem:[%s3 + $0x110] sm:$0xff] %v943
    %993 = vst [vmem:[%s3 + $0x118] sm:$0xff] %v944
    %994 = vst [vmem:[%s3 + $0x120] sm:$0xff] %v945
    %995 = vst [vmem:[%s3 + $0x128] sm:$0xff] %v946
    %996 = vst [vmem:[%s3 + $0x130] sm:$0xff] %v947
    %997 = vst [vmem:[%s3 + $0x138] sm:$0xff] %v948
    %998 = vst [vmem:[%s3 + $0x140] sm:$0xff] %v949
    %999 = vst [vmem:[%s3 + $0x148] sm:$0xff] %v950
    %1000 = vst [vmem:[%s3 + $0x150] sm:$0xff] %v951
    %1001 = vst [vmem:[%s3 + $0x158] sm:$0xff] %v952
    %1002 = vst [vmem:[%s3 + $0x160] sm:$0xff] %v953
    %1003 = vst [vmem:[%s3 + $0x168] sm:$0xff] %v954
    %1004 = vst [vmem:[%s3 + $0x170] sm:$0xff] %v955
    %1005 = vst [vmem:[%s3 + $0x178] sm:$0xff] %v956
    %1006 = vst [vmem:[%s3 + $0x180] sm:$0xff] %v957
  $region21: #{encoder_forward.4} parent=0 // pred_fallthru
    _
  // Predicated region
  $region22: #{encoder_forward.4} parent=0 // pred_check
    _
  $region23: #{encoder_forward.4} parent=0 // pred_check_branch
    %1008 = sbr.rel (0) target = $region25
  $region24: #{encoder_forward.4} parent=0 // pred_region
    _
  $region25: #{encoder_forward.4} parent=0 // pred_fallthru
    _
  // Predicated region
  $region26: #{encoder_forward.4} parent=0 // pred_check
    _
  $region27: #{encoder_forward.4} parent=0 // pred_check_branch
    %1010 = sbr.rel (0) target = $region29
  $region28: #{encoder_forward.4} parent=0 // pred_region
    _
  $region29: #{encoder_forward.4} parent=0 // pred_fallthru
    _

// kernel: encoder_forward.5
$region0: #{encoder_forward.5}
  #allocation0 [shape = 'u32[]', space=smem, size = 0x4, offset = 0x4, fixed_abs, tag = 'smem constant byte address 0x4 - core index']
  #allocation1 [shape = 'u32[144,128]{1,0:T(1,128)}', space=vmem, size = 0x12000, scoped, tag = 'internal scratch']
  %s0 = inlined_call_operand.vmem [shape: bf16[104,1024], index: 0, kind: input, shape index: {}]
  %s1 = inlined_call_operand.vmem [shape: bf16[1024,128], index: 1, kind: input, shape index: {}]
  %s2 = inlined_call_operand.hbm [shape: f32[1,128], index: 2, kind: input, shape index: {}]
  %s3 = inlined_call_operand.hbm [shape: f32[1,128], index: 3, kind: input, shape index: {}]
  %s4 = inlined_call_operand.vmem [shape: f32[104,128], index: 4, kind: output, shape index: {}]
  %s5 = sld [smem:[#allocation0]]
  $region42: #{encoder_forward.5} parent=0
    _
  %s7 = ssub.s32 1, %s5
  %s8 = scalar_select 0, %s7, %s5
  $region1: #{encoder_forward.5} parent=0
    #allocation2 [shape = 'u8[512]{0}', space=vmem, size = 0x400, scoped, tag = 'input window, operand 2, single buffered']
    #allocation3 [shape = 's32[1]{0}', space=sflag, size = 0x4, scoped, tag = 'scoped memory for encoder_forward.5']
    #allocation4 [shape = 'u8[512]{0}', space=vmem, size = 0x400, scoped, tag = 'input window, operand 3, single buffered']
    #allocation5 [shape = 's32[1]{0}', space=sflag, size = 0x4, scoped, tag = 'scoped memory for encoder_forward.5']
    %9 = vsyncpa [#allocation3], 0
    %10 = vsyncpa [#allocation5], 0
    // Predicated region
    $region2: #{encoder_forward.5} parent=1 // pred_check
      _
    $region3: #{encoder_forward.5} parent=1 // pred_check_branch
      %12 = sbr.rel (0) target = $region5
    $region4: #{encoder_forward.5} parent=1 // pred_region
      _
    $region5: #{encoder_forward.5} parent=1 // pred_fallthru
      _
    // Predicated region
    $region6: #{encoder_forward.5} parent=1 // pred_check
      _
    $region7: #{encoder_forward.5} parent=1 // pred_check_branch
      %14 = sbr.rel (0) target = $region9
    $region8: #{encoder_forward.5} parent=1 // pred_region
      _
    $region9: #{encoder_forward.5} parent=1 // pred_fallthru
      _
    // Predicated region
    $region10: #{encoder_forward.5} parent=1 // pred_check
      _
    $region11: #{encoder_forward.5} parent=1 // pred_check_branch
      %16 = sbr.rel (0) target = $region13
    $region12: #{encoder_forward.5} parent=1 // pred_region
      %s18 = ssub.s32 16, 16
      %19 = vsyncadd [#allocation3], %s18
      %s21 = sshll.u32 [#allocation2], 4
      %s22 = int_to_ptr.vmem [resolvable:$true] %s21
      %24 = dma.hbm_to_vmem [thread:$0]  %s2, 16, %s22, [#allocation3]
    $region13: #{encoder_forward.5} parent=1 // pred_fallthru
      _
    // Predicated region
    $region14: #{encoder_forward.5} parent=1 // pred_check
      _
    $region15: #{encoder_forward.5} parent=1 // pred_check_branch
      %26 = sbr.rel (0) target = $region17
    $region16: #{encoder_forward.5} parent=1 // pred_region
      %s28 = ssub.s32 16, 16
      %29 = vsyncadd [#allocation5], %s28
      %s31 = sshll.u32 [#allocation4], 4
      %s32 = int_to_ptr.vmem [resolvable:$true] %s31
      %34 = dma.hbm_to_vmem [thread:$0]  %s3, 16, %s32, [#allocation5]
    $region17: #{encoder_forward.5} parent=1 // pred_fallthru
      _
    // Predicated region
    $region18: #{encoder_forward.5} parent=1 // pred_check
      _
    $region19: #{encoder_forward.5} parent=1 // pred_check_branch
      %36 = sbr.rel (0) target = $region21
    $region20: #{encoder_forward.5} parent=1 // pred_region
      %37 = dma.done [#allocation3], 16
    $region21: #{encoder_forward.5} parent=1 // pred_fallthru
      _
    // Predicated region
    $region22: #{encoder_forward.5} parent=1 // pred_check
      _
    $region23: #{encoder_forward.5} parent=1 // pred_check_branch
      %39 = sbr.rel (0) target = $region25
    $region24: #{encoder_forward.5} parent=1 // pred_region
      %40 = dma.done [#allocation5], 16
    $region25: #{encoder_forward.5} parent=1 // pred_fallthru
      _
    %p42 = scmp.eq.s32.totalorder 0, 0
    // Predicated region
    $region26: #{encoder_forward.5} parent=1 // pred_check
      %p43 = pneg %p42
    $region27: #{encoder_forward.5} parent=1 // pred_check_branch
      %45 = sbr.rel (%p43) target = $region29
    $region28: #{encoder_forward.5} parent=1 // pred_region
      %46 = vst [vmem:[%s4] sm:$0xff] 0.0
      %47 = vst [vmem:[%s4 + $0x8] sm:$0xff] 0.0
      %48 = vst [vmem:[%s4 + $0x10] sm:$0xff] 0.0
      %49 = vst [vmem:[%s4 + $0x18] sm:$0xff] 0.0
      %50 = vst [vmem:[%s4 + $0x20] sm:$0xff] 0.0
      %51 = vst [vmem:[%s4 + $0x28] sm:$0xff] 0.0
      %52 = vst [vmem:[%s4 + $0x30] sm:$0xff] 0.0
      %53 = vst [vmem:[%s4 + $0x38] sm:$0xff] 0.0
      %54 = vst [vmem:[%s4 + $0x40] sm:$0xff] 0.0
      %55 = vst [vmem:[%s4 + $0x48] sm:$0xff] 0.0
      %56 = vst [vmem:[%s4 + $0x50] sm:$0xff] 0.0
      %57 = vst [vmem:[%s4 + $0x58] sm:$0xff] 0.0
      %58 = vst [vmem:[%s4 + $0x60] sm:$0xff] 0.0
    $region29: #{encoder_forward.5} parent=1 // pred_fallthru
      _
    %v59 = vld [vmem:[%s4] sm:$0xff]
    %v60 = vld [vmem:[%s4 + $0x8] sm:$0xff]
    %v61 = vld [vmem:[%s4 + $0x10] sm:$0xff]
    %v62 = vld [vmem:[%s4 + $0x18] sm:$0xff]
    %v63 = vld [vmem:[%s4 + $0x20] sm:$0xff]
    %v64 = vld [vmem:[%s4 + $0x28] sm:$0xff]
    %v65 = vld [vmem:[%s4 + $0x30] sm:$0xff]
    %v66 = vld [vmem:[%s4 + $0x38] sm:$0xff]
    %v67 = vld [vmem:[%s4 + $0x40] sm:$0xff]
    %v68 = vld [vmem:[%s4 + $0x48] sm:$0xff]
    %v69 = vld [vmem:[%s4 + $0x50] sm:$0xff]
    %v70 = vld [vmem:[%s4 + $0x58] sm:$0xff]
    %v71 = vld [vmem:[%s4 + $0x60] sm:$0xff]
    %v72 = vld [vmem:[%s0] sm:$0xff]
    %v73 = vld [vmem:[%s0 + $0x8] sm:$0xff]
    %v74 = vld [vmem:[%s0 + $0x10] sm:$0xff]
    %v75 = vld [vmem:[%s0 + $0x18] sm:$0xff]
    %v76 = vld [vmem:[%s0 + $0x20] sm:$0xff]
    %v77 = vld [vmem:[%s0 + $0x28] sm:$0xff]
    %v78 = vld [vmem:[%s0 + $0x30] sm:$0xff]
    %v79 = vld [vmem:[%s0 + $0x38] sm:$0xff]
    %v80 = vld [vmem:[%s0 + $0x40] sm:$0xff]
    %v81 = vld [vmem:[%s0 + $0x48] sm:$0xff]
    %v82 = vld [vmem:[%s0 + $0x50] sm:$0xff]
    %v83 = vld [vmem:[%s0 + $0x58] sm:$0xff]
    %v84 = vld [vmem:[%s0 + $0x60] sm:$0xff]
    %v85 = vld [vmem:[%s0 + $0x68] sm:$0xff]
    %v86 = vld [vmem:[%s0 + $0x70] sm:$0xff]
    %v87 = vld [vmem:[%s0 + $0x78] sm:$0xff]
    %v88 = vld [vmem:[%s0 + $0x80] sm:$0xff]
    %v89 = vld [vmem:[%s0 + $0x88] sm:$0xff]
    %v90 = vld [vmem:[%s0 + $0x90] sm:$0xff]
    %v91 = vld [vmem:[%s0 + $0x98] sm:$0xff]
    %v92 = vld [vmem:[%s0 + $0xa0] sm:$0xff]
    %v93 = vld [vmem:[%s0 + $0xa8] sm:$0xff]
    %v94 = vld [vmem:[%s0 + $0xb0] sm:$0xff]
    %v95 = vld [vmem:[%s0 + $0xb8] sm:$0xff]
    %v96 = vld [vmem:[%s0 + $0xc0] sm:$0xff]
    %v97 = vld [vmem:[%s0 + $0xc8] sm:$0xff]
    %v98 = vld [vmem:[%s0 + $0xd0] sm:$0xff]
    %v99 = vld [vmem:[%s0 + $0xd8] sm:$0xff]
    %v100 = vld [vmem:[%s0 + $0xe0] sm:$0xff]
    %v101 = vld [vmem:[%s0 + $0xe8] sm:$0xff]
    %v102 = vld [vmem:[%s0 + $0xf0] sm:$0xff]
    %v103 = vld [vmem:[%s0 + $0xf8] sm:$0xff]
    %v104 = vld [vmem:[%s0 + $0x100] sm:$0xff]
    %v105 = vld [vmem:[%s0 + $0x108] sm:$0xff]
    %v106 = vld [vmem:[%s0 + $0x110] sm:$0xff]
    %v107 = vld [vmem:[%s0 + $0x118] sm:$0xff]
    %v108 = vld [vmem:[%s0 + $0x120] sm:$0xff]
    %v109 = vld [vmem:[%s0 + $0x128] sm:$0xff]
    %v110 = vld [vmem:[%s0 + $0x130] sm:$0xff]
    %v111 = vld [vmem:[%s0 + $0x138] sm:$0xff]
    %v112 = vld [vmem:[%s0 + $0x140] sm:$0xff]
    %v113 = vld [vmem:[%s0 + $0x148] sm:$0xff]
    %v114 = vld [vmem:[%s0 + $0x150] sm:$0xff]
    %v115 = vld [vmem:[%s0 + $0x158] sm:$0xff]
    %v116 = vld [vmem:[%s0 + $0x160] sm:$0xff]
    %v117 = vld [vmem:[%s0 + $0x168] sm:$0xff]
    %v118 = vld [vmem:[%s0 + $0x170] sm:$0xff]
    %v119 = vld [vmem:[%s0 + $0x178] sm:$0xff]
    %v120 = vld [vmem:[%s0 + $0x180] sm:$0xff]
    %v121 = vld [vmem:[%s0 + $0x188] sm:$0xff]
    %v122 = vld [vmem:[%s0 + $0x190] sm:$0xff]
    %v123 = vld [vmem:[%s0 + $0x198] sm:$0xff]
    %v124 = vld [vmem:[%s1] sm:$0xf]
    %v125 = vld [vmem:[%s1 + $0x4] sm:$0xf]
    %v126 = vld [vmem:[%s1 + $0x8] sm:$0xf]
    %v127 = vld [vmem:[%s1 + $0xc] sm:$0xf]
    %v128 = vld [vmem:[%s1 + $0x10] sm:$0xf]
    %v129 = vld [vmem:[%s1 + $0x14] sm:$0xf]
    %v130 = vld [vmem:[%s1 + $0x18] sm:$0xf]
    %v131 = vld [vmem:[%s1 + $0x1c] sm:$0xf]
    %v132 = vld [vmem:[%s1 + $0x20] sm:$0xf]
    %v133 = vld [vmem:[%s1 + $0x24] sm:$0xf]
    %v134 = vld [vmem:[%s1 + $0x28] sm:$0xf]
    %v135 = vld [vmem:[%s1 + $0x2c] sm:$0xf]
    %v136 = vld [vmem:[%s1 + $0x30] sm:$0xf]
    %v137 = vld [vmem:[%s1 + $0x34] sm:$0xf]
    %v138 = vld [vmem:[%s1 + $0x38] sm:$0xf]
    %v139 = vld [vmem:[%s1 + $0x3c] sm:$0xf]
    %v140 = vld [vmem:[%s1 + $0x40] sm:$0xf]
    %v141 = vld [vmem:[%s1 + $0x44] sm:$0xf]
    %v142 = vld [vmem:[%s1 + $0x48] sm:$0xf]
    %v143 = vld [vmem:[%s1 + $0x4c] sm:$0xf]
    %v144 = vld [vmem:[%s1 + $0x50] sm:$0xf]
    %v145 = vld [vmem:[%s1 + $0x54] sm:$0xf]
    %v146 = vld [vmem:[%s1 + $0x58] sm:$0xf]
    %v147 = vld [vmem:[%s1 + $0x5c] sm:$0xf]
    %v148 = vld [vmem:[%s1 + $0x60] sm:$0xf]
    %v149 = vld [vmem:[%s1 + $0x64] sm:$0xf]
    %v150 = vld [vmem:[%s1 + $0x68] sm:$0xf]
    %v151 = vld [vmem:[%s1 + $0x6c] sm:$0xf]
    %v152 = vld [vmem:[%s1 + $0x70] sm:$0xf]
    %v153 = vld [vmem:[%s1 + $0x74] sm:$0xf]
    %v154 = vld [vmem:[%s1 + $0x78] sm:$0xf]
    %v155 = vld [vmem:[%s1 + $0x7c] sm:$0xf]
    %v156 = vld [vmem:[%s1 + $0x80] sm:$0xf]
    %v157 = vld [vmem:[%s1 + $0x84] sm:$0xf]
    %v158 = vld [vmem:[%s1 + $0x88] sm:$0xf]
    %v159 = vld [vmem:[%s1 + $0x8c] sm:$0xf]
    %v160 = vld [vmem:[%s1 + $0x90] sm:$0xf]
    %v161 = vld [vmem:[%s1 + $0x94] sm:$0xf]
    %v162 = vld [vmem:[%s1 + $0x98] sm:$0xf]
    %v163 = vld [vmem:[%s1 + $0x9c] sm:$0xf]
    %v164 = vld [vmem:[%s1 + $0xa0] sm:$0xf]
    %v165 = vld [vmem:[%s1 + $0xa4] sm:$0xf]
    %v166 = vld [vmem:[%s1 + $0xa8] sm:$0xf]
    %v167 = vld [vmem:[%s1 + $0xac] sm:$0xf]
    %v168 = vld [vmem:[%s1 + $0xb0] sm:$0xf]
    %v169 = vld [vmem:[%s1 + $0xb4] sm:$0xf]
    %v170 = vld [vmem:[%s1 + $0xb8] sm:$0xf]
    %v171 = vld [vmem:[%s1 + $0xbc] sm:$0xf]
    %v172 = vld [vmem:[%s1 + $0xc0] sm:$0xf]
    %v173 = vld [vmem:[%s1 + $0xc4] sm:$0xf]
    %v174 = vld [vmem:[%s1 + $0xc8] sm:$0xf]
    %v175 = vld [vmem:[%s1 + $0xcc] sm:$0xf]
    %v176 = vld [vmem:[%s1 + $0xd0] sm:$0xf]
    %v177 = vld [vmem:[%s1 + $0xd4] sm:$0xf]
    %v178 = vld [vmem:[%s1 + $0xd8] sm:$0xf]
    %v179 = vld [vmem:[%s1 + $0xdc] sm:$0xf]
    %v180 = vld [vmem:[%s1 + $0xe0] sm:$0xf]
    %v181 = vld [vmem:[%s1 + $0xe4] sm:$0xf]
    %v182 = vld [vmem:[%s1 + $0xe8] sm:$0xf]
    %v183 = vld [vmem:[%s1 + $0xec] sm:$0xf]
    %v184 = vld [vmem:[%s1 + $0xf0] sm:$0xf]
    %v185 = vld [vmem:[%s1 + $0xf4] sm:$0xf]
    %v186 = vld [vmem:[%s1 + $0xf8] sm:$0xf]
    %v187 = vld [vmem:[%s1 + $0xfc] sm:$0xf]
    %v188 = vld [vmem:[%s1 + $0x100] sm:$0xf]
    %v189 = vld [vmem:[%s1 + $0x104] sm:$0xf]
    %v190 = vld [vmem:[%s1 + $0x108] sm:$0xf]
    %v191 = vld [vmem:[%s1 + $0x10c] sm:$0xf]
    %v192 = vld [vmem:[%s1 + $0x110] sm:$0xf]
    %v193 = vld [vmem:[%s1 + $0x114] sm:$0xf]
    %v194 = vld [vmem:[%s1 + $0x118] sm:$0xf]
    %v195 = vld [vmem:[%s1 + $0x11c] sm:$0xf]
    %v196 = vld [vmem:[%s1 + $0x120] sm:$0xf]
    %v197 = vld [vmem:[%s1 + $0x124] sm:$0xf]
    %v198 = vld [vmem:[%s1 + $0x128] sm:$0xf]
    %v199 = vld [vmem:[%s1 + $0x12c] sm:$0xf]
    %v200 = vld [vmem:[%s1 + $0x130] sm:$0xf]
    %v201 = vld [vmem:[%s1 + $0x134] sm:$0xf]
    %v202 = vld [vmem:[%s1 + $0x138] sm:$0xf]
    %v203 = vld [vmem:[%s1 + $0x13c] sm:$0xf]
    %v204 = vld [vmem:[%s1 + $0x140] sm:$0xf]
    %v205 = vld [vmem:[%s1 + $0x144] sm:$0xf]
    %v206 = vld [vmem:[%s1 + $0x148] sm:$0xf]
    %v207 = vld [vmem:[%s1 + $0x14c] sm:$0xf]
    %v208 = vld [vmem:[%s1 + $0x150] sm:$0xf]
    %v209 = vld [vmem:[%s1 + $0x154] sm:$0xf]
    %v210 = vld [vmem:[%s1 + $0x158] sm:$0xf]
    %v211 = vld [vmem:[%s1 + $0x15c] sm:$0xf]
    %v212 = vld [vmem:[%s1 + $0x160] sm:$0xf]
    %v213 = vld [vmem:[%s1 + $0x164] sm:$0xf]
    %v214 = vld [vmem:[%s1 + $0x168] sm:$0xf]
    %v215 = vld [vmem:[%s1 + $0x16c] sm:$0xf]
    %v216 = vld [vmem:[%s1 + $0x170] sm:$0xf]
    %v217 = vld [vmem:[%s1 + $0x174] sm:$0xf]
    %v218 = vld [vmem:[%s1 + $0x178] sm:$0xf]
    %v219 = vld [vmem:[%s1 + $0x17c] sm:$0xf]
    %v220 = vld [vmem:[%s1 + $0x180] sm:$0xf]
    %v221 = vld [vmem:[%s1 + $0x184] sm:$0xf]
    %v222 = vld [vmem:[%s1 + $0x188] sm:$0xf]
    %v223 = vld [vmem:[%s1 + $0x18c] sm:$0xf]
    %v224 = vld [vmem:[%s1 + $0x190] sm:$0xf]
    %v225 = vld [vmem:[%s1 + $0x194] sm:$0xf]
    %v226 = vld [vmem:[%s1 + $0x198] sm:$0xf]
    %v227 = vld [vmem:[%s1 + $0x19c] sm:$0xf]
    %v228 = vld [vmem:[%s1 + $0x1a0] sm:$0xf]
    %v229 = vld [vmem:[%s1 + $0x1a4] sm:$0xf]
    %v230 = vld [vmem:[%s1 + $0x1a8] sm:$0xf]
    %v231 = vld [vmem:[%s1 + $0x1ac] sm:$0xf]
    %v232 = vld [vmem:[%s1 + $0x1b0] sm:$0xf]
    %v233 = vld [vmem:[%s1 + $0x1b4] sm:$0xf]
    %v234 = vld [vmem:[%s1 + $0x1b8] sm:$0xf]
    %v235 = vld [vmem:[%s1 + $0x1bc] sm:$0xf]
    %v236 = vld [vmem:[%s1 + $0x1c0] sm:$0xf]
    %v237 = vld [vmem:[%s1 + $0x1c4] sm:$0xf]
    %v238 = vld [vmem:[%s1 + $0x1c8] sm:$0xf]
    %v239 = vld [vmem:[%s1 + $0x1cc] sm:$0xf]
    %v240 = vld [vmem:[%s1 + $0x1d0] sm:$0xf]
    %v241 = vld [vmem:[%s1 + $0x1d4] sm:$0xf]
    %v242 = vld [vmem:[%s1 + $0x1d8] sm:$0xf]
    %v243 = vld [vmem:[%s1 + $0x1dc] sm:$0xf]
    %v244 = vld [vmem:[%s1 + $0x1e0] sm:$0xf]
    %v245 = vld [vmem:[%s1 + $0x1e4] sm:$0xf]
    %v246 = vld [vmem:[%s1 + $0x1e8] sm:$0xf]
    %v247 = vld [vmem:[%s1 + $0x1ec] sm:$0xf]
    %v248 = vld [vmem:[%s1 + $0x1f0] sm:$0xf]
    %v249 = vld [vmem:[%s1 + $0x1f4] sm:$0xf]
    %v250 = vld [vmem:[%s1 + $0x1f8] sm:$0xf]
    %v251 = vld [vmem:[%s1 + $0x1fc] sm:$0xf]
    %v304 = vunpack.c.l.b16 %v72
    %v305 = vunpack.c.h.b16 %v72
    %v306 = vunpack.c.l.b16 %v73
    %v307 = vunpack.c.h.b16 %v73
    %v308 = vunpack.c.l.b16 %v74
    %v309 = vunpack.c.h.b16 %v74
    %v310 = vunpack.c.l.b16 %v75
    %v311 = vunpack.c.h.b16 %v75
    %v312 = vunpack.c.l.b16 %v76
    %v313 = vunpack.c.h.b16 %v76
    %v314 = vunpack.c.l.b16 %v77
    %v315 = vunpack.c.h.b16 %v77
    %v316 = vunpack.c.l.b16 %v78
    %v317 = vunpack.c.h.b16 %v78
    %v318 = vunpack.c.l.b16 %v79
    %v319 = vunpack.c.h.b16 %v79
    %v320 = vunpack.c.l.b16 %v80
    %v321 = vunpack.c.h.b16 %v80
    %v322 = vunpack.c.l.b16 %v81
    %v323 = vunpack.c.h.b16 %v81
    %v324 = vunpack.c.l.b16 %v82
    %v325 = vunpack.c.h.b16 %v82
    %v326 = vunpack.c.l.b16 %v83
    %v327 = vunpack.c.h.b16 %v83
    %v328 = vunpack.c.l.b16 %v84
    %v329 = vunpack.c.h.b16 %v84
    %v330 = vunpack.c.l.b16 %v85
    %v331 = vunpack.c.h.b16 %v85
    %v332 = vunpack.c.l.b16 %v86
    %v333 = vunpack.c.h.b16 %v86
    %v334 = vunpack.c.l.b16 %v87
    %v335 = vunpack.c.h.b16 %v87
    %v336 = vunpack.c.l.b16 %v88
    %v337 = vunpack.c.h.b16 %v88
    %v338 = vunpack.c.l.b16 %v89
    %v339 = vunpack.c.h.b16 %v89
    %v340 = vunpack.c.l.b16 %v90
    %v341 = vunpack.c.h.b16 %v90
    %v342 = vunpack.c.l.b16 %v91
    %v343 = vunpack.c.h.b16 %v91
    %v344 = vunpack.c.l.b16 %v92
    %v345 = vunpack.c.h.b16 %v92
    %v346 = vunpack.c.l.b16 %v93
    %v347 = vunpack.c.h.b16 %v93
    %v348 = vunpack.c.l.b16 %v94
    %v349 = vunpack.c.h.b16 %v94
    %v350 = vunpack.c.l.b16 %v95
    %v351 = vunpack.c.h.b16 %v95
    %v352 = vunpack.c.l.b16 %v96
    %v353 = vunpack.c.h.b16 %v96
    %v354 = vunpack.c.l.b16 %v97
    %v355 = vunpack.c.h.b16 %v97
    %v356 = vunpack.c.l.b16 %v98
    %v357 = vunpack.c.h.b16 %v98
    %v358 = vunpack.c.l.b16 %v99
    %v359 = vunpack.c.h.b16 %v99
    %v360 = vunpack.c.l.b16 %v100
    %v361 = vunpack.c.h.b16 %v100
    %v362 = vunpack.c.l.b16 %v101
    %v363 = vunpack.c.h.b16 %v101
    %v364 = vunpack.c.l.b16 %v102
    %v365 = vunpack.c.h.b16 %v102
    %v366 = vunpack.c.l.b16 %v103
    %v367 = vunpack.c.h.b16 %v103
    %v368 = vunpack.c.l.b16 %v104
    %v369 = vunpack.c.h.b16 %v104
    %v370 = vunpack.c.l.b16 %v105
    %v371 = vunpack.c.h.b16 %v105
    %v372 = vunpack.c.l.b16 %v106
    %v373 = vunpack.c.h.b16 %v106
    %v374 = vunpack.c.l.b16 %v107
    %v375 = vunpack.c.h.b16 %v107
    %v376 = vunpack.c.l.b16 %v108
    %v377 = vunpack.c.h.b16 %v108
    %v378 = vunpack.c.l.b16 %v109
    %v379 = vunpack.c.h.b16 %v109
    %v380 = vunpack.c.l.b16 %v110
    %v381 = vunpack.c.h.b16 %v110
    %v382 = vunpack.c.l.b16 %v111
    %v383 = vunpack.c.h.b16 %v111
    %v384 = vunpack.c.l.b16 %v112
    %v385 = vunpack.c.h.b16 %v112
    %v386 = vunpack.c.l.b16 %v113
    %v387 = vunpack.c.h.b16 %v113
    %v388 = vunpack.c.l.b16 %v114
    %v389 = vunpack.c.h.b16 %v114
    %v390 = vunpack.c.l.b16 %v115
    %v391 = vunpack.c.h.b16 %v115
    %v392 = vunpack.c.l.b16 %v116
    %v393 = vunpack.c.h.b16 %v116
    %v394 = vunpack.c.l.b16 %v117
    %v395 = vunpack.c.h.b16 %v117
    %v396 = vunpack.c.l.b16 %v118
    %v397 = vunpack.c.h.b16 %v118
    %v398 = vunpack.c.l.b16 %v119
    %v399 = vunpack.c.h.b16 %v119
    %v400 = vunpack.c.l.b16 %v120
    %v401 = vunpack.c.h.b16 %v120
    %v402 = vunpack.c.l.b16 %v121
    %v403 = vunpack.c.h.b16 %v121
    %v404 = vunpack.c.l.b16 %v122
    %v405 = vunpack.c.h.b16 %v122
    %v406 = vunpack.c.l.b16 %v123
    %v407 = vunpack.c.h.b16 %v123
    %v408 = vpack.c.b16 %v312, %v304
    %v409 = vpack.c.b16 %v313, %v305
    %v410 = vpack.c.b16 %v314, %v306
    %v411 = vpack.c.b16 %v315, %v307
    %v412 = vpack.c.b16 %v316, %v308
    %v413 = vpack.c.b16 %v317, %v309
    %v414 = vpack.c.b16 %v318, %v310
    %v415 = vpack.c.b16 %v319, %v311
    %v416 = vpack.c.b16 %v328, %v320
    %v417 = vpack.c.b16 %v329, %v321
    %v418 = vpack.c.b16 %v330, %v322
    %v419 = vpack.c.b16 %v331, %v323
    %v420 = vpack.c.b16 %v332, %v324
    %v421 = vpack.c.b16 %v333, %v325
    %v422 = vpack.c.b16 %v334, %v326
    %v423 = vpack.c.b16 %v335, %v327
    %v424 = vpack.c.b16 %v344, %v336
    %v425 = vpack.c.b16 %v345, %v337
    %v426 = vpack.c.b16 %v346, %v338
    %v427 = vpack.c.b16 %v347, %v339
    %v428 = vpack.c.b16 %v348, %v340
    %v429 = vpack.c.b16 %v349, %v341
    %v430 = vpack.c.b16 %v350, %v342
    %v431 = vpack.c.b16 %v351, %v343
    %v432 = vpack.c.b16 %v360, %v352
    %v433 = vpack.c.b16 %v361, %v353
    %v434 = vpack.c.b16 %v362, %v354
    %v435 = vpack.c.b16 %v363, %v355
    %v436 = vpack.c.b16 %v364, %v356
    %v437 = vpack.c.b16 %v365, %v357
    %v438 = vpack.c.b16 %v366, %v358
    %v439 = vpack.c.b16 %v367, %v359
    %v440 = vpack.c.b16 %v376, %v368
    %v441 = vpack.c.b16 %v377, %v369
    %v442 = vpack.c.b16 %v378, %v370
    %v443 = vpack.c.b16 %v379, %v371
    %v444 = vpack.c.b16 %v380, %v372
    %v445 = vpack.c.b16 %v381, %v373
    %v446 = vpack.c.b16 %v382, %v374
    %v447 = vpack.c.b16 %v383, %v375
    %v448 = vpack.c.b16 %v392, %v384
    %v449 = vpack.c.b16 %v393, %v385
    %v450 = vpack.c.b16 %v394, %v386
    %v451 = vpack.c.b16 %v395, %v387
    %v452 = vpack.c.b16 %v396, %v388
    %v453 = vpack.c.b16 %v397, %v389
    %v454 = vpack.c.b16 %v398, %v390
    %v455 = vpack.c.b16 %v399, %v391
    %v456 = vpack.c.b16 %v400, %v400
    %v457 = vpack.c.b16 %v401, %v401
    %v458 = vpack.c.b16 %v402, %v402
    %v459 = vpack.c.b16 %v403, %v403
    %v460 = vpack.c.b16 %v404, %v404
    %v461 = vpack.c.b16 %v405, %v405
    %v462 = vpack.c.b16 %v406, %v406
    %v463 = vpack.c.b16 %v407, %v407
    %v648 = vunpack.c.l.b16 %v124
    %v649 = vunpack.c.l.b16 %v125
    %v650 = vunpack.c.l.b16 %v126
    %v651 = vunpack.c.l.b16 %v127
    %v652 = vunpack.c.l.b16 %v128
    %v653 = vunpack.c.l.b16 %v129
    %v654 = vunpack.c.l.b16 %v130
    %v655 = vunpack.c.l.b16 %v131
    %v656 = vunpack.c.l.b16 %v132
    %v657 = vunpack.c.l.b16 %v133
    %v658 = vunpack.c.l.b16 %v134
    %v659 = vunpack.c.l.b16 %v135
    %v660 = vunpack.c.l.b16 %v136
    %v661 = vunpack.c.l.b16 %v137
    %v662 = vunpack.c.l.b16 %v138
    %v663 = vunpack.c.l.b16 %v139
    %v664 = vunpack.c.l.b16 %v140
    %v665 = vunpack.c.l.b16 %v141
    %v666 = vunpack.c.l.b16 %v142
    %v667 = vunpack.c.l.b16 %v143
    %v668 = vunpack.c.l.b16 %v144
    %v669 = vunpack.c.l.b16 %v145
    %v670 = vunpack.c.l.b16 %v146
    %v671 = vunpack.c.l.b16 %v147
    %v672 = vunpack.c.l.b16 %v148
    %v673 = vunpack.c.l.b16 %v149
    %v674 = vunpack.c.l.b16 %v150
    %v675 = vunpack.c.l.b16 %v151
    %v676 = vunpack.c.l.b16 %v152
    %v677 = vunpack.c.l.b16 %v153
    %v678 = vunpack.c.l.b16 %v154
    %v679 = vunpack.c.l.b16 %v155
    %v680 = vunpack.c.l.b16 %v156
    %v681 = vunpack.c.l.b16 %v157
    %v682 = vunpack.c.l.b16 %v158
    %v683 = vunpack.c.l.b16 %v159
    %v684 = vunpack.c.l.b16 %v160
    %v685 = vunpack.c.l.b16 %v161
    %v686 = vunpack.c.l.b16 %v162
    %v687 = vunpack.c.l.b16 %v163
    %v688 = vunpack.c.l.b16 %v164
    %v689 = vunpack.c.l.b16 %v165
    %v690 = vunpack.c.l.b16 %v166
    %v691 = vunpack.c.l.b16 %v167
    %v692 = vunpack.c.l.b16 %v168
    %v693 = vunpack.c.l.b16 %v169
    %v694 = vunpack.c.l.b16 %v170
    %v695 = vunpack.c.l.b16 %v171
    %v696 = vunpack.c.l.b16 %v172
    %v697 = vunpack.c.l.b16 %v173
    %v698 = vunpack.c.l.b16 %v174
    %v699 = vunpack.c.l.b16 %v175
    %v700 = vunpack.c.l.b16 %v176
    %v701 = vunpack.c.l.b16 %v177
    %v702 = vunpack.c.l.b16 %v178
    %v703 = vunpack.c.l.b16 %v179
    %v704 = vunpack.c.l.b16 %v180
    %v705 = vunpack.c.l.b16 %v181
    %v706 = vunpack.c.l.b16 %v182
    %v707 = vunpack.c.l.b16 %v183
    %v708 = vunpack.c.l.b16 %v184
    %v709 = vunpack.c.l.b16 %v185
    %v710 = vunpack.c.l.b16 %v186
    %v711 = vunpack.c.l.b16 %v187
    %v712 = vunpack.c.l.b16 %v188
    %v713 = vunpack.c.l.b16 %v189
    %v714 = vunpack.c.l.b16 %v190
    %v715 = vunpack.c.l.b16 %v191
    %v716 = vunpack.c.l.b16 %v192
    %v717 = vunpack.c.l.b16 %v193
    %v718 = vunpack.c.l.b16 %v194
    %v719 = vunpack.c.l.b16 %v195
    %v720 = vunpack.c.l.b16 %v196
    %v721 = vunpack.c.l.b16 %v197
    %v722 = vunpack.c.l.b16 %v198
    %v723 = vunpack.c.l.b16 %v199
    %v724 = vunpack.c.l.b16 %v200
    %v725 = vunpack.c.l.b16 %v201
    %v726 = vunpack.c.l.b16 %v202
    %v727 = vunpack.c.l.b16 %v203
    %v728 = vunpack.c.l.b16 %v204
    %v729 = vunpack.c.l.b16 %v205
    %v730 = vunpack.c.l.b16 %v206
    %v731 = vunpack.c.l.b16 %v207
    %v732 = vunpack.c.l.b16 %v208
    %v733 = vunpack.c.l.b16 %v209
    %v734 = vunpack.c.l.b16 %v210
    %v735 = vunpack.c.l.b16 %v211
    %v736 = vunpack.c.l.b16 %v212
    %v737 = vunpack.c.l.b16 %v213
    %v738 = vunpack.c.l.b16 %v214
    %v739 = vunpack.c.l.b16 %v215
    %v740 = vunpack.c.l.b16 %v216
    %v741 = vunpack.c.l.b16 %v217
    %v742 = vunpack.c.l.b16 %v218
    %v743 = vunpack.c.l.b16 %v219
    %v744 = vunpack.c.l.b16 %v220
    %v745 = vunpack.c.l.b16 %v221
    %v746 = vunpack.c.l.b16 %v222
    %v747 = vunpack.c.l.b16 %v223
    %v748 = vunpack.c.l.b16 %v224
    %v749 = vunpack.c.l.b16 %v225
    %v750 = vunpack.c.l.b16 %v226
    %v751 = vunpack.c.l.b16 %v227
    %v752 = vunpack.c.l.b16 %v228
    %v753 = vunpack.c.l.b16 %v229
    %v754 = vunpack.c.l.b16 %v230
    %v755 = vunpack.c.l.b16 %v231
    %v756 = vunpack.c.l.b16 %v232
    %v757 = vunpack.c.l.b16 %v233
    %v758 = vunpack.c.l.b16 %v234
    %v759 = vunpack.c.l.b16 %v235
    %v760 = vunpack.c.l.b16 %v236
    %v761 = vunpack.c.l.b16 %v237
    %v762 = vunpack.c.l.b16 %v238
    %v763 = vunpack.c.l.b16 %v239
    %v764 = vunpack.c.l.b16 %v240
    %v765 = vunpack.c.l.b16 %v241
    %v766 = vunpack.c.l.b16 %v242
    %v767 = vunpack.c.l.b16 %v243
    %v768 = vunpack.c.l.b16 %v244
    %v769 = vunpack.c.l.b16 %v245
    %v770 = vunpack.c.l.b16 %v246
    %v771 = vunpack.c.l.b16 %v247
    %v772 = vunpack.c.l.b16 %v248
    %v773 = vunpack.c.l.b16 %v249
    %v774 = vunpack.c.l.b16 %v250
    %v775 = vunpack.c.l.b16 %v251
    %v776 = vpack.c.b16 %v649, %v648
    %v777 = vpack.c.b16 %v651, %v650
    %v778 = vpack.c.b16 %v653, %v652
    %v779 = vpack.c.b16 %v655, %v654
    %v780 = vpack.c.b16 %v657, %v656
    %v781 = vpack.c.b16 %v659, %v658
    %v782 = vpack.c.b16 %v661, %v660
    %v783 = vpack.c.b16 %v663, %v662
    %v784 = vpack.c.b16 %v665, %v664
    %v785 = vpack.c.b16 %v667, %v666
    %v786 = vpack.c.b16 %v669, %v668
    %v787 = vpack.c.b16 %v671, %v670
    %v788 = vpack.c.b16 %v673, %v672
    %v789 = vpack.c.b16 %v675, %v674
    %v790 = vpack.c.b16 %v677, %v676
    %v791 = vpack.c.b16 %v679, %v678
    %v792 = vpack.c.b16 %v681, %v680
    %v793 = vpack.c.b16 %v683, %v682
    %v794 = vpack.c.b16 %v685, %v684
    %v795 = vpack.c.b16 %v687, %v686
    %v796 = vpack.c.b16 %v689, %v688
    %v797 = vpack.c.b16 %v691, %v690
    %v798 = vpack.c.b16 %v693, %v692
    %v799 = vpack.c.b16 %v695, %v694
    %v800 = vpack.c.b16 %v697, %v696
    %v801 = vpack.c.b16 %v699, %v698
    %v802 = vpack.c.b16 %v701, %v700
    %v803 = vpack.c.b16 %v703, %v702
    %v804 = vpack.c.b16 %v705, %v704
    %v805 = vpack.c.b16 %v707, %v706
    %v806 = vpack.c.b16 %v709, %v708
    %v807 = vpack.c.b16 %v711, %v710
    %v808 = vpack.c.b16 %v713, %v712
    %v809 = vpack.c.b16 %v715, %v714
    %v810 = vpack.c.b16 %v717, %v716
    %v811 = vpack.c.b16 %v719, %v718
    %v812 = vpack.c.b16 %v721, %v720
    %v813 = vpack.c.b16 %v723, %v722
    %v814 = vpack.c.b16 %v725, %v724
    %v815 = vpack.c.b16 %v727, %v726
    %v816 = vpack.c.b16 %v729, %v728
    %v817 = vpack.c.b16 %v731, %v730
    %v818 = vpack.c.b16 %v733, %v732
    %v819 = vpack.c.b16 %v735, %v734
    %v820 = vpack.c.b16 %v737, %v736
    %v821 = vpack.c.b16 %v739, %v738
    %v822 = vpack.c.b16 %v741, %v740
    %v823 = vpack.c.b16 %v743, %v742
    %v824 = vpack.c.b16 %v745, %v744
    %v825 = vpack.c.b16 %v747, %v746
    %v826 = vpack.c.b16 %v749, %v748
    %v827 = vpack.c.b16 %v751, %v750
    %v828 = vpack.c.b16 %v753, %v752
    %v829 = vpack.c.b16 %v755, %v754
    %v830 = vpack.c.b16 %v757, %v756
    %v831 = vpack.c.b16 %v759, %v758
    %v832 = vpack.c.b16 %v761, %v760
    %v833 = vpack.c.b16 %v763, %v762
    %v834 = vpack.c.b16 %v765, %v764
    %v835 = vpack.c.b16 %v767, %v766
    %v836 = vpack.c.b16 %v769, %v768
    %v837 = vpack.c.b16 %v771, %v770
    %v838 = vpack.c.b16 %v773, %v772
    %v839 = vpack.c.b16 %v775, %v774
    %904 = vmatprep.subr.bf16.mxu0 0
    %905 = vmatpush1.bf16.msra.mxu0 %v783
    %906 = vmatprep.subr.bf16.mxu0 0
    %907 = vmatpush1.bf16.msra.mxu0 %v782
    %908 = vmatprep.subr.bf16.mxu0 0
    %909 = vmatpush1.bf16.msra.mxu0 %v781
    %910 = vmatprep.subr.bf16.mxu0 0
    %911 = vmatpush1.bf16.msra.mxu0 %v780
    %912 = vmatprep.subr.bf16.mxu0 0
    %913 = vmatpush1.bf16.msra.mxu0 %v779
    %914 = vmatprep.subr.bf16.mxu0 0
    %915 = vmatpush1.bf16.msra.mxu0 %v778
    %916 = vmatprep.subr.bf16.mxu0 0
    %917 = vmatpush1.bf16.msra.mxu0 %v777
    %918 = vmatprep.subr.bf16.mxu0 0
    %919 = vmatpush1.bf16.msra.mxu0 %v776
    %920 = vmatprep.subr.bf16.mxu0 0
    %921 = vmatpush2.bf16.msra.mxu0 %v791
    %922 = vmatprep.subr.bf16.mxu0 0
    %923 = vmatpush2.bf16.msra.mxu0 %v790
    %924 = vmatprep.subr.bf16.mxu0 0
    %925 = vmatpush2.bf16.msra.mxu0 %v789
    %926 = vmatprep.subr.bf16.mxu0 0
    %927 = vmatpush2.bf16.msra.mxu0 %v788
    %928 = vmatprep.subr.bf16.mxu0 0
    %929 = vmatpush2.bf16.msra.mxu0 %v787
    %930 = vmatprep.subr.bf16.mxu0 0
    %931 = vmatpush2.bf16.msra.mxu0 %v786
    %932 = vmatprep.subr.bf16.mxu0 0
    %933 = vmatpush2.bf16.msra.mxu0 %v785
    %934 = vmatprep.subr.bf16.mxu0 0
    %935 = vmatpush2.bf16.msra.mxu0 %v784
    %936 = vmatprep.mubr.bf16.mxu0 %v409
    %937 = vmatmul.mubr.bf16.gmra.mxu0 %v408
    %v938 = vpop.f32.mrf.mxu0
    %v939 = vadd.f32 0.0, %v938
    %v940 = vpop.f32.mrf.mxu0
    %v941 = vpop.f32.mrf.mxu0
    %v942 = vadd.f32 0.0, %v941
    %v943 = vpop.f32.mrf.mxu0
    %944 = vmatprep.mubr.bf16.mxu0 %v417
    %945 = vmatmul.mubr.bf16.gmra.mxu0 %v416
    %v946 = vpop.f32.mrf.mxu0
    %v947 = vadd.f32 0.0, %v946
    %v948 = vpop.f32.mrf.mxu0
    %v949 = vpop.f32.mrf.mxu0
    %v950 = vadd.f32 0.0, %v949
    %v951 = vpop.f32.mrf.mxu0
    %952 = vmatprep.mubr.bf16.mxu0 %v425
    %953 = vmatmul.mubr.bf16.gmra.mxu0 %v424
    %v954 = vpop.f32.mrf.mxu0
    %v955 = vadd.f32 0.0, %v954
    %v956 = vpop.f32.mrf.mxu0
    %v957 = vpop.f32.mrf.mxu0
    %v958 = vadd.f32 0.0, %v957
    %v959 = vpop.f32.mrf.mxu0
    %960 = vmatprep.mubr.bf16.mxu0 %v433
    %961 = vmatmul.mubr.bf16.gmra.mxu0 %v432
    %v962 = vpop.f32.mrf.mxu0
    %v963 = vadd.f32 0.0, %v962
    %v964 = vpop.f32.mrf.mxu0
    %v965 = vpop.f32.mrf.mxu0
    %v966 = vadd.f32 0.0, %v965
    %v967 = vpop.f32.mrf.mxu0
    %968 = vmatprep.mubr.bf16.mxu0 %v441
    %969 = vmatmul.mubr.bf16.gmra.mxu0 %v440
    %v970 = vpop.f32.mrf.mxu0
    %v971 = vadd.f32 0.0, %v970
    %v972 = vpop.f32.mrf.mxu0
    %v973 = vpop.f32.mrf.mxu0
    %v974 = vadd.f32 0.0, %v973
    %v975 = vpop.f32.mrf.mxu0
    %976 = vmatprep.mubr.bf16.mxu0 %v449
    %977 = vmatmul.mubr.bf16.gmra.mxu0 %v448
    %v978 = vpop.f32.mrf.mxu0
    %v979 = vadd.f32 0.0, %v978
    %v980 = vpop.f32.mrf.mxu0
    %v981 = vpop.f32.mrf.mxu0
    %v982 = vadd.f32 0.0, %v981
    %v983 = vpop.f32.mrf.mxu0
    %984 = vmatprep.mubr.bf16.mxu0 %v457
    %985 = vmatmul.mubr.bf16.gmra.mxu0 %v456
    %v986 = vpop.f32.mrf.mxu0
    %v987 = vadd.f32 0.0, %v986
    %v988 = vpop.f32.mrf.mxu0
    %v989 = vpop.f32.mrf.mxu0
    %v990 = vpop.f32.mrf.mxu0
    %991 = vdwg.mxu0
    %992 = vmatprep.subr.bf16.mxu0 0
    %993 = vmatpush1.bf16.msra.mxu0 %v799
    %994 = vmatprep.subr.bf16.mxu0 0
    %995 = vmatpush1.bf16.msra.mxu0 %v798
    %996 = vmatprep.subr.bf16.mxu0 0
    %997 = vmatpush1.bf16.msra.mxu0 %v797
    %998 = vmatprep.subr.bf16.mxu0 0
    %999 = vmatpush1.bf16.msra.mxu0 %v796
    %1000 = vmatprep.subr.bf16.mxu0 0
    %1001 = vmatpush1.bf16.msra.mxu0 %v795
    %1002 = vmatprep.subr.bf16.mxu0 0
    %1003 = vmatpush1.bf16.msra.mxu0 %v794
    %1004 = vmatprep.subr.bf16.mxu0 0
    %1005 = vmatpush1.bf16.msra.mxu0 %v793
    %1006 = vmatprep.subr.bf16.mxu0 0
    %1007 = vmatpush1.bf16.msra.mxu0 %v792
    %1008 = vmatprep.subr.bf16.mxu0 0
    %1009 = vmatpush2.bf16.msra.mxu0 %v807
    %1010 = vmatprep.subr.bf16.mxu0 0
    %1011 = vmatpush2.bf16.msra.mxu0 %v806
    %1012 = vmatprep.subr.bf16.mxu0 0
    %1013 = vmatpush2.bf16.msra.mxu0 %v805
    %1014 = vmatprep.subr.bf16.mxu0 0
    %1015 = vmatpush2.bf16.msra.mxu0 %v804
    %1016 = vmatprep.subr.bf16.mxu0 0
    %1017 = vmatpush2.bf16.msra.mxu0 %v803
    %1018 = vmatprep.subr.bf16.mxu0 0
    %1019 = vmatpush2.bf16.msra.mxu0 %v802
    %1020 = vmatprep.subr.bf16.mxu0 0
    %1021 = vmatpush2.bf16.msra.mxu0 %v801
    %1022 = vmatprep.subr.bf16.mxu0 0
    %1023 = vmatpush2.bf16.msra.mxu0 %v800
    %1024 = vmatprep.mubr.bf16.mxu0 %v411
    %1025 = vmatmul.mubr.bf16.gmra.mxu0 %v410
    %v1026 = vpop.f32.mrf.mxu0
    %v1027 = vadd.f32 %v939, %v1026
    %v1028 = vpop.f32.mrf.mxu0
    %v1029 = vpop.f32.mrf.mxu0
    %v1030 = vadd.f32 %v942, %v1029
    %v1031 = vpop.f32.mrf.mxu0
    %1032 = vmatprep.mubr.bf16.mxu0 %v419
    %1033 = vmatmul.mubr.bf16.gmra.mxu0 %v418
    %v1034 = vpop.f32.mrf.mxu0
    %v1035 = vadd.f32 %v947, %v1034
    %v1036 = vpop.f32.mrf.mxu0
    %v1037 = vpop.f32.mrf.mxu0
    %v1038 = vadd.f32 %v950, %v1037
    %v1039 = vpop.f32.mrf.mxu0
    %1040 = vmatprep.mubr.bf16.mxu0 %v427
    %1041 = vmatmul.mubr.bf16.gmra.mxu0 %v426
    %v1042 = vpop.f32.mrf.mxu0
    %v1043 = vadd.f32 %v955, %v1042
    %v1044 = vpop.f32.mrf.mxu0
    %v1045 = vpop.f32.mrf.mxu0
    %v1046 = vadd.f32 %v958, %v1045
    %v1047 = vpop.f32.mrf.mxu0
    %1048 = vmatprep.mubr.bf16.mxu0 %v435
    %1049 = vmatmul.mubr.bf16.gmra.mxu0 %v434
    %v1050 = vpop.f32.mrf.mxu0
    %v1051 = vadd.f32 %v963, %v1050
    %v1052 = vpop.f32.mrf.mxu0
    %v1053 = vpop.f32.mrf.mxu0
    %v1054 = vadd.f32 %v966, %v1053
    %v1055 = vpop.f32.mrf.mxu0
    %1056 = vmatprep.mubr.bf16.mxu0 %v443
    %1057 = vmatmul.mubr.bf16.gmra.mxu0 %v442
    %v1058 = vpop.f32.mrf.mxu0
    %v1059 = vadd.f32 %v971, %v1058
    %v1060 = vpop.f32.mrf.mxu0
    %v1061 = vpop.f32.mrf.mxu0
    %v1062 = vadd.f32 %v974, %v1061
    %v1063 = vpop.f32.mrf.mxu0
    %1064 = vmatprep.mubr.bf16.mxu0 %v451
    %1065 = vmatmul.mubr.bf16.gmra.mxu0 %v450
    %v1066 = vpop.f32.mrf.mxu0
    %v1067 = vadd.f32 %v979, %v1066
    %v1068 = vpop.f32.mrf.mxu0
    %v1069 = vpop.f32.mrf.mxu0
    %v1070 = vadd.f32 %v982, %v1069
    %v1071 = vpop.f32.mrf.mxu0
    %1072 = vmatprep.mubr.bf16.mxu0 %v459
    %1073 = vmatmul.mubr.bf16.gmra.mxu0 %v458
    %v1074 = vpop.f32.mrf.mxu0
    %v1075 = vadd.f32 %v987, %v1074
    %v1076 = vpop.f32.mrf.mxu0
    %v1077 = vpop.f32.mrf.mxu0
    %v1078 = vpop.f32.mrf.mxu0
    %1079 = vdwg.mxu0
    %1080 = vmatprep.subr.bf16.mxu0 0
    %1081 = vmatpush1.bf16.msra.mxu0 %v815
    %1082 = vmatprep.subr.bf16.mxu0 0
    %1083 = vmatpush1.bf16.msra.mxu0 %v814
    %1084 = vmatprep.subr.bf16.mxu0 0
    %1085 = vmatpush1.bf16.msra.mxu0 %v813
    %1086 = vmatprep.subr.bf16.mxu0 0
    %1087 = vmatpush1.bf16.msra.mxu0 %v812
    %1088 = vmatprep.subr.bf16.mxu0 0
    %1089 = vmatpush1.bf16.msra.mxu0 %v811
    %1090 = vmatprep.subr.bf16.mxu0 0
    %1091 = vmatpush1.bf16.msra.mxu0 %v810
    %1092 = vmatprep.subr.bf16.mxu0 0
    %1093 = vmatpush1.bf16.msra.mxu0 %v809
    %1094 = vmatprep.subr.bf16.mxu0 0
    %1095 = vmatpush1.bf16.msra.mxu0 %v808
    %1096 = vmatprep.subr.bf16.mxu0 0
    %1097 = vmatpush2.bf16.msra.mxu0 %v823
    %1098 = vmatprep.subr.bf16.mxu0 0
    %1099 = vmatpush2.bf16.msra.mxu0 %v822
    %1100 = vmatprep.subr.bf16.mxu0 0
    %1101 = vmatpush2.bf16.msra.mxu0 %v821
    %1102 = vmatprep.subr.bf16.mxu0 0
    %1103 = vmatpush2.bf16.msra.mxu0 %v820
    %1104 = vmatprep.subr.bf16.mxu0 0
    %1105 = vmatpush2.bf16.msra.mxu0 %v819
    %1106 = vmatprep.subr.bf16.mxu0 0
    %1107 = vmatpush2.bf16.msra.mxu0 %v818
    %1108 = vmatprep.subr.bf16.mxu0 0
    %1109 = vmatpush2.bf16.msra.mxu0 %v817
    %1110 = vmatprep.subr.bf16.mxu0 0
    %1111 = vmatpush2.bf16.msra.mxu0 %v816
    %1112 = vmatprep.mubr.bf16.mxu0 %v413
    %1113 = vmatmul.mubr.bf16.gmra.mxu0 %v412
    %v1114 = vpop.f32.mrf.mxu0
    %v1115 = vadd.f32 %v1027, %v1114
    %v1116 = vpop.f32.mrf.mxu0
    %v1117 = vpop.f32.mrf.mxu0
    %v1118 = vadd.f32 %v1030, %v1117
    %v1119 = vpop.f32.mrf.mxu0
    %1120 = vmatprep.mubr.bf16.mxu0 %v421
    %1121 = vmatmul.mubr.bf16.gmra.mxu0 %v420
    %v1122 = vpop.f32.mrf.mxu0
    %v1123 = vadd.f32 %v1035, %v1122
    %v1124 = vpop.f32.mrf.mxu0
    %v1125 = vpop.f32.mrf.mxu0
    %v1126 = vadd.f32 %v1038, %v1125
    %v1127 = vpop.f32.mrf.mxu0
    %1128 = vmatprep.mubr.bf16.mxu0 %v429
    %1129 = vmatmul.mubr.bf16.gmra.mxu0 %v428
    %v1130 = vpop.f32.mrf.mxu0
    %v1131 = vadd.f32 %v1043, %v1130
    %v1132 = vpop.f32.mrf.mxu0
    %v1133 = vpop.f32.mrf.mxu0
    %v1134 = vadd.f32 %v1046, %v1133
    %v1135 = vpop.f32.mrf.mxu0
    %1136 = vmatprep.mubr.bf16.mxu0 %v437
    %1137 = vmatmul.mubr.bf16.gmra.mxu0 %v436
    %v1138 = vpop.f32.mrf.mxu0
    %v1139 = vadd.f32 %v1051, %v1138
    %v1140 = vpop.f32.mrf.mxu0
    %v1141 = vpop.f32.mrf.mxu0
    %v1142 = vadd.f32 %v1054, %v1141
    %v1143 = vpop.f32.mrf.mxu0
    %1144 = vmatprep.mubr.bf16.mxu0 %v445
    %1145 = vmatmul.mubr.bf16.gmra.mxu0 %v444
    %v1146 = vpop.f32.mrf.mxu0
    %v1147 = vadd.f32 %v1059, %v1146
    %v1148 = vpop.f32.mrf.mxu0
    %v1149 = vpop.f32.mrf.mxu0
    %v1150 = vadd.f32 %v1062, %v1149
    %v1151 = vpop.f32.mrf.mxu0
    %1152 = vmatprep.mubr.bf16.mxu0 %v453
    %1153 = vmatmul.mubr.bf16.gmra.mxu0 %v452
    %v1154 = vpop.f32.mrf.mxu0
    %v1155 = vadd.f32 %v1067, %v1154
    %v1156 = vpop.f32.mrf.mxu0
    %v1157 = vpop.f32.mrf.mxu0
    %v1158 = vadd.f32 %v1070, %v1157
    %v1159 = vpop.f32.mrf.mxu0
    %1160 = vmatprep.mubr.bf16.mxu0 %v461
    %1161 = vmatmul.mubr.bf16.gmra.mxu0 %v460
    %v1162 = vpop.f32.mrf.mxu0
    %v1163 = vadd.f32 %v1075, %v1162
    %v1164 = vpop.f32.mrf.mxu0
    %v1165 = vpop.f32.mrf.mxu0
    %v1166 = vpop.f32.mrf.mxu0
    %1167 = vdwg.mxu0
    %1168 = vmatprep.subr.bf16.mxu0 0
    %1169 = vmatpush1.bf16.msra.mxu0 %v831
    %1170 = vmatprep.subr.bf16.mxu0 0
    %1171 = vmatpush1.bf16.msra.mxu0 %v830
    %1172 = vmatprep.subr.bf16.mxu0 0
    %1173 = vmatpush1.bf16.msra.mxu0 %v829
    %1174 = vmatprep.subr.bf16.mxu0 0
    %1175 = vmatpush1.bf16.msra.mxu0 %v828
    %1176 = vmatprep.subr.bf16.mxu0 0
    %1177 = vmatpush1.bf16.msra.mxu0 %v827
    %1178 = vmatprep.subr.bf16.mxu0 0
    %1179 = vmatpush1.bf16.msra.mxu0 %v826
    %1180 = vmatprep.subr.bf16.mxu0 0
    %1181 = vmatpush1.bf16.msra.mxu0 %v825
    %1182 = vmatprep.subr.bf16.mxu0 0
    %1183 = vmatpush1.bf16.msra.mxu0 %v824
    %1184 = vmatprep.subr.bf16.mxu0 0
    %1185 = vmatpush2.bf16.msra.mxu0 %v839
    %1186 = vmatprep.subr.bf16.mxu0 0
    %1187 = vmatpush2.bf16.msra.mxu0 %v838
    %1188 = vmatprep.subr.bf16.mxu0 0
    %1189 = vmatpush2.bf16.msra.mxu0 %v837
    %1190 = vmatprep.subr.bf16.mxu0 0
    %1191 = vmatpush2.bf16.msra.mxu0 %v836
    %1192 = vmatprep.subr.bf16.mxu0 0
    %1193 = vmatpush2.bf16.msra.mxu0 %v835
    %1194 = vmatprep.subr.bf16.mxu0 0
    %1195 = vmatpush2.bf16.msra.mxu0 %v834
    %1196 = vmatprep.subr.bf16.mxu0 0
    %1197 = vmatpush2.bf16.msra.mxu0 %v833
    %1198 = vmatprep.subr.bf16.mxu0 0
    %1199 = vmatpush2.bf16.msra.mxu0 %v832
    %1200 = vmatprep.mubr.bf16.mxu0 %v415
    %1201 = vmatmul.mubr.bf16.gmra.mxu0 %v414
    %v1202 = vpop.f32.mrf.mxu0
    %v1203 = vadd.f32 %v1115, %v1202
    %v1204 = vpop.f32.mrf.mxu0
    %v1205 = vpop.f32.mrf.mxu0
    %v1206 = vadd.f32 %v1118, %v1205
    %v1207 = vpop.f32.mrf.mxu0
    %1208 = vmatprep.mubr.bf16.mxu0 %v423
    %1209 = vmatmul.mubr.bf16.gmra.mxu0 %v422
    %v1210 = vpop.f32.mrf.mxu0
    %v1211 = vadd.f32 %v1123, %v1210
    %v1212 = vpop.f32.mrf.mxu0
    %v1213 = vpop.f32.mrf.mxu0
    %v1214 = vadd.f32 %v1126, %v1213
    %v1215 = vpop.f32.mrf.mxu0
    %1216 = vmatprep.mubr.bf16.mxu0 %v431
    %1217 = vmatmul.mubr.bf16.gmra.mxu0 %v430
    %v1218 = vpop.f32.mrf.mxu0
    %v1219 = vadd.f32 %v1131, %v1218
    %v1220 = vpop.f32.mrf.mxu0
    %v1221 = vpop.f32.mrf.mxu0
    %v1222 = vadd.f32 %v1134, %v1221
    %v1223 = vpop.f32.mrf.mxu0
    %1224 = vmatprep.mubr.bf16.mxu0 %v439
    %1225 = vmatmul.mubr.bf16.gmra.mxu0 %v438
    %v1226 = vpop.f32.mrf.mxu0
    %v1227 = vadd.f32 %v1139, %v1226
    %v1228 = vpop.f32.mrf.mxu0
    %v1229 = vpop.f32.mrf.mxu0
    %v1230 = vadd.f32 %v1142, %v1229
    %v1231 = vpop.f32.mrf.mxu0
    %1232 = vmatprep.mubr.bf16.mxu0 %v447
    %1233 = vmatmul.mubr.bf16.gmra.mxu0 %v446
    %v1234 = vpop.f32.mrf.mxu0
    %v1235 = vadd.f32 %v1147, %v1234
    %v1236 = vpop.f32.mrf.mxu0
    %v1237 = vpop.f32.mrf.mxu0
    %v1238 = vadd.f32 %v1150, %v1237
    %v1239 = vpop.f32.mrf.mxu0
    %1240 = vmatprep.mubr.bf16.mxu0 %v455
    %1241 = vmatmul.mubr.bf16.gmra.mxu0 %v454
    %v1242 = vpop.f32.mrf.mxu0
    %v1243 = vadd.f32 %v1155, %v1242
    %v1244 = vpop.f32.mrf.mxu0
    %v1245 = vpop.f32.mrf.mxu0
    %v1246 = vadd.f32 %v1158, %v1245
    %v1247 = vpop.f32.mrf.mxu0
    %1248 = vmatprep.mubr.bf16.mxu0 %v463
    %1249 = vmatmul.mubr.bf16.gmra.mxu0 %v462
    %v1250 = vpop.f32.mrf.mxu0
    %v1251 = vadd.f32 %v1163, %v1250
    %v1252 = vpop.f32.mrf.mxu0
    %v1253 = vpop.f32.mrf.mxu0
    %v1254 = vpop.f32.mrf.mxu0
    %1255 = vdwg.mxu0
    %v1256 = vadd.f32 %v59, %v1203
    %v1257 = vadd.f32 %v60, %v1206
    %v1258 = vadd.f32 %v61, %v1211
    %v1259 = vadd.f32 %v62, %v1214
    %v1260 = vadd.f32 %v63, %v1219
    %v1261 = vadd.f32 %v64, %v1222
    %v1262 = vadd.f32 %v65, %v1227
    %v1263 = vadd.f32 %v66, %v1230
    %v1264 = vadd.f32 %v67, %v1235
    %v1265 = vadd.f32 %v68, %v1238
    %v1266 = vadd.f32 %v69, %v1243
    %v1267 = vadd.f32 %v70, %v1246
    %v1268 = vadd.f32 %v71, %v1251
    %1269 = vst [vmem:[%s4] sm:$0xff] %v1256
    %1270 = vst [vmem:[%s4 + $0x8] sm:$0xff] %v1257
    %1271 = vst [vmem:[%s4 + $0x10] sm:$0xff] %v1258
    %1272 = vst [vmem:[%s4 + $0x18] sm:$0xff] %v1259
    %1273 = vst [vmem:[%s4 + $0x20] sm:$0xff] %v1260
    %1274 = vst [vmem:[%s4 + $0x28] sm:$0xff] %v1261
    %1275 = vst [vmem:[%s4 + $0x30] sm:$0xff] %v1262
    %1276 = vst [vmem:[%s4 + $0x38] sm:$0xff] %v1263
    %1277 = vst [vmem:[%s4 + $0x40] sm:$0xff] %v1264
    %1278 = vst [vmem:[%s4 + $0x48] sm:$0xff] %v1265
    %1279 = vst [vmem:[%s4 + $0x50] sm:$0xff] %v1266
    %1280 = vst [vmem:[%s4 + $0x58] sm:$0xff] %v1267
    %1281 = vst [vmem:[%s4 + $0x60] sm:$0xff] %v1268
    // Predicated region
    $region30: #{encoder_forward.5} parent=1 // pred_check
      %p1282 = pneg %p42
    $region31: #{encoder_forward.5} parent=1 // pred_check_branch
      %1284 = sbr.rel (%p1282) target = $region33
    $region32: #{encoder_forward.5} parent=1 // pred_region
      %v1285 = vld [vmem:[%s4] sm:$0xff]
      %v1286 = vld [vmem:[%s4 + $0x8] sm:$0xff]
      %v1287 = vld [vmem:[%s4 + $0x10] sm:$0xff]
      %v1288 = vld [vmem:[%s4 + $0x18] sm:$0xff]
      %v1289 = vld [vmem:[%s4 + $0x20] sm:$0xff]
      %v1290 = vld [vmem:[%s4 + $0x28] sm:$0xff]
      %v1291 = vld [vmem:[%s4 + $0x30] sm:$0xff]
      %v1292 = vld [vmem:[%s4 + $0x38] sm:$0xff]
      %v1293 = vld [vmem:[%s4 + $0x40] sm:$0xff]
      %v1294 = vld [vmem:[%s4 + $0x48] sm:$0xff]
      %v1295 = vld [vmem:[%s4 + $0x50] sm:$0xff]
      %v1296 = vld [vmem:[%s4 + $0x58] sm:$0xff]
      %v1297 = vld [vmem:[%s4 + $0x60] sm:$0xff]
      %v1298 = vlaneseq
      %v1299 = vshrl.u32 %v1298, 7
      %v1300 = vadd.s32 %v1299, 8
      %v1301 = vadd.s32 %v1299, 16
      %v1302 = vadd.s32 %v1299, 24
      %v1303 = vadd.s32 %v1299, 32
      %v1304 = vadd.s32 %v1299, 40
      %v1305 = vadd.s32 %v1299, 48
      %v1306 = vadd.s32 %v1299, 56
      %v1307 = vadd.s32 %v1299, 64
      %v1308 = vadd.s32 %v1299, 72
      %v1309 = vadd.s32 %v1299, 80
      %v1310 = vadd.s32 %v1299, 88
      %v1311 = vadd.s32 %v1299, 96
      %vm1312 = vcmp.lt.s32.totalorder %v1299, 98
      %vm1313 = vcmp.lt.s32.totalorder %v1300, 98
      %vm1314 = vcmp.lt.s32.totalorder %v1301, 98
      %vm1315 = vcmp.lt.s32.totalorder %v1302, 98
      %vm1316 = vcmp.lt.s32.totalorder %v1303, 98
      %vm1317 = vcmp.lt.s32.totalorder %v1304, 98
      %vm1318 = vcmp.lt.s32.totalorder %v1305, 98
      %vm1319 = vcmp.lt.s32.totalorder %v1306, 98
      %vm1320 = vcmp.lt.s32.totalorder %v1307, 98
      %vm1321 = vcmp.lt.s32.totalorder %v1308, 98
      %vm1322 = vcmp.lt.s32.totalorder %v1309, 98
      %vm1323 = vcmp.lt.s32.totalorder %v1310, 98
      %vm1324 = vcmp.lt.s32.totalorder %v1311, 98
      %v1325 = vsel %vm1312, 1, 0
      %v1326 = vsel %vm1313, 1, 0
      %v1327 = vsel %vm1314, 1, 0
      %v1328 = vsel %vm1315, 1, 0
      %v1329 = vsel %vm1316, 1, 0
      %v1330 = vsel %vm1317, 1, 0
      %v1331 = vsel %vm1318, 1, 0
      %v1332 = vsel %vm1319, 1, 0
      %v1333 = vsel %vm1320, 1, 0
      %v1334 = vsel %vm1321, 1, 0
      %v1335 = vsel %vm1322, 1, 0
      %v1336 = vsel %vm1323, 1, 0
      %v1337 = vsel %vm1324, 1, 0
      %v1338 = vcvt.s32.f32 %v1325
      %v1339 = vcvt.s32.f32 %v1326
      %v1340 = vcvt.s32.f32 %v1327
      %v1341 = vcvt.s32.f32 %v1328
      %v1342 = vcvt.s32.f32 %v1329
      %v1343 = vcvt.s32.f32 %v1330
      %v1344 = vcvt.s32.f32 %v1331
      %v1345 = vcvt.s32.f32 %v1332
      %v1346 = vcvt.s32.f32 %v1333
      %v1347 = vcvt.s32.f32 %v1334
      %v1348 = vcvt.s32.f32 %v1335
      %v1349 = vcvt.s32.f32 %v1336
      %v1350 = vcvt.s32.f32 %v1337
      %v1351 = vmul.f32 %v1285, %v1338
      %v1352 = vmul.f32 %v1286, %v1339
      %v1353 = vmul.f32 %v1287, %v1340
      %v1354 = vmul.f32 %v1288, %v1341
      %v1355 = vmul.f32 %v1289, %v1342
      %v1356 = vmul.f32 %v1290, %v1343
      %v1357 = vmul.f32 %v1291, %v1344
      %v1358 = vmul.f32 %v1292, %v1345
      %v1359 = vmul.f32 %v1293, %v1346
      %v1360 = vmul.f32 %v1294, %v1347
      %v1361 = vmul.f32 %v1295, %v1348
      %v1362 = vmul.f32 %v1296, %v1349
      %v1363 = vmul.f32 %v1297, %v1350
      %v1364 = vadd.f32 %v1351, %v1352
      %v1365 = vadd.f32 %v1364, %v1353
      %v1366 = vadd.f32 %v1365, %v1354
      %v1367 = vadd.f32 %v1366, %v1355
      %v1368 = vadd.f32 %v1367, %v1356
      %v1369 = vadd.f32 %v1368, %v1357
      %v1370 = vadd.f32 %v1369, %v1358
      %v1371 = vadd.f32 %v1370, %v1359
      %v1372 = vadd.f32 %v1371, %v1360
      %v1373 = vadd.f32 %v1372, %v1361
      %v1374 = vadd.f32 %v1373, %v1362
      %v1375 = vadd.f32 %v1374, %v1363
      %v1376 = vrot.slane %v1375, 4
      %v1377 = vadd.f32 %v1375, %v1376
      %v1378 = vrot.slane %v1377, 2
      %v1379 = vadd.f32 %v1377, %v1378
      %v1380 = vrot.slane %v1379, 1
      %v1381 = vadd.f32 %v1379, %v1380
      %v1382 = vmul.f32 %v1285, %v1285
      %v1383 = vmul.f32 %v1286, %v1286
      %v1384 = vmul.f32 %v1287, %v1287
      %v1385 = vmul.f32 %v1288, %v1288
      %v1386 = vmul.f32 %v1289, %v1289
      %v1387 = vmul.f32 %v1290, %v1290
      %v1388 = vmul.f32 %v1291, %v1291
      %v1389 = vmul.f32 %v1292, %v1292
      %v1390 = vmul.f32 %v1293, %v1293
      %v1391 = vmul.f32 %v1294, %v1294
      %v1392 = vmul.f32 %v1295, %v1295
      %v1393 = vmul.f32 %v1296, %v1296
      %v1394 = vmul.f32 %v1297, %v1297
      %v1395 = vmul.f32 %v1382, %v1338
      %v1396 = vmul.f32 %v1383, %v1339
      %v1397 = vmul.f32 %v1384, %v1340
      %v1398 = vmul.f32 %v1385, %v1341
      %v1399 = vmul.f32 %v1386, %v1342
      %v1400 = vmul.f32 %v1387, %v1343
      %v1401 = vmul.f32 %v1388, %v1344
      %v1402 = vmul.f32 %v1389, %v1345
      %v1403 = vmul.f32 %v1390, %v1346
      %v1404 = vmul.f32 %v1391, %v1347
      %v1405 = vmul.f32 %v1392, %v1348
      %v1406 = vmul.f32 %v1393, %v1349
      %v1407 = vmul.f32 %v1394, %v1350
      %v1408 = vadd.f32 %v1395, %v1396
      %v1409 = vadd.f32 %v1408, %v1397
      %v1410 = vadd.f32 %v1409, %v1398
      %v1411 = vadd.f32 %v1410, %v1399
      %v1412 = vadd.f32 %v1411, %v1400
      %v1413 = vadd.f32 %v1412, %v1401
      %v1414 = vadd.f32 %v1413, %v1402
      %v1415 = vadd.f32 %v1414, %v1403
      %v1416 = vadd.f32 %v1415, %v1404
      %v1417 = vadd.f32 %v1416, %v1405
      %v1418 = vadd.f32 %v1417, %v1406
      %v1419 = vadd.f32 %v1418, %v1407
      %v1420 = vrot.slane %v1419, 4
      %v1421 = vadd.f32 %v1419, %v1420
      %v1422 = vrot.slane %v1421, 2
      %v1423 = vadd.f32 %v1421, %v1422
      %v1424 = vrot.slane %v1423, 1
      %v1425 = vadd.f32 %v1423, %v1424
      %v1426 = vmul.f32 %v1381, 0.010204081
      %v1427 = vmul.f32 %v1425, 0.010204081
      %v1428 = vmul.f32 %v1426, %v1426
      %v1429 = vsub.f32 %v1427, %v1428
      %v1430 = vadd.f32 %v1429, 1e-05
      %v1431 = vrsqrt.pop %v1430
      %v1432 = vsub.f32 %v1285, %v1426
      %v1433 = vsub.f32 %v1286, %v1426
      %v1434 = vsub.f32 %v1287, %v1426
      %v1435 = vsub.f32 %v1288, %v1426
      %v1436 = vsub.f32 %v1289, %v1426
      %v1437 = vsub.f32 %v1290, %v1426
      %v1438 = vsub.f32 %v1291, %v1426
      %v1439 = vsub.f32 %v1292, %v1426
      %v1440 = vsub.f32 %v1293, %v1426
      %v1441 = vsub.f32 %v1294, %v1426
      %v1442 = vsub.f32 %v1295, %v1426
      %v1443 = vsub.f32 %v1296, %v1426
      %v1444 = vsub.f32 %v1297, %v1426
      %v1445 = vld [vmem:[#allocation2] sm:$0x1]
      %v1446 = vmul.f32 %v1431, %v1445
      %v1447 = vlaneseq
      %v1448 = vshrl.u32 %v1447, 7
      %v1449 = vsub.s32 0, %v1448
      %v1450 = vrot.slane %v1446, %v1449
      %v1451 = vmul.f32 %v1432, %v1450
      %v1452 = vmul.f32 %v1433, %v1450
      %v1453 = vmul.f32 %v1434, %v1450
      %v1454 = vmul.f32 %v1435, %v1450
      %v1455 = vmul.f32 %v1436, %v1450
      %v1456 = vmul.f32 %v1437, %v1450
      %v1457 = vmul.f32 %v1438, %v1450
      %v1458 = vmul.f32 %v1439, %v1450
      %v1459 = vmul.f32 %v1440, %v1450
      %v1460 = vmul.f32 %v1441, %v1450
      %v1461 = vmul.f32 %v1442, %v1450
      %v1462 = vmul.f32 %v1443, %v1450
      %v1463 = vmul.f32 %v1444, %v1450
      %v1464 = vld [vmem:[#allocation4] sm:$0x1]
      %v1466 = vlaneseq
      %v1467 = vshrl.u32 %v1466, 7
      %v1468 = vsub.s32 0, %v1467
      %v1469 = vrot.slane %v1464, %v1468
      %v1471 = vadd.f32 %v1451, %v1469
      %v1472 = vadd.f32 %v1452, %v1469
      %v1473 = vadd.f32 %v1453, %v1469
      %v1474 = vadd.f32 %v1454, %v1469
      %v1475 = vadd.f32 %v1455, %v1469
      %v1476 = vadd.f32 %v1456, %v1469
      %v1477 = vadd.f32 %v1457, %v1469
      %v1478 = vadd.f32 %v1458, %v1469
      %v1479 = vadd.f32 %v1459, %v1469
      %v1480 = vadd.f32 %v1460, %v1469
      %v1481 = vadd.f32 %v1461, %v1469
      %v1482 = vadd.f32 %v1462, %v1469
      %v1483 = vadd.f32 %v1463, %v1469
      %vm1484 = vcmp.ge.f32.partialorder %v1471, 0.0
      %vm1485 = vcmp.ge.f32.partialorder %v1472, 0.0
      %vm1486 = vcmp.ge.f32.partialorder %v1473, 0.0
      %vm1487 = vcmp.ge.f32.partialorder %v1474, 0.0
      %vm1488 = vcmp.ge.f32.partialorder %v1475, 0.0
      %vm1489 = vcmp.ge.f32.partialorder %v1476, 0.0
      %vm1490 = vcmp.ge.f32.partialorder %v1477, 0.0
      %vm1491 = vcmp.ge.f32.partialorder %v1478, 0.0
      %vm1492 = vcmp.ge.f32.partialorder %v1479, 0.0
      %vm1493 = vcmp.ge.f32.partialorder %v1480, 0.0
      %vm1494 = vcmp.ge.f32.partialorder %v1481, 0.0
      %vm1495 = vcmp.ge.f32.partialorder %v1482, 0.0
      %vm1496 = vcmp.ge.f32.partialorder %v1483, 0.0
      %v1497 = vmul.f32 %v1471, 0.1
      %v1498 = vmul.f32 %v1472, 0.1
      %v1499 = vmul.f32 %v1473, 0.1
      %v1500 = vmul.f32 %v1474, 0.1
      %v1501 = vmul.f32 %v1475, 0.1
      %v1502 = vmul.f32 %v1476, 0.1
      %v1503 = vmul.f32 %v1477, 0.1
      %v1504 = vmul.f32 %v1478, 0.1
      %v1505 = vmul.f32 %v1479, 0.1
      %v1506 = vmul.f32 %v1480, 0.1
      %v1507 = vmul.f32 %v1481, 0.1
      %v1508 = vmul.f32 %v1482, 0.1
      %v1509 = vmul.f32 %v1483, 0.1
      %v1510 = vsel %vm1484, %v1471, %v1497
      %v1511 = vsel %vm1485, %v1472, %v1498
      %v1512 = vsel %vm1486, %v1473, %v1499
      %v1513 = vsel %vm1487, %v1474, %v1500
      %v1514 = vsel %vm1488, %v1475, %v1501
      %v1515 = vsel %vm1489, %v1476, %v1502
      %v1516 = vsel %vm1490, %v1477, %v1503
      %v1517 = vsel %vm1491, %v1478, %v1504
      %v1518 = vsel %vm1492, %v1479, %v1505
      %v1519 = vsel %vm1493, %v1480, %v1506
      %v1520 = vsel %vm1494, %v1481, %v1507
      %v1521 = vsel %vm1495, %v1482, %v1508
      %v1522 = vsel %vm1496, %v1483, %v1509
      %1523 = vst [vmem:[%s4] sm:$0xff] %v1510
      %1524 = vst [vmem:[%s4 + $0x8] sm:$0xff] %v1511
      %1525 = vst [vmem:[%s4 + $0x10] sm:$0xff] %v1512
      %1526 = vst [vmem:[%s4 + $0x18] sm:$0xff] %v1513
      %1527 = vst [vmem:[%s4 + $0x20] sm:$0xff] %v1514
      %1528 = vst [vmem:[%s4 + $0x28] sm:$0xff] %v1515
      %1529 = vst [vmem:[%s4 + $0x30] sm:$0xff] %v1516
      %1530 = vst [vmem:[%s4 + $0x38] sm:$0xff] %v1517
      %1531 = vst [vmem:[%s4 + $0x40] sm:$0xff] %v1518
      %1532 = vst [vmem:[%s4 + $0x48] sm:$0xff] %v1519
      %1533 = vst [vmem:[%s4 + $0x50] sm:$0xff] %v1520
      %1534 = vst [vmem:[%s4 + $0x58] sm:$0xff] %v1521
      %1535 = vst [vmem:[%s4 + $0x60] sm:$0xff] %v1522
    $region33: #{encoder_forward.5} parent=1 // pred_fallthru
      _
    // Predicated region
    $region34: #{encoder_forward.5} parent=1 // pred_check
      _
    $region35: #{encoder_forward.5} parent=1 // pred_check_branch
      %1537 = sbr.rel (0) target = $region37
    $region36: #{encoder_forward.5} parent=1 // pred_region
      _
    $region37: #{encoder_forward.5} parent=1 // pred_fallthru
      _
    // Predicated region
    $region38: #{encoder_forward.5} parent=1 // pred_check
      _
    $region39: #{encoder_forward.5} parent=1 // pred_check_branch
      %1539 = sbr.rel (0) target = $region41
    $region40: #{encoder_forward.5} parent=1 // pred_region
      _
    $region41: #{encoder_forward.5} parent=1 // pred_fallthru
      _
    %1540 = vsyncpa [#allocation3], 1
    %1541 = vsyncpa [#allocation5], 1

// kernel: encoder_forward.6
$region0: #{encoder_forward.6}
  #allocation0 [shape = 'u32[]', space=smem, size = 0x4, offset = 0x4, fixed_abs, tag = 'smem constant byte address 0x4 - core index']
  #allocation1 [shape = 'u32[144,128]{1,0:T(1,128)}', space=vmem, size = 0x12000, scoped, tag = 'internal scratch']
  %s0 = inlined_call_operand.vmem [shape: bf16[8,6272], index: 0, kind: input, shape index: {}]
  %s1 = inlined_call_operand.vmem [shape: bf16[6272,1024], index: 1, kind: input, shape index: {}]
  %s2 = inlined_call_operand.vmem [shape: f32[1,1024], index: 2, kind: input, shape index: {}]
  %s3 = inlined_call_operand.vmem [shape: f32[1,1024], index: 3, kind: input, shape index: {}]
  %s4 = inlined_call_operand.vmem [shape: f32[8,1024], index: 4, kind: output, shape index: {}]
  %s5 = sld [smem:[#allocation0]]
  $region80: #{encoder_forward.6} parent=0
    _
  %s7 = ssub.s32 1, %s5
  %s8 = scalar_select 0, %s7, %s5
  $region1: #{encoder_forward.6} parent=0
    #allocation2 [shape = 'u8[1835008]{0}', space=vmem, size = 0x1c0000, scoped, tag = 'input window, operand 1']
    loop: start=0, step=1, limit=16
    $region2: #{encoder_forward.6} parent=1 // loop_pre_header
      _
    $region3: #{encoder_forward.6} parent=1 // loop_header
      %s10 = sphi 0, %s14
      %p11 = scmp.ge.s32.totalorder %s10, 16
      %s17 = sphi 0, %s29
      %s18 = sphi 0, %s25
      %s19 = sphi 0, %s17
      %s20 = sphi 0, %s18
      %s21 = sphi 0, %s19
      %s22 = sphi 0, %s20
      %s32 = sphi 0, %s34
      %s35 = sphi 0, %s32
      %s36 = sphi 0, %s35
      %s52 = sphi 0, %s36
      %s60 = sphi 0, %s62
      %s63 = sphi 0, %s60
      %s64 = sphi 0, %s63
      %s80 = sphi 0, %s64
      %s86 = sphi 0, %s88
      %s89 = sphi 0, %s86
      %s90 = sphi 0, %s89
      %s106 = sphi 0, %s90
      %s112 = sphi 0, %s114
      %s115 = sphi 0, %s112
      %s116 = sphi 0, %s115
      %s132 = sphi 0, %s116
      %s138 = sphi 0, %s140
      %s141 = sphi 0, %s138
      %s142 = sphi 0, %s141
      %s158 = sphi 0, %s142
    $region4: #{encoder_forward.6} parent=1 // loop_header_branch
      %13 = sbr.rel (%p11) target = $region8
    $region5: #{encoder_forward.6} parent=1 // loop_body
      %s15 = ssub.s32 %s10, 1
      %s16 = ssub.s32 %s10, 2
      %s23 = sadd.s32 1, %s18
      %p24 = scmp.ge.s32.totalorder %s23, 7
      %s25 = scalar_select %p24, 0, %s23
      %s26 = sadd.s32 1, %s17
      %s27 = scalar_select %p24, %s26, %s17
      %p28 = scmp.ge.s32.totalorder %s27, 2
      %s29 = scalar_select %p28, 0, %s27
      %s30 = ssub.s32 %s18, %s25
      %p31 = scmp.eq.s32.totalorder %s30, 0
      %s33 = sadd.s32 %s32, 1
      %s34 = scalar_select %p31, %s32, %s33
      %p37 = pneg %p31
      %p38 = scmp.eq.s32.totalorder %s10, 13
      %p39 = por %p37, %p38
      %p40 = scmp.ne.s32.totalorder %s32, %s35
      %p41 = scmp.eq.s32.totalorder %s10, 0
      %p42 = por %p40, %p41
      %p43 = scmp.ne.s32.totalorder %s32, %s35
      %p44 = scmp.eq.s32.totalorder %s15, 13
      %p45 = por %p43, %p44
      %p46 = scmp.ne.s32.totalorder %s35, %s36
      %p47 = scmp.eq.s32.totalorder %s15, 0
      %p48 = por %p46, %p47
      %p49 = scmp.ne.s32.totalorder %s35, %s36
      %p50 = scmp.eq.s32.totalorder %s16, 13
      %p51 = por %p49, %p50
      %p53 = scmp.ne.s32.totalorder %s36, %s52
      %p54 = scmp.eq.s32.totalorder %s16, 0
      %p55 = por %p53, %p54
      %s56 = ssub.s32 %s18, %s25
      %s57 = ssub.s32 %s17, %s29
      %s58 = sor.u32 %s56, %s57
      %p59 = scmp.eq.s32.totalorder %s58, 0
      %s61 = sadd.s32 %s60, 1
      %s62 = scalar_select %p59, %s60, %s61
      %p65 = pneg %p59
      %p66 = scmp.eq.s32.totalorder %s10, 13
      %p67 = por %p65, %p66
      %p68 = scmp.ne.s32.totalorder %s60, %s63
      %p69 = scmp.eq.s32.totalorder %s10, 0
      %p70 = por %p68, %p69
      %p71 = scmp.ne.s32.totalorder %s60, %s63
      %p72 = scmp.eq.s32.totalorder %s15, 13
      %p73 = por %p71, %p72
      %p74 = scmp.ne.s32.totalorder %s63, %s64
      %p75 = scmp.eq.s32.totalorder %s15, 0
      %p76 = por %p74, %p75
      %p77 = scmp.ne.s32.totalorder %s63, %s64
      %p78 = scmp.eq.s32.totalorder %s16, 13
      %p79 = por %p77, %p78
      %p81 = scmp.ne.s32.totalorder %s64, %s80
      %p82 = scmp.eq.s32.totalorder %s16, 0
      %p83 = por %p81, %p82
      %s84 = ssub.s32 %s17, %s29
      %p85 = scmp.eq.s32.totalorder %s84, 0
      %s87 = sadd.s32 %s86, 1
      %s88 = scalar_select %p85, %s86, %s87
      %p91 = pneg %p85
      %p92 = scmp.eq.s32.totalorder %s10, 13
      %p93 = por %p91, %p92
      %p94 = scmp.ne.s32.totalorder %s86, %s89
      %p95 = scmp.eq.s32.totalorder %s10, 0
      %p96 = por %p94, %p95
      %p97 = scmp.ne.s32.totalorder %s86, %s89
      %p98 = scmp.eq.s32.totalorder %s15, 13
      %p99 = por %p97, %p98
      %p100 = scmp.ne.s32.totalorder %s89, %s90
      %p101 = scmp.eq.s32.totalorder %s15, 0
      %p102 = por %p100, %p101
      %p103 = scmp.ne.s32.totalorder %s89, %s90
      %p104 = scmp.eq.s32.totalorder %s16, 13
      %p105 = por %p103, %p104
      %p107 = scmp.ne.s32.totalorder %s90, %s106
      %p108 = scmp.eq.s32.totalorder %s16, 0
      %p109 = por %p107, %p108
      %s110 = ssub.s32 %s17, %s29
      %p111 = scmp.eq.s32.totalorder %s110, 0
      %s113 = sadd.s32 %s112, 1
      %s114 = scalar_select %p111, %s112, %s113
      %p117 = pneg %p111
      %p118 = scmp.eq.s32.totalorder %s10, 13
      %p119 = por %p117, %p118
      %p120 = scmp.ne.s32.totalorder %s112, %s115
      %p121 = scmp.eq.s32.totalorder %s10, 0
      %p122 = por %p120, %p121
      %p123 = scmp.ne.s32.totalorder %s112, %s115
      %p124 = scmp.eq.s32.totalorder %s15, 13
      %p125 = por %p123, %p124
      %p126 = scmp.ne.s32.totalorder %s115, %s116
      %p127 = scmp.eq.s32.totalorder %s15, 0
      %p128 = por %p126, %p127
      %p129 = scmp.ne.s32.totalorder %s115, %s116
      %p130 = scmp.eq.s32.totalorder %s16, 13
      %p131 = por %p129, %p130
      %p133 = scmp.ne.s32.totalorder %s116, %s132
      %p134 = scmp.eq.s32.totalorder %s16, 0
      %p135 = por %p133, %p134
      %s136 = ssub.s32 %s17, %s29
      %p137 = scmp.eq.s32.totalorder %s136, 0
      %s139 = sadd.s32 %s138, 1
      %s140 = scalar_select %p137, %s138, %s139
      %p143 = pneg %p137
      %p144 = scmp.eq.s32.totalorder %s10, 13
      %p145 = por %p143, %p144
      %p146 = scmp.ne.s32.totalorder %s138, %s141
      %p147 = scmp.eq.s32.totalorder %s10, 0
      %p148 = por %p146, %p147
      %p149 = scmp.ne.s32.totalorder %s138, %s141
      %p150 = scmp.eq.s32.totalorder %s15, 13
      %p151 = por %p149, %p150
      %p152 = scmp.ne.s32.totalorder %s141, %s142
      %p153 = scmp.eq.s32.totalorder %s15, 0
      %p154 = por %p152, %p153
      %p155 = scmp.ne.s32.totalorder %s141, %s142
      %p156 = scmp.eq.s32.totalorder %s16, 13
      %p157 = por %p155, %p156
      %p159 = scmp.ne.s32.totalorder %s142, %s158
      %p160 = scmp.eq.s32.totalorder %s16, 0
      %p161 = por %p159, %p160
      %p162 = scmp.le.s32.totalorder 1, %s10
      %p163 = scmp.lt.s32.totalorder %s10, 15
      %p164 = pnand %p162, %p163
      %p165 = pneg %p164
      // Predicated region
      $region9: #{encoder_forward.6} parent=5 // pred_check
        _
      $region10: #{encoder_forward.6} parent=5 // pred_check_branch
        %167 = sbr.rel (%p164) target = $region12
      $region11: #{encoder_forward.6} parent=5 // pred_region
        %s168 = ssub.s32 %s10, 1
      $region12: #{encoder_forward.6} parent=5 // pred_fallthru
        _
      %p169 = scmp.lt.s32.totalorder %s10, 14
      // Predicated region
      $region13: #{encoder_forward.6} parent=5 // pred_check
        %p170 = pneg %p169
      $region14: #{encoder_forward.6} parent=5 // pred_check_branch
        %172 = sbr.rel (%p170) target = $region16
      $region15: #{encoder_forward.6} parent=5 // pred_region
        // Predicated region
        $region17: #{encoder_forward.6} parent=15 // pred_check
          %p173 = pneg %p42
        $region18: #{encoder_forward.6} parent=15 // pred_check_branch
          %175 = sbr.rel (%p173) target = $region20
        $region19: #{encoder_forward.6} parent=15 // pred_region
          %s176 = smul.u32 7, %s18
          %p177 = scmp.lt.s32.totalorder %s176, 48
          %s178 = scalar_select %p177, %s176, 48
          %s179 = smul.addr %s178, 4
          %s180 = scalar_lea.vmem %s0, %s179
          %s181 = smul.u32 7, %s18
        $region20: #{encoder_forward.6} parent=15 // pred_fallthru
          _
        // Predicated region
        $region21: #{encoder_forward.6} parent=15 // pred_check
          %p182 = pneg %p70
        $region22: #{encoder_forward.6} parent=15 // pred_check_branch
          %184 = sbr.rel (%p182) target = $region24
        $region23: #{encoder_forward.6} parent=15 // pred_region
          %s185 = sand.u32 %s60, 1
          %s186 = sand.u32 %s60, 1
          %s187 = smul.addr %s186, 1792
          %s188 = scalar_lea.vmem [#allocation2], %s187
          %s189 = smul.u32 112, %s18
          %s190 = smul.u32 4, %s17
          %s191 = smul.addr %s189, 8
          %s192 = sadd.s32 %s190, %s191
          %s193 = smul.addr %s192, 4
          %s194 = scalar_lea.vmem %s1, %s193
          // Predicated region
          $region25: #{encoder_forward.6} parent=23 // pred_check
            _
          $region26: #{encoder_forward.6} parent=23 // pred_check_branch
            %196 = sbr.rel (0) target = $region28
          $region27: #{encoder_forward.6} parent=23 // pred_region
            // Predicated region
            $region29: #{encoder_forward.6} parent=27 // pred_check
              _
            $region30: #{encoder_forward.6} parent=27 // pred_check_branch
              %198 = sbr.rel (0) target = $region32
            $region31: #{encoder_forward.6} parent=27 // pred_region
              loop: start=0, step=1, limit=1
              $region33: #{encoder_forward.6} parent=31 // loop_pre_header
                _
              $region34: #{encoder_forward.6} parent=31 // loop_header
                %s200 = sphi 0, %s204
                %p201 = scmp.ge.s32.totalorder %s200, 1
                %s205 = sphi %s194, %s194
                %s206 = sphi %s188, %s188
              $region35: #{encoder_forward.6} parent=31 // loop_header_branch
                %203 = sbr.rel (%p201) target = $region39
              $region36: #{encoder_forward.6} parent=31 // loop_body
                %v207 = vld [vmem:[%s205] sm:$0xff]
                %208 = vst [vmem:[%s206] sm:$0xff] %v207
                %v209 = vld [vmem:[%s205 + $0x8] sm:$0xff]
                %210 = vst [vmem:[%s206 + $0x8] sm:$0xff] %v209
                %v211 = vld [vmem:[%s205 + $0x20] sm:$0xff]
                %212 = vst [vmem:[%s206 + $0x10] sm:$0xff] %v211
                %v213 = vld [vmem:[%s205 + $0x28] sm:$0xff]
                %214 = vst [vmem:[%s206 + $0x18] sm:$0xff] %v213
                %v215 = vld [vmem:[%s205 + $0x40] sm:$0xff]
                %216 = vst [vmem:[%s206 + $0x20] sm:$0xff] %v215
                %v217 = vld [vmem:[%s205 + $0x48] sm:$0xff]
                %218 = vst [vmem:[%s206 + $0x28] sm:$0xff] %v217
                %v219 = vld [vmem:[%s205 + $0x60] sm:$0xff]
                %220 = vst [vmem:[%s206 + $0x30] sm:$0xff] %v219
                %v221 = vld [vmem:[%s205 + $0x68] sm:$0xff]
                %222 = vst [vmem:[%s206 + $0x38] sm:$0xff] %v221
                %v223 = vld [vmem:[%s205 + $0x80] sm:$0xff]
                %224 = vst [vmem:[%s206 + $0x40] sm:$0xff] %v223
                %v225 = vld [vmem:[%s205 + $0x88] sm:$0xff]
                %226 = vst [vmem:[%s206 + $0x48] sm:$0xff] %v225
                %v227 = vld [vmem:[%s205 + $0xa0] sm:$0xff]
                %228 = vst [vmem:[%s206 + $0x50] sm:$0xff] %v227
                %v229 = vld [vmem:[%s205 + $0xa8] sm:$0xff]
                %230 = vst [vmem:[%s206 + $0x58] sm:$0xff] %v229
                %v231 = vld [vmem:[%s205 + $0xc0] sm:$0xff]
                %232 = vst [vmem:[%s206 + $0x60] sm:$0xff] %v231
                %v233 = vld [vmem:[%s205 + $0xc8] sm:$0xff]
                %234 = vst [vmem:[%s206 + $0x68] sm:$0xff] %v233
                %v235 = vld [vmem:[%s205 + $0xe0] sm:$0xff]
                %236 = vst [vmem:[%s206 + $0x70] sm:$0xff] %v235
                %v237 = vld [vmem:[%s205 + $0xe8] sm:$0xff]
                %238 = vst [vmem:[%s206 + $0x78] sm:$0xff] %v237
                %v239 = vld [vmem:[%s205 + $0x100] sm:$0xff]
                %240 = vst [vmem:[%s206 + $0x80] sm:$0xff] %v239
                %v241 = vld [vmem:[%s205 + $0x108] sm:$0xff]
                %242 = vst [vmem:[%s206 + $0x88] sm:$0xff] %v241
                %v243 = vld [vmem:[%s205 + $0x120] sm:$0xff]
                %244 = vst [vmem:[%s206 + $0x90] sm:$0xff] %v243
                %v245 = vld [vmem:[%s205 + $0x128] sm:$0xff]
                %246 = vst [vmem:[%s206 + $0x98] sm:$0xff] %v245
                %v247 = vld [vmem:[%s205 + $0x140] sm:$0xff]
                %248 = vst [vmem:[%s206 + $0xa0] sm:$0xff] %v247
                %v249 = vld [vmem:[%s205 + $0x148] sm:$0xff]
                %250 = vst [vmem:[%s206 + $0xa8] sm:$0xff] %v249
                %v251 = vld [vmem:[%s205 + $0x160] sm:$0xff]
                %252 = vst [vmem:[%s206 + $0xb0] sm:$0xff] %v251
                %v253 = vld [vmem:[%s205 + $0x168] sm:$0xff]
                %254 = vst [vmem:[%s206 + $0xb8] sm:$0xff] %v253
                %v255 = vld [vmem:[%s205 + $0x180] sm:$0xff]
                %256 = vst [vmem:[%s206 + $0xc0] sm:$0xff] %v255
                %v257 = vld [vmem:[%s205 + $0x188] sm:$0xff]
                %258 = vst [vmem:[%s206 + $0xc8] sm:$0xff] %v257
                %v259 = vld [vmem:[%s205 + $0x1a0] sm:$0xff]
                %260 = vst [vmem:[%s206 + $0xd0] sm:$0xff] %v259
                %v261 = vld [vmem:[%s205 + $0x1a8] sm:$0xff]
                %262 = vst [vmem:[%s206 + $0xd8] sm:$0xff] %v261
                %v263 = vld [vmem:[%s205 + $0x1c0] sm:$0xff]
                %264 = vst [vmem:[%s206 + $0xe0] sm:$0xff] %v263
                %v265 = vld [vmem:[%s205 + $0x1c8] sm:$0xff]
                %266 = vst [vmem:[%s206 + $0xe8] sm:$0xff] %v265
                %v267 = vld [vmem:[%s205 + $0x1e0] sm:$0xff]
                %268 = vst [vmem:[%s206 + $0xf0] sm:$0xff] %v267
                %v269 = vld [vmem:[%s205 + $0x1e8] sm:$0xff]
                %270 = vst [vmem:[%s206 + $0xf8] sm:$0xff] %v269
                %v271 = vld [vmem:[%s205 + $0x200] sm:$0xff]
                %272 = vst [vmem:[%s206 + $0x100] sm:$0xff] %v271
                %v273 = vld [vmem:[%s205 + $0x208] sm:$0xff]
                %274 = vst [vmem:[%s206 + $0x108] sm:$0xff] %v273
                %v275 = vld [vmem:[%s205 + $0x220] sm:$0xff]
                %276 = vst [vmem:[%s206 + $0x110] sm:$0xff] %v275
                %v277 = vld [vmem:[%s205 + $0x228] sm:$0xff]
                %278 = vst [vmem:[%s206 + $0x118] sm:$0xff] %v277
                %v279 = vld [vmem:[%s205 + $0x240] sm:$0xff]
                %280 = vst [vmem:[%s206 + $0x120] sm:$0xff] %v279
                %v281 = vld [vmem:[%s205 + $0x248] sm:$0xff]
                %282 = vst [vmem:[%s206 + $0x128] sm:$0xff] %v281
                %v283 = vld [vmem:[%s205 + $0x260] sm:$0xff]
                %284 = vst [vmem:[%s206 + $0x130] sm:$0xff] %v283
                %v285 = vld [vmem:[%s205 + $0x268] sm:$0xff]
                %286 = vst [vmem:[%s206 + $0x138] sm:$0xff] %v285
                %v287 = vld [vmem:[%s205 + $0x280] sm:$0xff]
                %288 = vst [vmem:[%s206 + $0x140] sm:$0xff] %v287
                %v289 = vld [vmem:[%s205 + $0x288] sm:$0xff]
                %290 = vst [vmem:[%s206 + $0x148] sm:$0xff] %v289
                %v291 = vld [vmem:[%s205 + $0x2a0] sm:$0xff]
                %292 = vst [vmem:[%s206 + $0x150] sm:$0xff] %v291
                %v293 = vld [vmem:[%s205 + $0x2a8] sm:$0xff]
                %294 = vst [vmem:[%s206 + $0x158] sm:$0xff] %v293
                %v295 = vld [vmem:[%s205 + $0x2c0] sm:$0xff]
                %296 = vst [vmem:[%s206 + $0x160] sm:$0xff] %v295
                %v297 = vld [vmem:[%s205 + $0x2c8] sm:$0xff]
                %298 = vst [vmem:[%s206 + $0x168] sm:$0xff] %v297
                %v299 = vld [vmem:[%s205 + $0x2e0] sm:$0xff]
                %300 = vst [vmem:[%s206 + $0x170] sm:$0xff] %v299
                %v301 = vld [vmem:[%s205 + $0x2e8] sm:$0xff]
                %302 = vst [vmem:[%s206 + $0x178] sm:$0xff] %v301
                %v303 = vld [vmem:[%s205 + $0x300] sm:$0xff]
                %304 = vst [vmem:[%s206 + $0x180] sm:$0xff] %v303
                %v305 = vld [vmem:[%s205 + $0x308] sm:$0xff]
                %306 = vst [vmem:[%s206 + $0x188] sm:$0xff] %v305
                %v307 = vld [vmem:[%s205 + $0x320] sm:$0xff]
                %308 = vst [vmem:[%s206 + $0x190] sm:$0xff] %v307
                %v309 = vld [vmem:[%s205 + $0x328] sm:$0xff]
                %310 = vst [vmem:[%s206 + $0x198] sm:$0xff] %v309
                %v311 = vld [vmem:[%s205 + $0x340] sm:$0xff]
                %312 = vst [vmem:[%s206 + $0x1a0] sm:$0xff] %v311
                %v313 = vld [vmem:[%s205 + $0x348] sm:$0xff]
                %314 = vst [vmem:[%s206 + $0x1a8] sm:$0xff] %v313
                %v315 = vld [vmem:[%s205 + $0x360] sm:$0xff]
                %316 = vst [vmem:[%s206 + $0x1b0] sm:$0xff] %v315
                %v317 = vld [vmem:[%s205 + $0x368] sm:$0xff]
                %318 = vst [vmem:[%s206 + $0x1b8] sm:$0xff] %v317
                %v319 = vld [vmem:[%s205 + $0x380] sm:$0xff]
                %320 = vst [vmem:[%s206 + $0x1c0] sm:$0xff] %v319
                %v321 = vld [vmem:[%s205 + $0x388] sm:$0xff]
                %322 = vst [vmem:[%s206 + $0x1c8] sm:$0xff] %v321
                %v323 = vld [vmem:[%s205 + $0x3a0] sm:$0xff]
                %324 = vst [vmem:[%s206 + $0x1d0] sm:$0xff] %v323
                %v325 = vld [vmem:[%s205 + $0x3a8] sm:$0xff]
                %326 = vst [vmem:[%s206 + $0x1d8] sm:$0xff] %v325
                %v327 = vld [vmem:[%s205 + $0x3c0] sm:$0xff]
                %328 = vst [vmem:[%s206 + $0x1e0] sm:$0xff] %v327
                %v329 = vld [vmem:[%s205 + $0x3c8] sm:$0xff]
                %330 = vst [vmem:[%s206 + $0x1e8] sm:$0xff] %v329
                %v331 = vld [vmem:[%s205 + $0x3e0] sm:$0xff]
                %332 = vst [vmem:[%s206 + $0x1f0] sm:$0xff] %v331
                %v333 = vld [vmem:[%s205 + $0x3e8] sm:$0xff]
                %334 = vst [vmem:[%s206 + $0x1f8] sm:$0xff] %v333
                %v335 = vld [vmem:[%s205 + $0x400] sm:$0xff]
                %336 = vst [vmem:[%s206 + $0x200] sm:$0xff] %v335
                %v337 = vld [vmem:[%s205 + $0x408] sm:$0xff]
                %338 = vst [vmem:[%s206 + $0x208] sm:$0xff] %v337
                %v339 = vld [vmem:[%s205 + $0x420] sm:$0xff]
                %340 = vst [vmem:[%s206 + $0x210] sm:$0xff] %v339
                %v341 = vld [vmem:[%s205 + $0x428] sm:$0xff]
                %342 = vst [vmem:[%s206 + $0x218] sm:$0xff] %v341
                %v343 = vld [vmem:[%s205 + $0x440] sm:$0xff]
                %344 = vst [vmem:[%s206 + $0x220] sm:$0xff] %v343
                %v345 = vld [vmem:[%s205 + $0x448] sm:$0xff]
                %346 = vst [vmem:[%s206 + $0x228] sm:$0xff] %v345
                %v347 = vld [vmem:[%s205 + $0x460] sm:$0xff]
                %348 = vst [vmem:[%s206 + $0x230] sm:$0xff] %v347
                %v349 = vld [vmem:[%s205 + $0x468] sm:$0xff]
                %350 = vst [vmem:[%s206 + $0x238] sm:$0xff] %v349
                %v351 = vld [vmem:[%s205 + $0x480] sm:$0xff]
                %352 = vst [vmem:[%s206 + $0x240] sm:$0xff] %v351
                %v353 = vld [vmem:[%s205 + $0x488] sm:$0xff]
                %354 = vst [vmem:[%s206 + $0x248] sm:$0xff] %v353
                %v355 = vld [vmem:[%s205 + $0x4a0] sm:$0xff]
                %356 = vst [vmem:[%s206 + $0x250] sm:$0xff] %v355
                %v357 = vld [vmem:[%s205 + $0x4a8] sm:$0xff]
                %358 = vst [vmem:[%s206 + $0x258] sm:$0xff] %v357
                %v359 = vld [vmem:[%s205 + $0x4c0] sm:$0xff]
                %360 = vst [vmem:[%s206 + $0x260] sm:$0xff] %v359
                %v361 = vld [vmem:[%s205 + $0x4c8] sm:$0xff]
                %362 = vst [vmem:[%s206 + $0x268] sm:$0xff] %v361
                %v363 = vld [vmem:[%s205 + $0x4e0] sm:$0xff]
                %364 = vst [vmem:[%s206 + $0x270] sm:$0xff] %v363
                %v365 = vld [vmem:[%s205 + $0x4e8] sm:$0xff]
                %366 = vst [vmem:[%s206 + $0x278] sm:$0xff] %v365
                %v367 = vld [vmem:[%s205 + $0x500] sm:$0xff]
                %368 = vst [vmem:[%s206 + $0x280] sm:$0xff] %v367
                %v369 = vld [vmem:[%s205 + $0x508] sm:$0xff]
                %370 = vst [vmem:[%s206 + $0x288] sm:$0xff] %v369
                %v371 = vld [vmem:[%s205 + $0x520] sm:$0xff]
                %372 = vst [vmem:[%s206 + $0x290] sm:$0xff] %v371
                %v373 = vld [vmem:[%s205 + $0x528] sm:$0xff]
                %374 = vst [vmem:[%s206 + $0x298] sm:$0xff] %v373
                %v375 = vld [vmem:[%s205 + $0x540] sm:$0xff]
                %376 = vst [vmem:[%s206 + $0x2a0] sm:$0xff] %v375
                %v377 = vld [vmem:[%s205 + $0x548] sm:$0xff]
                %378 = vst [vmem:[%s206 + $0x2a8] sm:$0xff] %v377
                %v379 = vld [vmem:[%s205 + $0x560] sm:$0xff]
                %380 = vst [vmem:[%s206 + $0x2b0] sm:$0xff] %v379
                %v381 = vld [vmem:[%s205 + $0x568] sm:$0xff]
                %382 = vst [vmem:[%s206 + $0x2b8] sm:$0xff] %v381
                %v383 = vld [vmem:[%s205 + $0x580] sm:$0xff]
                %384 = vst [vmem:[%s206 + $0x2c0] sm:$0xff] %v383
                %v385 = vld [vmem:[%s205 + $0x588] sm:$0xff]
                %386 = vst [vmem:[%s206 + $0x2c8] sm:$0xff] %v385
                %v387 = vld [vmem:[%s205 + $0x5a0] sm:$0xff]
                %388 = vst [vmem:[%s206 + $0x2d0] sm:$0xff] %v387
                %v389 = vld [vmem:[%s205 + $0x5a8] sm:$0xff]
                %390 = vst [vmem:[%s206 + $0x2d8] sm:$0xff] %v389
                %v391 = vld [vmem:[%s205 + $0x5c0] sm:$0xff]
                %392 = vst [vmem:[%s206 + $0x2e0] sm:$0xff] %v391
                %v393 = vld [vmem:[%s205 + $0x5c8] sm:$0xff]
                %394 = vst [vmem:[%s206 + $0x2e8] sm:$0xff] %v393
                %v395 = vld [vmem:[%s205 + $0x5e0] sm:$0xff]
                %396 = vst [vmem:[%s206 + $0x2f0] sm:$0xff] %v395
                %v397 = vld [vmem:[%s205 + $0x5e8] sm:$0xff]
                %398 = vst [vmem:[%s206 + $0x2f8] sm:$0xff] %v397
                %v399 = vld [vmem:[%s205 + $0x600] sm:$0xff]
                %400 = vst [vmem:[%s206 + $0x300] sm:$0xff] %v399
                %v401 = vld [vmem:[%s205 + $0x608] sm:$0xff]
                %402 = vst [vmem:[%s206 + $0x308] sm:$0xff] %v401
                %v403 = vld [vmem:[%s205 + $0x620] sm:$0xff]
                %404 = vst [vmem:[%s206 + $0x310] sm:$0xff] %v403
                %v405 = vld [vmem:[%s205 + $0x628] sm:$0xff]
                %406 = vst [vmem:[%s206 + $0x318] sm:$0xff] %v405
                %v407 = vld [vmem:[%s205 + $0x640] sm:$0xff]
                %408 = vst [vmem:[%s206 + $0x320] sm:$0xff] %v407
                %v409 = vld [vmem:[%s205 + $0x648] sm:$0xff]
                %410 = vst [vmem:[%s206 + $0x328] sm:$0xff] %v409
                %v411 = vld [vmem:[%s205 + $0x660] sm:$0xff]
                %412 = vst [vmem:[%s206 + $0x330] sm:$0xff] %v411
                %v413 = vld [vmem:[%s205 + $0x668] sm:$0xff]
                %414 = vst [vmem:[%s206 + $0x338] sm:$0xff] %v413
                %v415 = vld [vmem:[%s205 + $0x680] sm:$0xff]
                %416 = vst [vmem:[%s206 + $0x340] sm:$0xff] %v415
                %v417 = vld [vmem:[%s205 + $0x688] sm:$0xff]
                %418 = vst [vmem:[%s206 + $0x348] sm:$0xff] %v417
                %v419 = vld [vmem:[%s205 + $0x6a0] sm:$0xff]
                %420 = vst [vmem:[%s206 + $0x350] sm:$0xff] %v419
                %v421 = vld [vmem:[%s205 + $0x6a8] sm:$0xff]
                %422 = vst [vmem:[%s206 + $0x358] sm:$0xff] %v421
                %v423 = vld [vmem:[%s205 + $0x6c0] sm:$0xff]
                %424 = vst [vmem:[%s206 + $0x360] sm:$0xff] %v423
                %v425 = vld [vmem:[%s205 + $0x6c8] sm:$0xff]
                %426 = vst [vmem:[%s206 + $0x368] sm:$0xff] %v425
                %v427 = vld [vmem:[%s205 + $0x6e0] sm:$0xff]
                %428 = vst [vmem:[%s206 + $0x370] sm:$0xff] %v427
                %v429 = vld [vmem:[%s205 + $0x6e8] sm:$0xff]
                %430 = vst [vmem:[%s206 + $0x378] sm:$0xff] %v429
                %v431 = vld [vmem:[%s205 + $0x700] sm:$0xff]
                %432 = vst [vmem:[%s206 + $0x380] sm:$0xff] %v431
                %v433 = vld [vmem:[%s205 + $0x708] sm:$0xff]
                %434 = vst [vmem:[%s206 + $0x388] sm:$0xff] %v433
                %v435 = vld [vmem:[%s205 + $0x720] sm:$0xff]
                %436 = vst [vmem:[%s206 + $0x390] sm:$0xff] %v435
                %v437 = vld [vmem:[%s205 + $0x728] sm:$0xff]
                %438 = vst [vmem:[%s206 + $0x398] sm:$0xff] %v437
                %v439 = vld [vmem:[%s205 + $0x740] sm:$0xff]
                %440 = vst [vmem:[%s206 + $0x3a0] sm:$0xff] %v439
                %v441 = vld [vmem:[%s205 + $0x748] sm:$0xff]
                %442 = vst [vmem:[%s206 + $0x3a8] sm:$0xff] %v441
                %v443 = vld [vmem:[%s205 + $0x760] sm:$0xff]
                %444 = vst [vmem:[%s206 + $0x3b0] sm:$0xff] %v443
                %v445 = vld [vmem:[%s205 + $0x768] sm:$0xff]
                %446 = vst [vmem:[%s206 + $0x3b8] sm:$0xff] %v445
                %v447 = vld [vmem:[%s205 + $0x780] sm:$0xff]
                %448 = vst [vmem:[%s206 + $0x3c0] sm:$0xff] %v447
                %v449 = vld [vmem:[%s205 + $0x788] sm:$0xff]
                %450 = vst [vmem:[%s206 + $0x3c8] sm:$0xff] %v449
                %v451 = vld [vmem:[%s205 + $0x7a0] sm:$0xff]
                %452 = vst [vmem:[%s206 + $0x3d0] sm:$0xff] %v451
                %v453 = vld [vmem:[%s205 + $0x7a8] sm:$0xff]
                %454 = vst [vmem:[%s206 + $0x3d8] sm:$0xff] %v453
                %v455 = vld [vmem:[%s205 + $0x7c0] sm:$0xff]
                %456 = vst [vmem:[%s206 + $0x3e0] sm:$0xff] %v455
                %v457 = vld [vmem:[%s205 + $0x7c8] sm:$0xff]
                %458 = vst [vmem:[%s206 + $0x3e8] sm:$0xff] %v457
                %v459 = vld [vmem:[%s205 + $0x7e0] sm:$0xff]
                %460 = vst [vmem:[%s206 + $0x3f0] sm:$0xff] %v459
                %v461 = vld [vmem:[%s205 + $0x7e8] sm:$0xff]
                %462 = vst [vmem:[%s206 + $0x3f8] sm:$0xff] %v461
                %v463 = vld [vmem:[%s205 + $0x800] sm:$0xff]
                %464 = vst [vmem:[%s206 + $0x400] sm:$0xff] %v463
                %v465 = vld [vmem:[%s205 + $0x808] sm:$0xff]
                %466 = vst [vmem:[%s206 + $0x408] sm:$0xff] %v465
                %v467 = vld [vmem:[%s205 + $0x820] sm:$0xff]
                %468 = vst [vmem:[%s206 + $0x410] sm:$0xff] %v467
                %v469 = vld [vmem:[%s205 + $0x828] sm:$0xff]
                %470 = vst [vmem:[%s206 + $0x418] sm:$0xff] %v469
                %v471 = vld [vmem:[%s205 + $0x840] sm:$0xff]
                %472 = vst [vmem:[%s206 + $0x420] sm:$0xff] %v471
                %v473 = vld [vmem:[%s205 + $0x848] sm:$0xff]
                %474 = vst [vmem:[%s206 + $0x428] sm:$0xff] %v473
                %v475 = vld [vmem:[%s205 + $0x860] sm:$0xff]
                %476 = vst [vmem:[%s206 + $0x430] sm:$0xff] %v475
                %v477 = vld [vmem:[%s205 + $0x868] sm:$0xff]
                %478 = vst [vmem:[%s206 + $0x438] sm:$0xff] %v477
                %v479 = vld [vmem:[%s205 + $0x880] sm:$0xff]
                %480 = vst [vmem:[%s206 + $0x440] sm:$0xff] %v479
                %v481 = vld [vmem:[%s205 + $0x888] sm:$0xff]
                %482 = vst [vmem:[%s206 + $0x448] sm:$0xff] %v481
                %v483 = vld [vmem:[%s205 + $0x8a0] sm:$0xff]
                %484 = vst [vmem:[%s206 + $0x450] sm:$0xff] %v483
                %v485 = vld [vmem:[%s205 + $0x8a8] sm:$0xff]
                %486 = vst [vmem:[%s206 + $0x458] sm:$0xff] %v485
                %v487 = vld [vmem:[%s205 + $0x8c0] sm:$0xff]
                %488 = vst [vmem:[%s206 + $0x460] sm:$0xff] %v487
                %v489 = vld [vmem:[%s205 + $0x8c8] sm:$0xff]
                %490 = vst [vmem:[%s206 + $0x468] sm:$0xff] %v489
                %v491 = vld [vmem:[%s205 + $0x8e0] sm:$0xff]
                %492 = vst [vmem:[%s206 + $0x470] sm:$0xff] %v491
                %v493 = vld [vmem:[%s205 + $0x8e8] sm:$0xff]
                %494 = vst [vmem:[%s206 + $0x478] sm:$0xff] %v493
                %v495 = vld [vmem:[%s205 + $0x900] sm:$0xff]
                %496 = vst [vmem:[%s206 + $0x480] sm:$0xff] %v495
                %v497 = vld [vmem:[%s205 + $0x908] sm:$0xff]
                %498 = vst [vmem:[%s206 + $0x488] sm:$0xff] %v497
                %v499 = vld [vmem:[%s205 + $0x920] sm:$0xff]
                %500 = vst [vmem:[%s206 + $0x490] sm:$0xff] %v499
                %v501 = vld [vmem:[%s205 + $0x928] sm:$0xff]
                %502 = vst [vmem:[%s206 + $0x498] sm:$0xff] %v501
                %v503 = vld [vmem:[%s205 + $0x940] sm:$0xff]
                %504 = vst [vmem:[%s206 + $0x4a0] sm:$0xff] %v503
                %v505 = vld [vmem:[%s205 + $0x948] sm:$0xff]
                %506 = vst [vmem:[%s206 + $0x4a8] sm:$0xff] %v505
                %v507 = vld [vmem:[%s205 + $0x960] sm:$0xff]
                %508 = vst [vmem:[%s206 + $0x4b0] sm:$0xff] %v507
                %v509 = vld [vmem:[%s205 + $0x968] sm:$0xff]
                %510 = vst [vmem:[%s206 + $0x4b8] sm:$0xff] %v509
                %v511 = vld [vmem:[%s205 + $0x980] sm:$0xff]
                %512 = vst [vmem:[%s206 + $0x4c0] sm:$0xff] %v511
                %v513 = vld [vmem:[%s205 + $0x988] sm:$0xff]
                %514 = vst [vmem:[%s206 + $0x4c8] sm:$0xff] %v513
                %v515 = vld [vmem:[%s205 + $0x9a0] sm:$0xff]
                %516 = vst [vmem:[%s206 + $0x4d0] sm:$0xff] %v515
                %v517 = vld [vmem:[%s205 + $0x9a8] sm:$0xff]
                %518 = vst [vmem:[%s206 + $0x4d8] sm:$0xff] %v517
                %v519 = vld [vmem:[%s205 + $0x9c0] sm:$0xff]
                %520 = vst [vmem:[%s206 + $0x4e0] sm:$0xff] %v519
                %v521 = vld [vmem:[%s205 + $0x9c8] sm:$0xff]
                %522 = vst [vmem:[%s206 + $0x4e8] sm:$0xff] %v521
                %v523 = vld [vmem:[%s205 + $0x9e0] sm:$0xff]
                %524 = vst [vmem:[%s206 + $0x4f0] sm:$0xff] %v523
                %v525 = vld [vmem:[%s205 + $0x9e8] sm:$0xff]
                %526 = vst [vmem:[%s206 + $0x4f8] sm:$0xff] %v525
                %v527 = vld [vmem:[%s205 + $0xa00] sm:$0xff]
                %528 = vst [vmem:[%s206 + $0x500] sm:$0xff] %v527
                %v529 = vld [vmem:[%s205 + $0xa08] sm:$0xff]
                %530 = vst [vmem:[%s206 + $0x508] sm:$0xff] %v529
                %v531 = vld [vmem:[%s205 + $0xa20] sm:$0xff]
                %532 = vst [vmem:[%s206 + $0x510] sm:$0xff] %v531
                %v533 = vld [vmem:[%s205 + $0xa28] sm:$0xff]
                %534 = vst [vmem:[%s206 + $0x518] sm:$0xff] %v533
                %v535 = vld [vmem:[%s205 + $0xa40] sm:$0xff]
                %536 = vst [vmem:[%s206 + $0x520] sm:$0xff] %v535
                %v537 = vld [vmem:[%s205 + $0xa48] sm:$0xff]
                %538 = vst [vmem:[%s206 + $0x528] sm:$0xff] %v537
                %v539 = vld [vmem:[%s205 + $0xa60] sm:$0xff]
                %540 = vst [vmem:[%s206 + $0x530] sm:$0xff] %v539
                %v541 = vld [vmem:[%s205 + $0xa68] sm:$0xff]
                %542 = vst [vmem:[%s206 + $0x538] sm:$0xff] %v541
                %v543 = vld [vmem:[%s205 + $0xa80] sm:$0xff]
                %544 = vst [vmem:[%s206 + $0x540] sm:$0xff] %v543
                %v545 = vld [vmem:[%s205 + $0xa88] sm:$0xff]
                %546 = vst [vmem:[%s206 + $0x548] sm:$0xff] %v545
                %v547 = vld [vmem:[%s205 + $0xaa0] sm:$0xff]
                %548 = vst [vmem:[%s206 + $0x550] sm:$0xff] %v547
                %v549 = vld [vmem:[%s205 + $0xaa8] sm:$0xff]
                %550 = vst [vmem:[%s206 + $0x558] sm:$0xff] %v549
                %v551 = vld [vmem:[%s205 + $0xac0] sm:$0xff]
                %552 = vst [vmem:[%s206 + $0x560] sm:$0xff] %v551
                %v553 = vld [vmem:[%s205 + $0xac8] sm:$0xff]
                %554 = vst [vmem:[%s206 + $0x568] sm:$0xff] %v553
                %v555 = vld [vmem:[%s205 + $0xae0] sm:$0xff]
                %556 = vst [vmem:[%s206 + $0x570] sm:$0xff] %v555
                %v557 = vld [vmem:[%s205 + $0xae8] sm:$0xff]
                %558 = vst [vmem:[%s206 + $0x578] sm:$0xff] %v557
                %v559 = vld [vmem:[%s205 + $0xb00] sm:$0xff]
                %560 = vst [vmem:[%s206 + $0x580] sm:$0xff] %v559
                %v561 = vld [vmem:[%s205 + $0xb08] sm:$0xff]
                %562 = vst [vmem:[%s206 + $0x588] sm:$0xff] %v561
                %v563 = vld [vmem:[%s205 + $0xb20] sm:$0xff]
                %564 = vst [vmem:[%s206 + $0x590] sm:$0xff] %v563
                %v565 = vld [vmem:[%s205 + $0xb28] sm:$0xff]
                %566 = vst [vmem:[%s206 + $0x598] sm:$0xff] %v565
                %v567 = vld [vmem:[%s205 + $0xb40] sm:$0xff]
                %568 = vst [vmem:[%s206 + $0x5a0] sm:$0xff] %v567
                %v569 = vld [vmem:[%s205 + $0xb48] sm:$0xff]
                %570 = vst [vmem:[%s206 + $0x5a8] sm:$0xff] %v569
                %v571 = vld [vmem:[%s205 + $0xb60] sm:$0xff]
                %572 = vst [vmem:[%s206 + $0x5b0] sm:$0xff] %v571
                %v573 = vld [vmem:[%s205 + $0xb68] sm:$0xff]
                %574 = vst [vmem:[%s206 + $0x5b8] sm:$0xff] %v573
                %v575 = vld [vmem:[%s205 + $0xb80] sm:$0xff]
                %576 = vst [vmem:[%s206 + $0x5c0] sm:$0xff] %v575
                %v577 = vld [vmem:[%s205 + $0xb88] sm:$0xff]
                %578 = vst [vmem:[%s206 + $0x5c8] sm:$0xff] %v577
                %v579 = vld [vmem:[%s205 + $0xba0] sm:$0xff]
                %580 = vst [vmem:[%s206 + $0x5d0] sm:$0xff] %v579
                %v581 = vld [vmem:[%s205 + $0xba8] sm:$0xff]
                %582 = vst [vmem:[%s206 + $0x5d8] sm:$0xff] %v581
                %v583 = vld [vmem:[%s205 + $0xbc0] sm:$0xff]
                %584 = vst [vmem:[%s206 + $0x5e0] sm:$0xff] %v583
                %v585 = vld [vmem:[%s205 + $0xbc8] sm:$0xff]
                %586 = vst [vmem:[%s206 + $0x5e8] sm:$0xff] %v585
                %v587 = vld [vmem:[%s205 + $0xbe0] sm:$0xff]
                %588 = vst [vmem:[%s206 + $0x5f0] sm:$0xff] %v587
                %v589 = vld [vmem:[%s205 + $0xbe8] sm:$0xff]
                %590 = vst [vmem:[%s206 + $0x5f8] sm:$0xff] %v589
                %v591 = vld [vmem:[%s205 + $0xc00] sm:$0xff]
                %592 = vst [vmem:[%s206 + $0x600] sm:$0xff] %v591
                %v593 = vld [vmem:[%s205 + $0xc08] sm:$0xff]
                %594 = vst [vmem:[%s206 + $0x608] sm:$0xff] %v593
                %v595 = vld [vmem:[%s205 + $0xc20] sm:$0xff]
                %596 = vst [vmem:[%s206 + $0x610] sm:$0xff] %v595
                %v597 = vld [vmem:[%s205 + $0xc28] sm:$0xff]
                %598 = vst [vmem:[%s206 + $0x618] sm:$0xff] %v597
                %v599 = vld [vmem:[%s205 + $0xc40] sm:$0xff]
                %600 = vst [vmem:[%s206 + $0x620] sm:$0xff] %v599
                %v601 = vld [vmem:[%s205 + $0xc48] sm:$0xff]
                %602 = vst [vmem:[%s206 + $0x628] sm:$0xff] %v601
                %v603 = vld [vmem:[%s205 + $0xc60] sm:$0xff]
                %604 = vst [vmem:[%s206 + $0x630] sm:$0xff] %v603
                %v605 = vld [vmem:[%s205 + $0xc68] sm:$0xff]
                %606 = vst [vmem:[%s206 + $0x638] sm:$0xff] %v605
                %v607 = vld [vmem:[%s205 + $0xc80] sm:$0xff]
                %608 = vst [vmem:[%s206 + $0x640] sm:$0xff] %v607
                %v609 = vld [vmem:[%s205 + $0xc88] sm:$0xff]
                %610 = vst [vmem:[%s206 + $0x648] sm:$0xff] %v609
                %v611 = vld [vmem:[%s205 + $0xca0] sm:$0xff]
                %612 = vst [vmem:[%s206 + $0x650] sm:$0xff] %v611
                %v613 = vld [vmem:[%s205 + $0xca8] sm:$0xff]
                %614 = vst [vmem:[%s206 + $0x658] sm:$0xff] %v613
                %v615 = vld [vmem:[%s205 + $0xcc0] sm:$0xff]
                %616 = vst [vmem:[%s206 + $0x660] sm:$0xff] %v615
                %v617 = vld [vmem:[%s205 + $0xcc8] sm:$0xff]
                %618 = vst [vmem:[%s206 + $0x668] sm:$0xff] %v617
                %v619 = vld [vmem:[%s205 + $0xce0] sm:$0xff]
                %620 = vst [vmem:[%s206 + $0x670] sm:$0xff] %v619
                %v621 = vld [vmem:[%s205 + $0xce8] sm:$0xff]
                %622 = vst [vmem:[%s206 + $0x678] sm:$0xff] %v621
                %v623 = vld [vmem:[%s205 + $0xd00] sm:$0xff]
                %624 = vst [vmem:[%s206 + $0x680] sm:$0xff] %v623
                %v625 = vld [vmem:[%s205 + $0xd08] sm:$0xff]
                %626 = vst [vmem:[%s206 + $0x688] sm:$0xff] %v625
                %v627 = vld [vmem:[%s205 + $0xd20] sm:$0xff]
                %628 = vst [vmem:[%s206 + $0x690] sm:$0xff] %v627
                %v629 = vld [vmem:[%s205 + $0xd28] sm:$0xff]
                %630 = vst [vmem:[%s206 + $0x698] sm:$0xff] %v629
                %v631 = vld [vmem:[%s205 + $0xd40] sm:$0xff]
                %632 = vst [vmem:[%s206 + $0x6a0] sm:$0xff] %v631
                %v633 = vld [vmem:[%s205 + $0xd48] sm:$0xff]
                %634 = vst [vmem:[%s206 + $0x6a8] sm:$0xff] %v633
                %v635 = vld [vmem:[%s205 + $0xd60] sm:$0xff]
                %636 = vst [vmem:[%s206 + $0x6b0] sm:$0xff] %v635
                %v637 = vld [vmem:[%s205 + $0xd68] sm:$0xff]
                %638 = vst [vmem:[%s206 + $0x6b8] sm:$0xff] %v637
                %v639 = vld [vmem:[%s205 + $0xd80] sm:$0xff]
                %640 = vst [vmem:[%s206 + $0x6c0] sm:$0xff] %v639
                %v641 = vld [vmem:[%s205 + $0xd88] sm:$0xff]
                %642 = vst [vmem:[%s206 + $0x6c8] sm:$0xff] %v641
                %v643 = vld [vmem:[%s205 + $0xda0] sm:$0xff]
                %644 = vst [vmem:[%s206 + $0x6d0] sm:$0xff] %v643
                %v645 = vld [vmem:[%s205 + $0xda8] sm:$0xff]
                %646 = vst [vmem:[%s206 + $0x6d8] sm:$0xff] %v645
                %v647 = vld [vmem:[%s205 + $0xdc0] sm:$0xff]
                %648 = vst [vmem:[%s206 + $0x6e0] sm:$0xff] %v647
                %v649 = vld [vmem:[%s205 + $0xdc8] sm:$0xff]
                %650 = vst [vmem:[%s206 + $0x6e8] sm:$0xff] %v649
                %v651 = vld [vmem:[%s205 + $0xde0] sm:$0xff]
                %652 = vst [vmem:[%s206 + $0x6f0] sm:$0xff] %v651
                %v653 = vld [vmem:[%s205 + $0xde8] sm:$0xff]
                %654 = vst [vmem:[%s206 + $0x6f8] sm:$0xff] %v653
              $region37: #{encoder_forward.6} parent=31 // loop_footer
                %s204 = sadd.s32 1, %s200
              $region38: #{encoder_forward.6} parent=31 // loop_footer_branch
                %199 = sbr.rel target = $region34
              $region39: #{encoder_forward.6} parent=31 // loop_exit
                _
            $region32: #{encoder_forward.6} parent=27 // pred_fallthru
              _
            // Predicated region
            $region40: #{encoder_forward.6} parent=27 // pred_check
              _
            $region41: #{encoder_forward.6} parent=27 // pred_check_branch
              %656 = sbr.rel target = $region43
            $region42: #{encoder_forward.6} parent=27 // pred_region
              _
            $region43: #{encoder_forward.6} parent=27 // pred_fallthru
              _
          $region28: #{encoder_forward.6} parent=23 // pred_fallthru
            _
          %657 = vnop
        $region24: #{encoder_forward.6} parent=15 // pred_fallthru
          _
        // Predicated region
        $region44: #{encoder_forward.6} parent=15 // pred_check
          %p658 = pneg %p96
        $region45: #{encoder_forward.6} parent=15 // pred_check_branch
          %660 = sbr.rel (%p658) target = $region47
        $region46: #{encoder_forward.6} parent=15 // pred_region
          %s661 = smul.u32 4, %s17
          %p662 = scmp.lt.s32.totalorder %s661, 7
          %s663 = scalar_select %p662, %s661, 7
          %s664 = scalar_lea.vmem %s2, %s663
          %s665 = smul.u32 4, %s17
        $region47: #{encoder_forward.6} parent=15 // pred_fallthru
          _
        // Predicated region
        $region48: #{encoder_forward.6} parent=15 // pred_check
          %p666 = pneg %p122
        $region49: #{encoder_forward.6} parent=15 // pred_check_branch
          %668 = sbr.rel (%p666) target = $region51
        $region50: #{encoder_forward.6} parent=15 // pred_region
          %s669 = smul.u32 4, %s17
          %p670 = scmp.lt.s32.totalorder %s669, 7
          %s671 = scalar_select %p670, %s669, 7
          %s672 = scalar_lea.vmem %s3, %s671
          %s673 = smul.u32 4, %s17
        $region51: #{encoder_forward.6} parent=15 // pred_fallthru
          _
      $region16: #{encoder_forward.6} parent=5 // pred_fallthru
        _
      %p674 = scmp.le.s32.totalorder 1, %s10
      %p675 = scmp.lt.s32.totalorder %s10, 15
      %p676 = pnand %p674, %p675
      %p677 = pneg %p676
      // Predicated region
      $region52: #{encoder_forward.6} parent=5 // pred_check
        _
      $region53: #{encoder_forward.6} parent=5 // pred_check_branch
        %679 = sbr.rel (%p676) target = $region55
      $region54: #{encoder_forward.6} parent=5 // pred_region
        %s680 = ssub.s32 %s10, 1
        %s681 = sand.u32 %s63, 1
        %s682 = sand.u32 %s63, 1
        %s683 = smul.addr %s682, 1792
        %s684 = scalar_lea.vmem [#allocation2], %s683
        // Predicated region
        $region56: #{encoder_forward.6} parent=54 // pred_check
          %p685 = pneg %p76
        $region57: #{encoder_forward.6} parent=54 // pred_check_branch
          %687 = sbr.rel (%p685) target = $region59
        $region58: #{encoder_forward.6} parent=54 // pred_region
          _
        $region59: #{encoder_forward.6} parent=54 // pred_fallthru
          _
        %s688 = smul.u32 7, %s20
        %p689 = scmp.lt.s32.totalorder %s688, 48
        %s690 = scalar_select %p689, %s688, 48
        %s691 = smul.addr %s690, 4
        %s692 = scalar_lea.vmem %s0, %s691
        %p693 = pneg %p48
        %p694 = pneg %p45
        %s695 = sand.u32 %s63, 1
        %s696 = sand.u32 %s63, 1
        %s697 = smul.addr %s696, 1792
        %s698 = scalar_lea.vmem [#allocation2], %s697
        %p699 = pneg %p76
        %p700 = pneg %p73
        %s701 = smul.u32 4, %s19
        %p702 = scmp.lt.s32.totalorder %s701, 7
        %s703 = scalar_select %p702, %s701, 7
        %s704 = scalar_lea.vmem %s2, %s703
        %p705 = pneg %p102
        %p706 = pneg %p99
        %s707 = smul.u32 4, %s19
        %p708 = scmp.lt.s32.totalorder %s707, 7
        %s709 = scalar_select %p708, %s707, 7
        %s710 = scalar_lea.vmem %s3, %s709
        %p711 = pneg %p128
        %p712 = pneg %p125
        %p713 = pneg %p154
        %p714 = pneg %p151
        %s715 = smul.u32 4, %s19
        %p716 = scmp.lt.s32.totalorder %s715, 7
        %s717 = scalar_select %p716, %s715, 7
        %s718 = smul.addr %s717, 8
        %s719 = scalar_lea.vmem %s4, %s718
        %s720 = smul.u32 7, %s20
        %p721 = scmp.lt.s32.totalorder %s720, 48
        %s722 = scalar_select %p721, %s720, 48
        %s723 = smul.addr %s722, 4
        %s724 = scalar_lea.vmem %s0, %s723
        %s725 = smul.u32 7, %s20
        %s726 = smul.u32 112, %s20
        %s727 = smul.u32 4, %s19
        %s728 = smul.u32 4, %s19
        %p729 = scmp.lt.s32.totalorder %s728, 7
        %s730 = scalar_select %p729, %s728, 7
        %s731 = scalar_lea.vmem %s2, %s730
        %s732 = smul.u32 4, %s19
        %s733 = smul.u32 4, %s19
        %p734 = scmp.lt.s32.totalorder %s733, 7
        %s735 = scalar_select %p734, %s733, 7
        %s736 = scalar_lea.vmem %s3, %s735
        %s737 = smul.u32 4, %s19
        %s738 = smul.u32 4, %s19
        %p739 = scmp.lt.s32.totalorder %s738, 7
        %s740 = scalar_select %p739, %s738, 7
        %s741 = smul.addr %s740, 8
        %s742 = scalar_lea.vmem %s4, %s741
        %s743 = smul.u32 4, %s19
        %p745 = scmp.eq.s32.totalorder %s20, 0
        // Predicated region
        $region60: #{encoder_forward.6} parent=54 // pred_check
          %p746 = pneg %p745
        $region61: #{encoder_forward.6} parent=54 // pred_check_branch
          %748 = sbr.rel (%p746) target = $region63
        $region62: #{encoder_forward.6} parent=54 // pred_region
          %749 = vst [vmem:[%s742] sm:$0xff] 0.0
          %750 = vst [vmem:[%s742 + $0x8] sm:$0xff] 0.0
          %751 = vst [vmem:[%s742 + $0x10] sm:$0xff] 0.0
          %752 = vst [vmem:[%s742 + $0x18] sm:$0xff] 0.0
        $region63: #{encoder_forward.6} parent=54 // pred_fallthru
          _
        %v753 = vld [vmem:[%s742] sm:$0xff]
        %v754 = vld [vmem:[%s742 + $0x8] sm:$0xff]
        %v755 = vld [vmem:[%s742 + $0x10] sm:$0xff]
        %v756 = vld [vmem:[%s742 + $0x18] sm:$0xff]
        %v757 = vld [vmem:[%s724] sm:$0xff]
        %v758 = vld [vmem:[%s724 + $0x8] sm:$0xff]
        %v759 = vld [vmem:[%s724 + $0x10] sm:$0xff]
        %v760 = vld [vmem:[%s724 + $0x18] sm:$0xf]
        %v761 = vld [vmem:[%s684] sm:$0xff]
        %v762 = vld [vmem:[%s684 + $0x8] sm:$0xff]
        %v763 = vld [vmem:[%s684 + $0x10] sm:$0xff]
        %v764 = vld [vmem:[%s684 + $0x18] sm:$0xff]
        %v765 = vld [vmem:[%s684 + $0x20] sm:$0xff]
        %v766 = vld [vmem:[%s684 + $0x28] sm:$0xff]
        %v767 = vld [vmem:[%s684 + $0x30] sm:$0xff]
        %v768 = vld [vmem:[%s684 + $0x38] sm:$0xff]
        %v769 = vld [vmem:[%s684 + $0x40] sm:$0xff]
        %v770 = vld [vmem:[%s684 + $0x48] sm:$0xff]
        %v771 = vld [vmem:[%s684 + $0x50] sm:$0xff]
        %v772 = vld [vmem:[%s684 + $0x58] sm:$0xff]
        %v773 = vld [vmem:[%s684 + $0x60] sm:$0xff]
        %v774 = vld [vmem:[%s684 + $0x68] sm:$0xff]
        %v775 = vld [vmem:[%s684 + $0x70] sm:$0xff]
        %v776 = vld [vmem:[%s684 + $0x78] sm:$0xff]
        %v777 = vld [vmem:[%s684 + $0x80] sm:$0xff]
        %v778 = vld [vmem:[%s684 + $0x88] sm:$0xff]
        %v779 = vld [vmem:[%s684 + $0x90] sm:$0xff]
        %v780 = vld [vmem:[%s684 + $0x98] sm:$0xff]
        %v781 = vld [vmem:[%s684 + $0xa0] sm:$0xff]
        %v782 = vld [vmem:[%s684 + $0xa8] sm:$0xff]
        %v783 = vld [vmem:[%s684 + $0xb0] sm:$0xff]
        %v784 = vld [vmem:[%s684 + $0xb8] sm:$0xff]
        %v785 = vld [vmem:[%s684 + $0xc0] sm:$0xff]
        %v786 = vld [vmem:[%s684 + $0xc8] sm:$0xff]
        %v787 = vld [vmem:[%s684 + $0xd0] sm:$0xff]
        %v788 = vld [vmem:[%s684 + $0xd8] sm:$0xff]
        %v789 = vld [vmem:[%s684 + $0xe0] sm:$0xff]
        %v790 = vld [vmem:[%s684 + $0xe8] sm:$0xff]
        %v791 = vld [vmem:[%s684 + $0xf0] sm:$0xff]
        %v792 = vld [vmem:[%s684 + $0xf8] sm:$0xff]
        %v793 = vld [vmem:[%s684 + $0x100] sm:$0xff]
        %v794 = vld [vmem:[%s684 + $0x108] sm:$0xff]
        %v795 = vld [vmem:[%s684 + $0x110] sm:$0xff]
        %v796 = vld [vmem:[%s684 + $0x118] sm:$0xff]
        %v797 = vld [vmem:[%s684 + $0x120] sm:$0xff]
        %v798 = vld [vmem:[%s684 + $0x128] sm:$0xff]
        %v799 = vld [vmem:[%s684 + $0x130] sm:$0xff]
        %v800 = vld [vmem:[%s684 + $0x138] sm:$0xff]
        %v801 = vld [vmem:[%s684 + $0x140] sm:$0xff]
        %v802 = vld [vmem:[%s684 + $0x148] sm:$0xff]
        %v803 = vld [vmem:[%s684 + $0x150] sm:$0xff]
        %v804 = vld [vmem:[%s684 + $0x158] sm:$0xff]
        %v805 = vld [vmem:[%s684 + $0x160] sm:$0xff]
        %v806 = vld [vmem:[%s684 + $0x168] sm:$0xff]
        %v807 = vld [vmem:[%s684 + $0x170] sm:$0xff]
        %v808 = vld [vmem:[%s684 + $0x178] sm:$0xff]
        %v809 = vld [vmem:[%s684 + $0x180] sm:$0xff]
        %v810 = vld [vmem:[%s684 + $0x188] sm:$0xff]
        %v811 = vld [vmem:[%s684 + $0x190] sm:$0xff]
        %v812 = vld [vmem:[%s684 + $0x198] sm:$0xff]
        %v813 = vld [vmem:[%s684 + $0x1a0] sm:$0xff]
        %v814 = vld [vmem:[%s684 + $0x1a8] sm:$0xff]
        %v815 = vld [vmem:[%s684 + $0x1b0] sm:$0xff]
        %v816 = vld [vmem:[%s684 + $0x1b8] sm:$0xff]
        %v817 = vld [vmem:[%s684 + $0x1c0] sm:$0xff]
        %v818 = vld [vmem:[%s684 + $0x1c8] sm:$0xff]
        %v819 = vld [vmem:[%s684 + $0x1d0] sm:$0xff]
        %v820 = vld [vmem:[%s684 + $0x1d8] sm:$0xff]
        %v821 = vld [vmem:[%s684 + $0x1e0] sm:$0xff]
        %v822 = vld [vmem:[%s684 + $0x1e8] sm:$0xff]
        %v823 = vld [vmem:[%s684 + $0x1f0] sm:$0xff]
        %v824 = vld [vmem:[%s684 + $0x1f8] sm:$0xff]
        %v825 = vld [vmem:[%s684 + $0x200] sm:$0xff]
        %v826 = vld [vmem:[%s684 + $0x208] sm:$0xff]
        %v827 = vld [vmem:[%s684 + $0x210] sm:$0xff]
        %v828 = vld [vmem:[%s684 + $0x218] sm:$0xff]
        %v829 = vld [vmem:[%s684 + $0x220] sm:$0xff]
        %v830 = vld [vmem:[%s684 + $0x228] sm:$0xff]
        %v831 = vld [vmem:[%s684 + $0x230] sm:$0xff]
        %v832 = vld [vmem:[%s684 + $0x238] sm:$0xff]
        %v833 = vld [vmem:[%s684 + $0x240] sm:$0xff]
        %v834 = vld [vmem:[%s684 + $0x248] sm:$0xff]
        %v835 = vld [vmem:[%s684 + $0x250] sm:$0xff]
        %v836 = vld [vmem:[%s684 + $0x258] sm:$0xff]
        %v837 = vld [vmem:[%s684 + $0x260] sm:$0xff]
        %v838 = vld [vmem:[%s684 + $0x268] sm:$0xff]
        %v839 = vld [vmem:[%s684 + $0x270] sm:$0xff]
        %v840 = vld [vmem:[%s684 + $0x278] sm:$0xff]
        %v841 = vld [vmem:[%s684 + $0x280] sm:$0xff]
        %v842 = vld [vmem:[%s684 + $0x288] sm:$0xff]
        %v843 = vld [vmem:[%s684 + $0x290] sm:$0xff]
        %v844 = vld [vmem:[%s684 + $0x298] sm:$0xff]
        %v845 = vld [vmem:[%s684 + $0x2a0] sm:$0xff]
        %v846 = vld [vmem:[%s684 + $0x2a8] sm:$0xff]
        %v847 = vld [vmem:[%s684 + $0x2b0] sm:$0xff]
        %v848 = vld [vmem:[%s684 + $0x2b8] sm:$0xff]
        %v849 = vld [vmem:[%s684 + $0x2c0] sm:$0xff]
        %v850 = vld [vmem:[%s684 + $0x2c8] sm:$0xff]
        %v851 = vld [vmem:[%s684 + $0x2d0] sm:$0xff]
        %v852 = vld [vmem:[%s684 + $0x2d8] sm:$0xff]
        %v853 = vld [vmem:[%s684 + $0x2e0] sm:$0xff]
        %v854 = vld [vmem:[%s684 + $0x2e8] sm:$0xff]
        %v855 = vld [vmem:[%s684 + $0x2f0] sm:$0xff]
        %v856 = vld [vmem:[%s684 + $0x2f8] sm:$0xff]
        %v857 = vld [vmem:[%s684 + $0x300] sm:$0xff]
        %v858 = vld [vmem:[%s684 + $0x308] sm:$0xff]
        %v859 = vld [vmem:[%s684 + $0x310] sm:$0xff]
        %v860 = vld [vmem:[%s684 + $0x318] sm:$0xff]
        %v861 = vld [vmem:[%s684 + $0x320] sm:$0xff]
        %v862 = vld [vmem:[%s684 + $0x328] sm:$0xff]
        %v863 = vld [vmem:[%s684 + $0x330] sm:$0xff]
        %v864 = vld [vmem:[%s684 + $0x338] sm:$0xff]
        %v865 = vld [vmem:[%s684 + $0x340] sm:$0xff]
        %v866 = vld [vmem:[%s684 + $0x348] sm:$0xff]
        %v867 = vld [vmem:[%s684 + $0x350] sm:$0xff]
        %v868 = vld [vmem:[%s684 + $0x358] sm:$0xff]
        %v869 = vld [vmem:[%s684 + $0x360] sm:$0xff]
        %v870 = vld [vmem:[%s684 + $0x368] sm:$0xff]
        %v871 = vld [vmem:[%s684 + $0x370] sm:$0xff]
        %v872 = vld [vmem:[%s684 + $0x378] sm:$0xff]
        %v873 = vld [vmem:[%s684 + $0x380] sm:$0xff]
        %v874 = vld [vmem:[%s684 + $0x388] sm:$0xff]
        %v875 = vld [vmem:[%s684 + $0x390] sm:$0xff]
        %v876 = vld [vmem:[%s684 + $0x398] sm:$0xff]
        %v877 = vld [vmem:[%s684 + $0x3a0] sm:$0xff]
        %v878 = vld [vmem:[%s684 + $0x3a8] sm:$0xff]
        %v879 = vld [vmem:[%s684 + $0x3b0] sm:$0xff]
        %v880 = vld [vmem:[%s684 + $0x3b8] sm:$0xff]
        %v881 = vld [vmem:[%s684 + $0x3c0] sm:$0xff]
        %v882 = vld [vmem:[%s684 + $0x3c8] sm:$0xff]
        %v883 = vld [vmem:[%s684 + $0x3d0] sm:$0xff]
        %v884 = vld [vmem:[%s684 + $0x3d8] sm:$0xff]
        %v885 = vld [vmem:[%s684 + $0x3e0] sm:$0xff]
        %v886 = vld [vmem:[%s684 + $0x3e8] sm:$0xff]
        %v887 = vld [vmem:[%s684 + $0x3f0] sm:$0xff]
        %v888 = vld [vmem:[%s684 + $0x3f8] sm:$0xff]
        %v889 = vld [vmem:[%s684 + $0x400] sm:$0xff]
        %v890 = vld [vmem:[%s684 + $0x408] sm:$0xff]
        %v891 = vld [vmem:[%s684 + $0x410] sm:$0xff]
        %v892 = vld [vmem:[%s684 + $0x418] sm:$0xff]
        %v893 = vld [vmem:[%s684 + $0x420] sm:$0xff]
        %v894 = vld [vmem:[%s684 + $0x428] sm:$0xff]
        %v895 = vld [vmem:[%s684 + $0x430] sm:$0xff]
        %v896 = vld [vmem:[%s684 + $0x438] sm:$0xff]
        %v897 = vld [vmem:[%s684 + $0x440] sm:$0xff]
        %v898 = vld [vmem:[%s684 + $0x448] sm:$0xff]
        %v899 = vld [vmem:[%s684 + $0x450] sm:$0xff]
        %v900 = vld [vmem:[%s684 + $0x458] sm:$0xff]
        %v901 = vld [vmem:[%s684 + $0x460] sm:$0xff]
        %v902 = vld [vmem:[%s684 + $0x468] sm:$0xff]
        %v903 = vld [vmem:[%s684 + $0x470] sm:$0xff]
        %v904 = vld [vmem:[%s684 + $0x478] sm:$0xff]
        %v905 = vld [vmem:[%s684 + $0x480] sm:$0xff]
        %v906 = vld [vmem:[%s684 + $0x488] sm:$0xff]
        %v907 = vld [vmem:[%s684 + $0x490] sm:$0xff]
        %v908 = vld [vmem:[%s684 + $0x498] sm:$0xff]
        %v909 = vld [vmem:[%s684 + $0x4a0] sm:$0xff]
        %v910 = vld [vmem:[%s684 + $0x4a8] sm:$0xff]
        %v911 = vld [vmem:[%s684 + $0x4b0] sm:$0xff]
        %v912 = vld [vmem:[%s684 + $0x4b8] sm:$0xff]
        %v913 = vld [vmem:[%s684 + $0x4c0] sm:$0xff]
        %v914 = vld [vmem:[%s684 + $0x4c8] sm:$0xff]
        %v915 = vld [vmem:[%s684 + $0x4d0] sm:$0xff]
        %v916 = vld [vmem:[%s684 + $0x4d8] sm:$0xff]
        %v917 = vld [vmem:[%s684 + $0x4e0] sm:$0xff]
        %v918 = vld [vmem:[%s684 + $0x4e8] sm:$0xff]
        %v919 = vld [vmem:[%s684 + $0x4f0] sm:$0xff]
        %v920 = vld [vmem:[%s684 + $0x4f8] sm:$0xff]
        %v921 = vld [vmem:[%s684 + $0x500] sm:$0xff]
        %v922 = vld [vmem:[%s684 + $0x508] sm:$0xff]
        %v923 = vld [vmem:[%s684 + $0x510] sm:$0xff]
        %v924 = vld [vmem:[%s684 + $0x518] sm:$0xff]
        %v925 = vld [vmem:[%s684 + $0x520] sm:$0xff]
        %v926 = vld [vmem:[%s684 + $0x528] sm:$0xff]
        %v927 = vld [vmem:[%s684 + $0x530] sm:$0xff]
        %v928 = vld [vmem:[%s684 + $0x538] sm:$0xff]
        %v929 = vld [vmem:[%s684 + $0x540] sm:$0xff]
        %v930 = vld [vmem:[%s684 + $0x548] sm:$0xff]
        %v931 = vld [vmem:[%s684 + $0x550] sm:$0xff]
        %v932 = vld [vmem:[%s684 + $0x558] sm:$0xff]
        %v933 = vld [vmem:[%s684 + $0x560] sm:$0xff]
        %v934 = vld [vmem:[%s684 + $0x568] sm:$0xff]
        %v935 = vld [vmem:[%s684 + $0x570] sm:$0xff]
        %v936 = vld [vmem:[%s684 + $0x578] sm:$0xff]
        %v937 = vld [vmem:[%s684 + $0x580] sm:$0xff]
        %v938 = vld [vmem:[%s684 + $0x588] sm:$0xff]
        %v939 = vld [vmem:[%s684 + $0x590] sm:$0xff]
        %v940 = vld [vmem:[%s684 + $0x598] sm:$0xff]
        %v941 = vld [vmem:[%s684 + $0x5a0] sm:$0xff]
        %v942 = vld [vmem:[%s684 + $0x5a8] sm:$0xff]
        %v943 = vld [vmem:[%s684 + $0x5b0] sm:$0xff]
        %v944 = vld [vmem:[%s684 + $0x5b8] sm:$0xff]
        %v945 = vld [vmem:[%s684 + $0x5c0] sm:$0xff]
        %v946 = vld [vmem:[%s684 + $0x5c8] sm:$0xff]
        %v947 = vld [vmem:[%s684 + $0x5d0] sm:$0xff]
        %v948 = vld [vmem:[%s684 + $0x5d8] sm:$0xff]
        %v949 = vld [vmem:[%s684 + $0x5e0] sm:$0xff]
        %v950 = vld [vmem:[%s684 + $0x5e8] sm:$0xff]
        %v951 = vld [vmem:[%s684 + $0x5f0] sm:$0xff]
        %v952 = vld [vmem:[%s684 + $0x5f8] sm:$0xff]
        %v953 = vld [vmem:[%s684 + $0x600] sm:$0xff]
        %v954 = vld [vmem:[%s684 + $0x608] sm:$0xff]
        %v955 = vld [vmem:[%s684 + $0x610] sm:$0xff]
        %v956 = vld [vmem:[%s684 + $0x618] sm:$0xff]
        %v957 = vld [vmem:[%s684 + $0x620] sm:$0xff]
        %v958 = vld [vmem:[%s684 + $0x628] sm:$0xff]
        %v959 = vld [vmem:[%s684 + $0x630] sm:$0xff]
        %v960 = vld [vmem:[%s684 + $0x638] sm:$0xff]
        %v961 = vld [vmem:[%s684 + $0x640] sm:$0xff]
        %v962 = vld [vmem:[%s684 + $0x648] sm:$0xff]
        %v963 = vld [vmem:[%s684 + $0x650] sm:$0xff]
        %v964 = vld [vmem:[%s684 + $0x658] sm:$0xff]
        %v965 = vld [vmem:[%s684 + $0x660] sm:$0xff]
        %v966 = vld [vmem:[%s684 + $0x668] sm:$0xff]
        %v967 = vld [vmem:[%s684 + $0x670] sm:$0xff]
        %v968 = vld [vmem:[%s684 + $0x678] sm:$0xff]
        %v969 = vld [vmem:[%s684 + $0x680] sm:$0xff]
        %v970 = vld [vmem:[%s684 + $0x688] sm:$0xff]
        %v971 = vld [vmem:[%s684 + $0x690] sm:$0xff]
        %v972 = vld [vmem:[%s684 + $0x698] sm:$0xff]
        %v973 = vld [vmem:[%s684 + $0x6a0] sm:$0xff]
        %v974 = vld [vmem:[%s684 + $0x6a8] sm:$0xff]
        %v975 = vld [vmem:[%s684 + $0x6b0] sm:$0xff]
        %v976 = vld [vmem:[%s684 + $0x6b8] sm:$0xff]
        %v977 = vld [vmem:[%s684 + $0x6c0] sm:$0xff]
        %v978 = vld [vmem:[%s684 + $0x6c8] sm:$0xff]
        %v979 = vld [vmem:[%s684 + $0x6d0] sm:$0xff]
        %v980 = vld [vmem:[%s684 + $0x6d8] sm:$0xff]
        %v981 = vld [vmem:[%s684 + $0x6e0] sm:$0xff]
        %v982 = vld [vmem:[%s684 + $0x6e8] sm:$0xff]
        %v983 = vld [vmem:[%s684 + $0x6f0] sm:$0xff]
        %v984 = vld [vmem:[%s684 + $0x6f8] sm:$0xff]
        %v989 = vunpack.c.l.b16 %v757
        %v990 = vunpack.c.h.b16 %v757
        %v991 = vunpack.c.l.b16 %v758
        %v992 = vunpack.c.h.b16 %v758
        %v993 = vunpack.c.l.b16 %v759
        %v994 = vunpack.c.h.b16 %v759
        %v995 = vunpack.c.l.b16 %v760
        %v996 = vpack.c.b16 %v989, %v989
        %v997 = vpack.c.b16 %v990, %v990
        %v998 = vpack.c.b16 %v991, %v991
        %v999 = vpack.c.b16 %v992, %v992
        %v1000 = vpack.c.b16 %v993, %v993
        %v1001 = vpack.c.b16 %v994, %v994
        %v1002 = vpack.c.b16 %v995, %v995
        %v1234 = vunpack.c.l.b16 %v761
        %v1235 = vunpack.c.h.b16 %v761
        %v1236 = vunpack.c.l.b16 %v762
        %v1237 = vunpack.c.h.b16 %v762
        %v1238 = vunpack.c.l.b16 %v763
        %v1239 = vunpack.c.h.b16 %v763
        %v1240 = vunpack.c.l.b16 %v764
        %v1241 = vunpack.c.h.b16 %v764
        %v1242 = vunpack.c.l.b16 %v765
        %v1243 = vunpack.c.h.b16 %v765
        %v1244 = vunpack.c.l.b16 %v766
        %v1245 = vunpack.c.h.b16 %v766
        %v1246 = vunpack.c.l.b16 %v767
        %v1247 = vunpack.c.h.b16 %v767
        %v1248 = vunpack.c.l.b16 %v768
        %v1249 = vunpack.c.h.b16 %v768
        %v1250 = vunpack.c.l.b16 %v769
        %v1251 = vunpack.c.h.b16 %v769
        %v1252 = vunpack.c.l.b16 %v770
        %v1253 = vunpack.c.h.b16 %v770
        %v1254 = vunpack.c.l.b16 %v771
        %v1255 = vunpack.c.h.b16 %v771
        %v1256 = vunpack.c.l.b16 %v772
        %v1257 = vunpack.c.h.b16 %v772
        %v1258 = vunpack.c.l.b16 %v773
        %v1259 = vunpack.c.h.b16 %v773
        %v1260 = vunpack.c.l.b16 %v774
        %v1261 = vunpack.c.h.b16 %v774
        %v1262 = vunpack.c.l.b16 %v775
        %v1263 = vunpack.c.h.b16 %v775
        %v1264 = vunpack.c.l.b16 %v776
        %v1265 = vunpack.c.h.b16 %v776
        %v1266 = vunpack.c.l.b16 %v777
        %v1267 = vunpack.c.h.b16 %v777
        %v1268 = vunpack.c.l.b16 %v778
        %v1269 = vunpack.c.h.b16 %v778
        %v1270 = vunpack.c.l.b16 %v779
        %v1271 = vunpack.c.h.b16 %v779
        %v1272 = vunpack.c.l.b16 %v780
        %v1273 = vunpack.c.h.b16 %v780
        %v1274 = vunpack.c.l.b16 %v781
        %v1275 = vunpack.c.h.b16 %v781
        %v1276 = vunpack.c.l.b16 %v782
        %v1277 = vunpack.c.h.b16 %v782
        %v1278 = vunpack.c.l.b16 %v783
        %v1279 = vunpack.c.h.b16 %v783
        %v1280 = vunpack.c.l.b16 %v784
        %v1281 = vunpack.c.h.b16 %v784
        %v1282 = vunpack.c.l.b16 %v785
        %v1283 = vunpack.c.h.b16 %v785
        %v1284 = vunpack.c.l.b16 %v786
        %v1285 = vunpack.c.h.b16 %v786
        %v1286 = vunpack.c.l.b16 %v787
        %v1287 = vunpack.c.h.b16 %v787
        %v1288 = vunpack.c.l.b16 %v788
        %v1289 = vunpack.c.h.b16 %v788
        %v1290 = vunpack.c.l.b16 %v789
        %v1291 = vunpack.c.h.b16 %v789
        %v1292 = vunpack.c.l.b16 %v790
        %v1293 = vunpack.c.h.b16 %v790
        %v1294 = vunpack.c.l.b16 %v791
        %v1295 = vunpack.c.h.b16 %v791
        %v1296 = vunpack.c.l.b16 %v792
        %v1297 = vunpack.c.h.b16 %v792
        %v1298 = vunpack.c.l.b16 %v793
        %v1299 = vunpack.c.h.b16 %v793
        %v1300 = vunpack.c.l.b16 %v794
        %v1301 = vunpack.c.h.b16 %v794
        %v1302 = vunpack.c.l.b16 %v795
        %v1303 = vunpack.c.h.b16 %v795
        %v1304 = vunpack.c.l.b16 %v796
        %v1305 = vunpack.c.h.b16 %v796
        %v1306 = vunpack.c.l.b16 %v797
        %v1307 = vunpack.c.h.b16 %v797
        %v1308 = vunpack.c.l.b16 %v798
        %v1309 = vunpack.c.h.b16 %v798
        %v1310 = vunpack.c.l.b16 %v799
        %v1311 = vunpack.c.h.b16 %v799
        %v1312 = vunpack.c.l.b16 %v800
        %v1313 = vunpack.c.h.b16 %v800
        %v1314 = vunpack.c.l.b16 %v801
        %v1315 = vunpack.c.h.b16 %v801
        %v1316 = vunpack.c.l.b16 %v802
        %v1317 = vunpack.c.h.b16 %v802
        %v1318 = vunpack.c.l.b16 %v803
        %v1319 = vunpack.c.h.b16 %v803
        %v1320 = vunpack.c.l.b16 %v804
        %v1321 = vunpack.c.h.b16 %v804
        %v1322 = vunpack.c.l.b16 %v805
        %v1323 = vunpack.c.h.b16 %v805
        %v1324 = vunpack.c.l.b16 %v806
        %v1325 = vunpack.c.h.b16 %v806
        %v1326 = vunpack.c.l.b16 %v807
        %v1327 = vunpack.c.h.b16 %v807
        %v1328 = vunpack.c.l.b16 %v808
        %v1329 = vunpack.c.h.b16 %v808
        %v1330 = vunpack.c.l.b16 %v809
        %v1331 = vunpack.c.h.b16 %v809
        %v1332 = vunpack.c.l.b16 %v810
        %v1333 = vunpack.c.h.b16 %v810
        %v1334 = vunpack.c.l.b16 %v811
        %v1335 = vunpack.c.h.b16 %v811
        %v1336 = vunpack.c.l.b16 %v812
        %v1337 = vunpack.c.h.b16 %v812
        %v1338 = vunpack.c.l.b16 %v813
        %v1339 = vunpack.c.h.b16 %v813
        %v1340 = vunpack.c.l.b16 %v814
        %v1341 = vunpack.c.h.b16 %v814
        %v1342 = vunpack.c.l.b16 %v815
        %v1343 = vunpack.c.h.b16 %v815
        %v1344 = vunpack.c.l.b16 %v816
        %v1345 = vunpack.c.h.b16 %v816
        %v1346 = vunpack.c.l.b16 %v817
        %v1347 = vunpack.c.h.b16 %v817
        %v1348 = vunpack.c.l.b16 %v818
        %v1349 = vunpack.c.h.b16 %v818
        %v1350 = vunpack.c.l.b16 %v819
        %v1351 = vunpack.c.h.b16 %v819
        %v1352 = vunpack.c.l.b16 %v820
        %v1353 = vunpack.c.h.b16 %v820
        %v1354 = vunpack.c.l.b16 %v821
        %v1355 = vunpack.c.h.b16 %v821
        %v1356 = vunpack.c.l.b16 %v822
        %v1357 = vunpack.c.h.b16 %v822
        %v1358 = vunpack.c.l.b16 %v823
        %v1359 = vunpack.c.h.b16 %v823
        %v1360 = vunpack.c.l.b16 %v824
        %v1361 = vunpack.c.h.b16 %v824
        %v1362 = vunpack.c.l.b16 %v825
        %v1363 = vunpack.c.h.b16 %v825
        %v1364 = vunpack.c.l.b16 %v826
        %v1365 = vunpack.c.h.b16 %v826
        %v1366 = vunpack.c.l.b16 %v827
        %v1367 = vunpack.c.h.b16 %v827
        %v1368 = vunpack.c.l.b16 %v828
        %v1369 = vunpack.c.h.b16 %v828
        %v1370 = vunpack.c.l.b16 %v829
        %v1371 = vunpack.c.h.b16 %v829
        %v1372 = vunpack.c.l.b16 %v830
        %v1373 = vunpack.c.h.b16 %v830
        %v1374 = vunpack.c.l.b16 %v831
        %v1375 = vunpack.c.h.b16 %v831
        %v1376 = vunpack.c.l.b16 %v832
        %v1377 = vunpack.c.h.b16 %v832
        %v1378 = vunpack.c.l.b16 %v833
        %v1379 = vunpack.c.h.b16 %v833
        %v1380 = vunpack.c.l.b16 %v834
        %v1381 = vunpack.c.h.b16 %v834
        %v1382 = vunpack.c.l.b16 %v835
        %v1383 = vunpack.c.h.b16 %v835
        %v1384 = vunpack.c.l.b16 %v836
        %v1385 = vunpack.c.h.b16 %v836
        %v1386 = vunpack.c.l.b16 %v837
        %v1387 = vunpack.c.h.b16 %v837
        %v1388 = vunpack.c.l.b16 %v838
        %v1389 = vunpack.c.h.b16 %v838
        %v1390 = vunpack.c.l.b16 %v839
        %v1391 = vunpack.c.h.b16 %v839
        %v1392 = vunpack.c.l.b16 %v840
        %v1393 = vunpack.c.h.b16 %v840
        %v1394 = vunpack.c.l.b16 %v841
        %v1395 = vunpack.c.h.b16 %v841
        %v1396 = vunpack.c.l.b16 %v842
        %v1397 = vunpack.c.h.b16 %v842
        %v1398 = vunpack.c.l.b16 %v843
        %v1399 = vunpack.c.h.b16 %v843
        %v1400 = vunpack.c.l.b16 %v844
        %v1401 = vunpack.c.h.b16 %v844
        %v1402 = vunpack.c.l.b16 %v845
        %v1403 = vunpack.c.h.b16 %v845
        %v1404 = vunpack.c.l.b16 %v846
        %v1405 = vunpack.c.h.b16 %v846
        %v1406 = vunpack.c.l.b16 %v847
        %v1407 = vunpack.c.h.b16 %v847
        %v1408 = vunpack.c.l.b16 %v848
        %v1409 = vunpack.c.h.b16 %v848
        %v1410 = vunpack.c.l.b16 %v849
        %v1411 = vunpack.c.h.b16 %v849
        %v1412 = vunpack.c.l.b16 %v850
        %v1413 = vunpack.c.h.b16 %v850
        %v1414 = vunpack.c.l.b16 %v851
        %v1415 = vunpack.c.h.b16 %v851
        %v1416 = vunpack.c.l.b16 %v852
        %v1417 = vunpack.c.h.b16 %v852
        %v1418 = vunpack.c.l.b16 %v853
        %v1419 = vunpack.c.h.b16 %v853
        %v1420 = vunpack.c.l.b16 %v854
        %v1421 = vunpack.c.h.b16 %v854
        %v1422 = vunpack.c.l.b16 %v855
        %v1423 = vunpack.c.h.b16 %v855
        %v1424 = vunpack.c.l.b16 %v856
        %v1425 = vunpack.c.h.b16 %v856
        %v1426 = vunpack.c.l.b16 %v857
        %v1427 = vunpack.c.h.b16 %v857
        %v1428 = vunpack.c.l.b16 %v858
        %v1429 = vunpack.c.h.b16 %v858
        %v1430 = vunpack.c.l.b16 %v859
        %v1431 = vunpack.c.h.b16 %v859
        %v1432 = vunpack.c.l.b16 %v860
        %v1433 = vunpack.c.h.b16 %v860
        %v1434 = vunpack.c.l.b16 %v861
        %v1435 = vunpack.c.h.b16 %v861
        %v1436 = vunpack.c.l.b16 %v862
        %v1437 = vunpack.c.h.b16 %v862
        %v1438 = vunpack.c.l.b16 %v863
        %v1439 = vunpack.c.h.b16 %v863
        %v1440 = vunpack.c.l.b16 %v864
        %v1441 = vunpack.c.h.b16 %v864
        %v1442 = vunpack.c.l.b16 %v865
        %v1443 = vunpack.c.h.b16 %v865
        %v1444 = vunpack.c.l.b16 %v866
        %v1445 = vunpack.c.h.b16 %v866
        %v1446 = vunpack.c.l.b16 %v867
        %v1447 = vunpack.c.h.b16 %v867
        %v1448 = vunpack.c.l.b16 %v868
        %v1449 = vunpack.c.h.b16 %v868
        %v1450 = vunpack.c.l.b16 %v869
        %v1451 = vunpack.c.h.b16 %v869
        %v1452 = vunpack.c.l.b16 %v870
        %v1453 = vunpack.c.h.b16 %v870
        %v1454 = vunpack.c.l.b16 %v871
        %v1455 = vunpack.c.h.b16 %v871
        %v1456 = vunpack.c.l.b16 %v872
        %v1457 = vunpack.c.h.b16 %v872
        %v1458 = vunpack.c.l.b16 %v873
        %v1459 = vunpack.c.h.b16 %v873
        %v1460 = vunpack.c.l.b16 %v874
        %v1461 = vunpack.c.h.b16 %v874
        %v1462 = vunpack.c.l.b16 %v875
        %v1463 = vunpack.c.h.b16 %v875
        %v1464 = vunpack.c.l.b16 %v876
        %v1465 = vunpack.c.h.b16 %v876
        %v1466 = vunpack.c.l.b16 %v877
        %v1467 = vunpack.c.h.b16 %v877
        %v1468 = vunpack.c.l.b16 %v878
        %v1469 = vunpack.c.h.b16 %v878
        %v1470 = vunpack.c.l.b16 %v879
        %v1471 = vunpack.c.h.b16 %v879
        %v1472 = vunpack.c.l.b16 %v880
        %v1473 = vunpack.c.h.b16 %v880
        %v1474 = vunpack.c.l.b16 %v881
        %v1475 = vunpack.c.h.b16 %v881
        %v1476 = vunpack.c.l.b16 %v882
        %v1477 = vunpack.c.h.b16 %v882
        %v1478 = vunpack.c.l.b16 %v883
        %v1479 = vunpack.c.h.b16 %v883
        %v1480 = vunpack.c.l.b16 %v884
        %v1481 = vunpack.c.h.b16 %v884
        %v1482 = vunpack.c.l.b16 %v885
        %v1483 = vunpack.c.h.b16 %v885
        %v1484 = vunpack.c.l.b16 %v886
        %v1485 = vunpack.c.h.b16 %v886
        %v1486 = vunpack.c.l.b16 %v887
        %v1487 = vunpack.c.h.b16 %v887
        %v1488 = vunpack.c.l.b16 %v888
        %v1489 = vunpack.c.h.b16 %v888
        %v1490 = vunpack.c.l.b16 %v889
        %v1491 = vunpack.c.h.b16 %v889
        %v1492 = vunpack.c.l.b16 %v890
        %v1493 = vunpack.c.h.b16 %v890
        %v1494 = vunpack.c.l.b16 %v891
        %v1495 = vunpack.c.h.b16 %v891
        %v1496 = vunpack.c.l.b16 %v892
        %v1497 = vunpack.c.h.b16 %v892
        %v1498 = vunpack.c.l.b16 %v893
        %v1499 = vunpack.c.h.b16 %v893
        %v1500 = vunpack.c.l.b16 %v894
        %v1501 = vunpack.c.h.b16 %v894
        %v1502 = vunpack.c.l.b16 %v895
        %v1503 = vunpack.c.h.b16 %v895
        %v1504 = vunpack.c.l.b16 %v896
        %v1505 = vunpack.c.h.b16 %v896
        %v1506 = vunpack.c.l.b16 %v897
        %v1507 = vunpack.c.h.b16 %v897
        %v1508 = vunpack.c.l.b16 %v898
        %v1509 = vunpack.c.h.b16 %v898
        %v1510 = vunpack.c.l.b16 %v899
        %v1511 = vunpack.c.h.b16 %v899
        %v1512 = vunpack.c.l.b16 %v900
        %v1513 = vunpack.c.h.b16 %v900
        %v1514 = vunpack.c.l.b16 %v901
        %v1515 = vunpack.c.h.b16 %v901
        %v1516 = vunpack.c.l.b16 %v902
        %v1517 = vunpack.c.h.b16 %v902
        %v1518 = vunpack.c.l.b16 %v903
        %v1519 = vunpack.c.h.b16 %v903
        %v1520 = vunpack.c.l.b16 %v904
        %v1521 = vunpack.c.h.b16 %v904
        %v1522 = vunpack.c.l.b16 %v905
        %v1523 = vunpack.c.h.b16 %v905
        %v1524 = vunpack.c.l.b16 %v906
        %v1525 = vunpack.c.h.b16 %v906
        %v1526 = vunpack.c.l.b16 %v907
        %v1527 = vunpack.c.h.b16 %v907
        %v1528 = vunpack.c.l.b16 %v908
        %v1529 = vunpack.c.h.b16 %v908
        %v1530 = vunpack.c.l.b16 %v909
        %v1531 = vunpack.c.h.b16 %v909
        %v1532 = vunpack.c.l.b16 %v910
        %v1533 = vunpack.c.h.b16 %v910
        %v1534 = vunpack.c.l.b16 %v911
        %v1535 = vunpack.c.h.b16 %v911
        %v1536 = vunpack.c.l.b16 %v912
        %v1537 = vunpack.c.h.b16 %v912
        %v1538 = vunpack.c.l.b16 %v913
        %v1539 = vunpack.c.h.b16 %v913
        %v1540 = vunpack.c.l.b16 %v914
        %v1541 = vunpack.c.h.b16 %v914
        %v1542 = vunpack.c.l.b16 %v915
        %v1543 = vunpack.c.h.b16 %v915
        %v1544 = vunpack.c.l.b16 %v916
        %v1545 = vunpack.c.h.b16 %v916
        %v1546 = vunpack.c.l.b16 %v917
        %v1547 = vunpack.c.h.b16 %v917
        %v1548 = vunpack.c.l.b16 %v918
        %v1549 = vunpack.c.h.b16 %v918
        %v1550 = vunpack.c.l.b16 %v919
        %v1551 = vunpack.c.h.b16 %v919
        %v1552 = vunpack.c.l.b16 %v920
        %v1553 = vunpack.c.h.b16 %v920
        %v1554 = vunpack.c.l.b16 %v921
        %v1555 = vunpack.c.h.b16 %v921
        %v1556 = vunpack.c.l.b16 %v922
        %v1557 = vunpack.c.h.b16 %v922
        %v1558 = vunpack.c.l.b16 %v923
        %v1559 = vunpack.c.h.b16 %v923
        %v1560 = vunpack.c.l.b16 %v924
        %v1561 = vunpack.c.h.b16 %v924
        %v1562 = vunpack.c.l.b16 %v925
        %v1563 = vunpack.c.h.b16 %v925
        %v1564 = vunpack.c.l.b16 %v926
        %v1565 = vunpack.c.h.b16 %v926
        %v1566 = vunpack.c.l.b16 %v927
        %v1567 = vunpack.c.h.b16 %v927
        %v1568 = vunpack.c.l.b16 %v928
        %v1569 = vunpack.c.h.b16 %v928
        %v1570 = vunpack.c.l.b16 %v929
        %v1571 = vunpack.c.h.b16 %v929
        %v1572 = vunpack.c.l.b16 %v930
        %v1573 = vunpack.c.h.b16 %v930
        %v1574 = vunpack.c.l.b16 %v931
        %v1575 = vunpack.c.h.b16 %v931
        %v1576 = vunpack.c.l.b16 %v932
        %v1577 = vunpack.c.h.b16 %v932
        %v1578 = vunpack.c.l.b16 %v933
        %v1579 = vunpack.c.h.b16 %v933
        %v1580 = vunpack.c.l.b16 %v934
        %v1581 = vunpack.c.h.b16 %v934
        %v1582 = vunpack.c.l.b16 %v935
        %v1583 = vunpack.c.h.b16 %v935
        %v1584 = vunpack.c.l.b16 %v936
        %v1585 = vunpack.c.h.b16 %v936
        %v1586 = vunpack.c.l.b16 %v937
        %v1587 = vunpack.c.h.b16 %v937
        %v1588 = vunpack.c.l.b16 %v938
        %v1589 = vunpack.c.h.b16 %v938
        %v1590 = vunpack.c.l.b16 %v939
        %v1591 = vunpack.c.h.b16 %v939
        %v1592 = vunpack.c.l.b16 %v940
        %v1593 = vunpack.c.h.b16 %v940
        %v1594 = vunpack.c.l.b16 %v941
        %v1595 = vunpack.c.h.b16 %v941
        %v1596 = vunpack.c.l.b16 %v942
        %v1597 = vunpack.c.h.b16 %v942
        %v1598 = vunpack.c.l.b16 %v943
        %v1599 = vunpack.c.h.b16 %v943
        %v1600 = vunpack.c.l.b16 %v944
        %v1601 = vunpack.c.h.b16 %v944
        %v1602 = vunpack.c.l.b16 %v945
        %v1603 = vunpack.c.h.b16 %v945
        %v1604 = vunpack.c.l.b16 %v946
        %v1605 = vunpack.c.h.b16 %v946
        %v1606 = vunpack.c.l.b16 %v947
        %v1607 = vunpack.c.h.b16 %v947
        %v1608 = vunpack.c.l.b16 %v948
        %v1609 = vunpack.c.h.b16 %v948
        %v1610 = vunpack.c.l.b16 %v949
        %v1611 = vunpack.c.h.b16 %v949
        %v1612 = vunpack.c.l.b16 %v950
        %v1613 = vunpack.c.h.b16 %v950
        %v1614 = vunpack.c.l.b16 %v951
        %v1615 = vunpack.c.h.b16 %v951
        %v1616 = vunpack.c.l.b16 %v952
        %v1617 = vunpack.c.h.b16 %v952
        %v1618 = vunpack.c.l.b16 %v953
        %v1619 = vunpack.c.h.b16 %v953
        %v1620 = vunpack.c.l.b16 %v954
        %v1621 = vunpack.c.h.b16 %v954
        %v1622 = vunpack.c.l.b16 %v955
        %v1623 = vunpack.c.h.b16 %v955
        %v1624 = vunpack.c.l.b16 %v956
        %v1625 = vunpack.c.h.b16 %v956
        %v1626 = vunpack.c.l.b16 %v957
        %v1627 = vunpack.c.h.b16 %v957
        %v1628 = vunpack.c.l.b16 %v958
        %v1629 = vunpack.c.h.b16 %v958
        %v1630 = vunpack.c.l.b16 %v959
        %v1631 = vunpack.c.h.b16 %v959
        %v1632 = vunpack.c.l.b16 %v960
        %v1633 = vunpack.c.h.b16 %v960
        %v1634 = vunpack.c.l.b16 %v961
        %v1635 = vunpack.c.h.b16 %v961
        %v1636 = vunpack.c.l.b16 %v962
        %v1637 = vunpack.c.h.b16 %v962
        %v1638 = vunpack.c.l.b16 %v963
        %v1639 = vunpack.c.h.b16 %v963
        %v1640 = vunpack.c.l.b16 %v964
        %v1641 = vunpack.c.h.b16 %v964
        %v1642 = vunpack.c.l.b16 %v965
        %v1643 = vunpack.c.h.b16 %v965
        %v1644 = vunpack.c.l.b16 %v966
        %v1645 = vunpack.c.h.b16 %v966
        %v1646 = vunpack.c.l.b16 %v967
        %v1647 = vunpack.c.h.b16 %v967
        %v1648 = vunpack.c.l.b16 %v968
        %v1649 = vunpack.c.h.b16 %v968
        %v1650 = vunpack.c.l.b16 %v969
        %v1651 = vunpack.c.h.b16 %v969
        %v1652 = vunpack.c.l.b16 %v970
        %v1653 = vunpack.c.h.b16 %v970
        %v1654 = vunpack.c.l.b16 %v971
        %v1655 = vunpack.c.h.b16 %v971
        %v1656 = vunpack.c.l.b16 %v972
        %v1657 = vunpack.c.h.b16 %v972
        %v1658 = vunpack.c.l.b16 %v973
        %v1659 = vunpack.c.h.b16 %v973
        %v1660 = vunpack.c.l.b16 %v974
        %v1661 = vunpack.c.h.b16 %v974
        %v1662 = vunpack.c.l.b16 %v975
        %v1663 = vunpack.c.h.b16 %v975
        %v1664 = vunpack.c.l.b16 %v976
        %v1665 = vunpack.c.h.b16 %v976
        %v1666 = vunpack.c.l.b16 %v977
        %v1667 = vunpack.c.h.b16 %v977
        %v1668 = vunpack.c.l.b16 %v978
        %v1669 = vunpack.c.h.b16 %v978
        %v1670 = vunpack.c.l.b16 %v979
        %v1671 = vunpack.c.h.b16 %v979
        %v1672 = vunpack.c.l.b16 %v980
        %v1673 = vunpack.c.h.b16 %v980
        %v1674 = vunpack.c.l.b16 %v981
        %v1675 = vunpack.c.h.b16 %v981
        %v1676 = vunpack.c.l.b16 %v982
        %v1677 = vunpack.c.h.b16 %v982
        %v1678 = vunpack.c.l.b16 %v983
        %v1679 = vunpack.c.h.b16 %v983
        %v1680 = vunpack.c.l.b16 %v984
        %v1681 = vunpack.c.h.b16 %v984
        %v1682 = vpack.c.b16 %v1238, %v1234
        %v1683 = vpack.c.b16 %v1239, %v1235
        %v1684 = vpack.c.b16 %v1240, %v1236
        %v1685 = vpack.c.b16 %v1241, %v1237
        %v1686 = vpack.c.b16 %v1246, %v1242
        %v1687 = vpack.c.b16 %v1247, %v1243
        %v1688 = vpack.c.b16 %v1248, %v1244
        %v1689 = vpack.c.b16 %v1249, %v1245
        %v1690 = vpack.c.b16 %v1254, %v1250
        %v1691 = vpack.c.b16 %v1255, %v1251
        %v1692 = vpack.c.b16 %v1256, %v1252
        %v1693 = vpack.c.b16 %v1257, %v1253
        %v1694 = vpack.c.b16 %v1262, %v1258
        %v1695 = vpack.c.b16 %v1263, %v1259
        %v1696 = vpack.c.b16 %v1264, %v1260
        %v1697 = vpack.c.b16 %v1265, %v1261
        %v1698 = vpack.c.b16 %v1270, %v1266
        %v1699 = vpack.c.b16 %v1271, %v1267
        %v1700 = vpack.c.b16 %v1272, %v1268
        %v1701 = vpack.c.b16 %v1273, %v1269
        %v1702 = vpack.c.b16 %v1278, %v1274
        %v1703 = vpack.c.b16 %v1279, %v1275
        %v1704 = vpack.c.b16 %v1280, %v1276
        %v1705 = vpack.c.b16 %v1281, %v1277
        %v1706 = vpack.c.b16 %v1286, %v1282
        %v1707 = vpack.c.b16 %v1287, %v1283
        %v1708 = vpack.c.b16 %v1288, %v1284
        %v1709 = vpack.c.b16 %v1289, %v1285
        %v1710 = vpack.c.b16 %v1294, %v1290
        %v1711 = vpack.c.b16 %v1295, %v1291
        %v1712 = vpack.c.b16 %v1296, %v1292
        %v1713 = vpack.c.b16 %v1297, %v1293
        %v1714 = vpack.c.b16 %v1302, %v1298
        %v1715 = vpack.c.b16 %v1303, %v1299
        %v1716 = vpack.c.b16 %v1304, %v1300
        %v1717 = vpack.c.b16 %v1305, %v1301
        %v1718 = vpack.c.b16 %v1310, %v1306
        %v1719 = vpack.c.b16 %v1311, %v1307
        %v1720 = vpack.c.b16 %v1312, %v1308
        %v1721 = vpack.c.b16 %v1313, %v1309
        %v1722 = vpack.c.b16 %v1318, %v1314
        %v1723 = vpack.c.b16 %v1319, %v1315
        %v1724 = vpack.c.b16 %v1320, %v1316
        %v1725 = vpack.c.b16 %v1321, %v1317
        %v1726 = vpack.c.b16 %v1326, %v1322
        %v1727 = vpack.c.b16 %v1327, %v1323
        %v1728 = vpack.c.b16 %v1328, %v1324
        %v1729 = vpack.c.b16 %v1329, %v1325
        %v1730 = vpack.c.b16 %v1334, %v1330
        %v1731 = vpack.c.b16 %v1335, %v1331
        %v1732 = vpack.c.b16 %v1336, %v1332
        %v1733 = vpack.c.b16 %v1337, %v1333
        %v1734 = vpack.c.b16 %v1342, %v1338
        %v1735 = vpack.c.b16 %v1343, %v1339
        %v1736 = vpack.c.b16 %v1344, %v1340
        %v1737 = vpack.c.b16 %v1345, %v1341
        %v1738 = vpack.c.b16 %v1350, %v1346
        %v1739 = vpack.c.b16 %v1351, %v1347
        %v1740 = vpack.c.b16 %v1352, %v1348
        %v1741 = vpack.c.b16 %v1353, %v1349
        %v1742 = vpack.c.b16 %v1358, %v1354
        %v1743 = vpack.c.b16 %v1359, %v1355
        %v1744 = vpack.c.b16 %v1360, %v1356
        %v1745 = vpack.c.b16 %v1361, %v1357
        %v1746 = vpack.c.b16 %v1366, %v1362
        %v1747 = vpack.c.b16 %v1367, %v1363
        %v1748 = vpack.c.b16 %v1368, %v1364
        %v1749 = vpack.c.b16 %v1369, %v1365
        %v1750 = vpack.c.b16 %v1374, %v1370
        %v1751 = vpack.c.b16 %v1375, %v1371
        %v1752 = vpack.c.b16 %v1376, %v1372
        %v1753 = vpack.c.b16 %v1377, %v1373
        %v1754 = vpack.c.b16 %v1382, %v1378
        %v1755 = vpack.c.b16 %v1383, %v1379
        %v1756 = vpack.c.b16 %v1384, %v1380
        %v1757 = vpack.c.b16 %v1385, %v1381
        %v1758 = vpack.c.b16 %v1390, %v1386
        %v1759 = vpack.c.b16 %v1391, %v1387
        %v1760 = vpack.c.b16 %v1392, %v1388
        %v1761 = vpack.c.b16 %v1393, %v1389
        %v1762 = vpack.c.b16 %v1398, %v1394
        %v1763 = vpack.c.b16 %v1399, %v1395
        %v1764 = vpack.c.b16 %v1400, %v1396
        %v1765 = vpack.c.b16 %v1401, %v1397
        %v1766 = vpack.c.b16 %v1406, %v1402
        %v1767 = vpack.c.b16 %v1407, %v1403
        %v1768 = vpack.c.b16 %v1408, %v1404
        %v1769 = vpack.c.b16 %v1409, %v1405
        %v1770 = vpack.c.b16 %v1414, %v1410
        %v1771 = vpack.c.b16 %v1415, %v1411
        %v1772 = vpack.c.b16 %v1416, %v1412
        %v1773 = vpack.c.b16 %v1417, %v1413
        %v1774 = vpack.c.b16 %v1422, %v1418
        %v1775 = vpack.c.b16 %v1423, %v1419
        %v1776 = vpack.c.b16 %v1424, %v1420
        %v1777 = vpack.c.b16 %v1425, %v1421
        %v1778 = vpack.c.b16 %v1430, %v1426
        %v1779 = vpack.c.b16 %v1431, %v1427
        %v1780 = vpack.c.b16 %v1432, %v1428
        %v1781 = vpack.c.b16 %v1433, %v1429
        %v1782 = vpack.c.b16 %v1438, %v1434
        %v1783 = vpack.c.b16 %v1439, %v1435
        %v1784 = vpack.c.b16 %v1440, %v1436
        %v1785 = vpack.c.b16 %v1441, %v1437
        %v1786 = vpack.c.b16 %v1446, %v1442
        %v1787 = vpack.c.b16 %v1447, %v1443
        %v1788 = vpack.c.b16 %v1448, %v1444
        %v1789 = vpack.c.b16 %v1449, %v1445
        %v1790 = vpack.c.b16 %v1454, %v1450
        %v1791 = vpack.c.b16 %v1455, %v1451
        %v1792 = vpack.c.b16 %v1456, %v1452
        %v1793 = vpack.c.b16 %v1457, %v1453
        %v1794 = vpack.c.b16 %v1462, %v1458
        %v1795 = vpack.c.b16 %v1463, %v1459
        %v1796 = vpack.c.b16 %v1464, %v1460
        %v1797 = vpack.c.b16 %v1465, %v1461
        %v1798 = vpack.c.b16 %v1470, %v1466
        %v1799 = vpack.c.b16 %v1471, %v1467
        %v1800 = vpack.c.b16 %v1472, %v1468
        %v1801 = vpack.c.b16 %v1473, %v1469
        %v1802 = vpack.c.b16 %v1478, %v1474
        %v1803 = vpack.c.b16 %v1479, %v1475
        %v1804 = vpack.c.b16 %v1480, %v1476
        %v1805 = vpack.c.b16 %v1481, %v1477
        %v1806 = vpack.c.b16 %v1486, %v1482
        %v1807 = vpack.c.b16 %v1487, %v1483
        %v1808 = vpack.c.b16 %v1488, %v1484
        %v1809 = vpack.c.b16 %v1489, %v1485
        %v1810 = vpack.c.b16 %v1494, %v1490
        %v1811 = vpack.c.b16 %v1495, %v1491
        %v1812 = vpack.c.b16 %v1496, %v1492
        %v1813 = vpack.c.b16 %v1497, %v1493
        %v1814 = vpack.c.b16 %v1502, %v1498
        %v1815 = vpack.c.b16 %v1503, %v1499
        %v1816 = vpack.c.b16 %v1504, %v1500
        %v1817 = vpack.c.b16 %v1505, %v1501
        %v1818 = vpack.c.b16 %v1510, %v1506
        %v1819 = vpack.c.b16 %v1511, %v1507
        %v1820 = vpack.c.b16 %v1512, %v1508
        %v1821 = vpack.c.b16 %v1513, %v1509
        %v1822 = vpack.c.b16 %v1518, %v1514
        %v1823 = vpack.c.b16 %v1519, %v1515
        %v1824 = vpack.c.b16 %v1520, %v1516
        %v1825 = vpack.c.b16 %v1521, %v1517
        %v1826 = vpack.c.b16 %v1526, %v1522
        %v1827 = vpack.c.b16 %v1527, %v1523
        %v1828 = vpack.c.b16 %v1528, %v1524
        %v1829 = vpack.c.b16 %v1529, %v1525
        %v1830 = vpack.c.b16 %v1534, %v1530
        %v1831 = vpack.c.b16 %v1535, %v1531
        %v1832 = vpack.c.b16 %v1536, %v1532
        %v1833 = vpack.c.b16 %v1537, %v1533
        %v1834 = vpack.c.b16 %v1542, %v1538
        %v1835 = vpack.c.b16 %v1543, %v1539
        %v1836 = vpack.c.b16 %v1544, %v1540
        %v1837 = vpack.c.b16 %v1545, %v1541
        %v1838 = vpack.c.b16 %v1550, %v1546
        %v1839 = vpack.c.b16 %v1551, %v1547
        %v1840 = vpack.c.b16 %v1552, %v1548
        %v1841 = vpack.c.b16 %v1553, %v1549
        %v1842 = vpack.c.b16 %v1558, %v1554
        %v1843 = vpack.c.b16 %v1559, %v1555
        %v1844 = vpack.c.b16 %v1560, %v1556
        %v1845 = vpack.c.b16 %v1561, %v1557
        %v1846 = vpack.c.b16 %v1566, %v1562
        %v1847 = vpack.c.b16 %v1567, %v1563
        %v1848 = vpack.c.b16 %v1568, %v1564
        %v1849 = vpack.c.b16 %v1569, %v1565
        %v1850 = vpack.c.b16 %v1574, %v1570
        %v1851 = vpack.c.b16 %v1575, %v1571
        %v1852 = vpack.c.b16 %v1576, %v1572
        %v1853 = vpack.c.b16 %v1577, %v1573
        %v1854 = vpack.c.b16 %v1582, %v1578
        %v1855 = vpack.c.b16 %v1583, %v1579
        %v1856 = vpack.c.b16 %v1584, %v1580
        %v1857 = vpack.c.b16 %v1585, %v1581
        %v1858 = vpack.c.b16 %v1590, %v1586
        %v1859 = vpack.c.b16 %v1591, %v1587
        %v1860 = vpack.c.b16 %v1592, %v1588
        %v1861 = vpack.c.b16 %v1593, %v1589
        %v1862 = vpack.c.b16 %v1598, %v1594
        %v1863 = vpack.c.b16 %v1599, %v1595
        %v1864 = vpack.c.b16 %v1600, %v1596
        %v1865 = vpack.c.b16 %v1601, %v1597
        %v1866 = vpack.c.b16 %v1606, %v1602
        %v1867 = vpack.c.b16 %v1607, %v1603
        %v1868 = vpack.c.b16 %v1608, %v1604
        %v1869 = vpack.c.b16 %v1609, %v1605
        %v1870 = vpack.c.b16 %v1614, %v1610
        %v1871 = vpack.c.b16 %v1615, %v1611
        %v1872 = vpack.c.b16 %v1616, %v1612
        %v1873 = vpack.c.b16 %v1617, %v1613
        %v1874 = vpack.c.b16 %v1622, %v1618
        %v1875 = vpack.c.b16 %v1623, %v1619
        %v1876 = vpack.c.b16 %v1624, %v1620
        %v1877 = vpack.c.b16 %v1625, %v1621
        %v1878 = vpack.c.b16 %v1630, %v1626
        %v1879 = vpack.c.b16 %v1631, %v1627
        %v1880 = vpack.c.b16 %v1632, %v1628
        %v1881 = vpack.c.b16 %v1633, %v1629
        %v1882 = vpack.c.b16 %v1638, %v1634
        %v1883 = vpack.c.b16 %v1639, %v1635
        %v1884 = vpack.c.b16 %v1640, %v1636
        %v1885 = vpack.c.b16 %v1641, %v1637
        %v1886 = vpack.c.b16 %v1646, %v1642
        %v1887 = vpack.c.b16 %v1647, %v1643
        %v1888 = vpack.c.b16 %v1648, %v1644
        %v1889 = vpack.c.b16 %v1649, %v1645
        %v1890 = vpack.c.b16 %v1654, %v1650
        %v1891 = vpack.c.b16 %v1655, %v1651
        %v1892 = vpack.c.b16 %v1656, %v1652
        %v1893 = vpack.c.b16 %v1657, %v1653
        %v1894 = vpack.c.b16 %v1662, %v1658
        %v1895 = vpack.c.b16 %v1663, %v1659
        %v1896 = vpack.c.b16 %v1664, %v1660
        %v1897 = vpack.c.b16 %v1665, %v1661
        %v1898 = vpack.c.b16 %v1670, %v1666
        %v1899 = vpack.c.b16 %v1671, %v1667
        %v1900 = vpack.c.b16 %v1672, %v1668
        %v1901 = vpack.c.b16 %v1673, %v1669
        %v1902 = vpack.c.b16 %v1678, %v1674
        %v1903 = vpack.c.b16 %v1679, %v1675
        %v1904 = vpack.c.b16 %v1680, %v1676
        %v1905 = vpack.c.b16 %v1681, %v1677
        %2130 = vmatprep.subr.bf16.mxu0 %v1711
        %2131 = vmatpush1.bf16.msra.mxu0 %v1710
        %2132 = vmatprep.subr.bf16.mxu0 %v1707
        %2133 = vmatpush1.bf16.msra.mxu0 %v1706
        %2134 = vmatprep.subr.bf16.mxu0 %v1703
        %2135 = vmatpush1.bf16.msra.mxu0 %v1702
        %2136 = vmatprep.subr.bf16.mxu0 %v1699
        %2137 = vmatpush1.bf16.msra.mxu0 %v1698
        %2138 = vmatprep.subr.bf16.mxu0 %v1695
        %2139 = vmatpush1.bf16.msra.mxu0 %v1694
        %2140 = vmatprep.subr.bf16.mxu0 %v1691
        %2141 = vmatpush1.bf16.msra.mxu0 %v1690
        %2142 = vmatprep.subr.bf16.mxu0 %v1687
        %2143 = vmatpush1.bf16.msra.mxu0 %v1686
        %2144 = vmatprep.subr.bf16.mxu0 %v1683
        %2145 = vmatpush1.bf16.msra.mxu0 %v1682
        %2146 = vmatprep.subr.bf16.mxu0 %v1743
        %2147 = vmatpush2.bf16.msra.mxu0 %v1742
        %2148 = vmatprep.subr.bf16.mxu0 %v1739
        %2149 = vmatpush2.bf16.msra.mxu0 %v1738
        %2150 = vmatprep.subr.bf16.mxu0 %v1735
        %2151 = vmatpush2.bf16.msra.mxu0 %v1734
        %2152 = vmatprep.subr.bf16.mxu0 %v1731
        %2153 = vmatpush2.bf16.msra.mxu0 %v1730
        %2154 = vmatprep.subr.bf16.mxu0 %v1727
        %2155 = vmatpush2.bf16.msra.mxu0 %v1726
        %2156 = vmatprep.subr.bf16.mxu0 %v1723
        %2157 = vmatpush2.bf16.msra.mxu0 %v1722
        %2158 = vmatprep.subr.bf16.mxu0 %v1719
        %2159 = vmatpush2.bf16.msra.mxu0 %v1718
        %2160 = vmatprep.subr.bf16.mxu0 %v1715
        %2161 = vmatpush2.bf16.msra.mxu0 %v1714
        %2162 = vmatprep.mubr.bf16.mxu0 %v997
        %2163 = vmatmul.mubr.bf16.gmra.mxu0 %v996
        %v2164 = vpop.f32.mrf.mxu0
        %v2165 = vadd.f32 0.0, %v2164
        %v2166 = vpop.f32.mrf.mxu0
        %v2167 = vadd.f32 0.0, %v2166
        %v2168 = vpop.f32.mrf.mxu0
        %v2169 = vpop.f32.mrf.mxu0
        %2170 = vdwg.mxu0
        %2171 = vmatprep.subr.bf16.mxu0 %v1775
        %2172 = vmatpush1.bf16.msra.mxu0 %v1774
        %2173 = vmatprep.subr.bf16.mxu0 %v1771
        %2174 = vmatpush1.bf16.msra.mxu0 %v1770
        %2175 = vmatprep.subr.bf16.mxu0 %v1767
        %2176 = vmatpush1.bf16.msra.mxu0 %v1766
        %2177 = vmatprep.subr.bf16.mxu0 %v1763
        %2178 = vmatpush1.bf16.msra.mxu0 %v1762
        %2179 = vmatprep.subr.bf16.mxu0 %v1759
        %2180 = vmatpush1.bf16.msra.mxu0 %v1758
        %2181 = vmatprep.subr.bf16.mxu0 %v1755
        %2182 = vmatpush1.bf16.msra.mxu0 %v1754
        %2183 = vmatprep.subr.bf16.mxu0 %v1751
        %2184 = vmatpush1.bf16.msra.mxu0 %v1750
        %2185 = vmatprep.subr.bf16.mxu0 %v1747
        %2186 = vmatpush1.bf16.msra.mxu0 %v1746
        %2187 = vmatprep.subr.bf16.mxu0 %v1807
        %2188 = vmatpush2.bf16.msra.mxu0 %v1806
        %2189 = vmatprep.subr.bf16.mxu0 %v1803
        %2190 = vmatpush2.bf16.msra.mxu0 %v1802
        %2191 = vmatprep.subr.bf16.mxu0 %v1799
        %2192 = vmatpush2.bf16.msra.mxu0 %v1798
        %2193 = vmatprep.subr.bf16.mxu0 %v1795
        %2194 = vmatpush2.bf16.msra.mxu0 %v1794
        %2195 = vmatprep.subr.bf16.mxu0 %v1791
        %2196 = vmatpush2.bf16.msra.mxu0 %v1790
        %2197 = vmatprep.subr.bf16.mxu0 %v1787
        %2198 = vmatpush2.bf16.msra.mxu0 %v1786
        %2199 = vmatprep.subr.bf16.mxu0 %v1783
        %2200 = vmatpush2.bf16.msra.mxu0 %v1782
        %2201 = vmatprep.subr.bf16.mxu0 %v1779
        %2202 = vmatpush2.bf16.msra.mxu0 %v1778
        %2203 = vmatprep.mubr.bf16.mxu0 %v999
        %2204 = vmatmul.mubr.bf16.gmra.mxu0 %v998
        %v2205 = vpop.f32.mrf.mxu0
        %v2206 = vadd.f32 %v2165, %v2205
        %v2207 = vpop.f32.mrf.mxu0
        %v2208 = vadd.f32 %v2167, %v2207
        %v2209 = vpop.f32.mrf.mxu0
        %v2210 = vpop.f32.mrf.mxu0
        %2211 = vdwg.mxu0
        %2212 = vmatprep.subr.bf16.mxu0 %v1839
        %2213 = vmatpush1.bf16.msra.mxu0 %v1838
        %2214 = vmatprep.subr.bf16.mxu0 %v1835
        %2215 = vmatpush1.bf16.msra.mxu0 %v1834
        %2216 = vmatprep.subr.bf16.mxu0 %v1831
        %2217 = vmatpush1.bf16.msra.mxu0 %v1830
        %2218 = vmatprep.subr.bf16.mxu0 %v1827
        %2219 = vmatpush1.bf16.msra.mxu0 %v1826
        %2220 = vmatprep.subr.bf16.mxu0 %v1823
        %2221 = vmatpush1.bf16.msra.mxu0 %v1822
        %2222 = vmatprep.subr.bf16.mxu0 %v1819
        %2223 = vmatpush1.bf16.msra.mxu0 %v1818
        %2224 = vmatprep.subr.bf16.mxu0 %v1815
        %2225 = vmatpush1.bf16.msra.mxu0 %v1814
        %2226 = vmatprep.subr.bf16.mxu0 %v1811
        %2227 = vmatpush1.bf16.msra.mxu0 %v1810
        %2228 = vmatprep.subr.bf16.mxu0 %v1871
        %2229 = vmatpush2.bf16.msra.mxu0 %v1870
        %2230 = vmatprep.subr.bf16.mxu0 %v1867
        %2231 = vmatpush2.bf16.msra.mxu0 %v1866
        %2232 = vmatprep.subr.bf16.mxu0 %v1863
        %2233 = vmatpush2.bf16.msra.mxu0 %v1862
        %2234 = vmatprep.subr.bf16.mxu0 %v1859
        %2235 = vmatpush2.bf16.msra.mxu0 %v1858
        %2236 = vmatprep.subr.bf16.mxu0 %v1855
        %2237 = vmatpush2.bf16.msra.mxu0 %v1854
        %2238 = vmatprep.subr.bf16.mxu0 %v1851
        %2239 = vmatpush2.bf16.msra.mxu0 %v1850
        %2240 = vmatprep.subr.bf16.mxu0 %v1847
        %2241 = vmatpush2.bf16.msra.mxu0 %v1846
        %2242 = vmatprep.subr.bf16.mxu0 %v1843
        %2243 = vmatpush2.bf16.msra.mxu0 %v1842
        %2244 = vmatprep.mubr.bf16.mxu0 %v1001
        %2245 = vmatmul.mubr.bf16.gmra.mxu0 %v1000
        %v2246 = vpop.f32.mrf.mxu0
        %v2247 = vadd.f32 %v2206, %v2246
        %v2248 = vpop.f32.mrf.mxu0
        %v2249 = vadd.f32 %v2208, %v2248
        %v2250 = vpop.f32.mrf.mxu0
        %v2251 = vpop.f32.mrf.mxu0
        %2252 = vdwg.mxu0
        %2253 = vmatprep.subr.bf16.mxu0 %v1903
        %2254 = vmatpush1.bf16.msra.mxu0 %v1902
        %2255 = vmatprep.subr.bf16.mxu0 %v1899
        %2256 = vmatpush1.bf16.msra.mxu0 %v1898
        %2257 = vmatprep.subr.bf16.mxu0 %v1895
        %2258 = vmatpush1.bf16.msra.mxu0 %v1894
        %2259 = vmatprep.subr.bf16.mxu0 %v1891
        %2260 = vmatpush1.bf16.msra.mxu0 %v1890
        %2261 = vmatprep.subr.bf16.mxu0 %v1887
        %2262 = vmatpush1.bf16.msra.mxu0 %v1886
        %2263 = vmatprep.subr.bf16.mxu0 %v1883
        %2264 = vmatpush1.bf16.msra.mxu0 %v1882
        %2265 = vmatprep.subr.bf16.mxu0 %v1879
        %2266 = vmatpush1.bf16.msra.mxu0 %v1878
        %2267 = vmatprep.subr.bf16.mxu0 %v1875
        %2268 = vmatpush1.bf16.msra.mxu0 %v1874
        %2269 = vmatprep.subr.bf16.mxu0 0
        %2270 = vmatpush2.bf16.msra.mxu0 0
        %2271 = vmatprep.subr.bf16.mxu0 0
        %2272 = vmatpush2.bf16.msra.mxu0 0
        %2273 = vmatprep.subr.bf16.mxu0 0
        %2274 = vmatpush2.bf16.msra.mxu0 0
        %2275 = vmatprep.subr.bf16.mxu0 0
        %2276 = vmatpush2.bf16.msra.mxu0 0
        %2277 = vmatprep.subr.bf16.mxu0 0
        %2278 = vmatpush2.bf16.msra.mxu0 0
        %2279 = vmatprep.subr.bf16.mxu0 0
        %2280 = vmatpush2.bf16.msra.mxu0 0
        %2281 = vmatprep.subr.bf16.mxu0 0
        %2282 = vmatpush2.bf16.msra.mxu0 0
        %2283 = vmatprep.subr.bf16.mxu0 0
        %2284 = vmatpush2.bf16.msra.mxu0 0
        %2285 = vmatprep.mubr.bf16.mxu0 0
        %2286 = vmatmul.mubr.bf16.gmra.mxu0 %v1002
        %v2287 = vpop.f32.mrf.mxu0
        %v2288 = vadd.f32 %v2247, %v2287
        %v2289 = vpop.f32.mrf.mxu0
        %v2290 = vadd.f32 %v2249, %v2289
        %v2291 = vpop.f32.mrf.mxu0
        %v2292 = vpop.f32.mrf.mxu0
        %2293 = vdwg.mxu0
        %2294 = vmatprep.subr.bf16.mxu0 %v1713
        %2295 = vmatpush1.bf16.msra.mxu0 %v1712
        %2296 = vmatprep.subr.bf16.mxu0 %v1709
        %2297 = vmatpush1.bf16.msra.mxu0 %v1708
        %2298 = vmatprep.subr.bf16.mxu0 %v1705
        %2299 = vmatpush1.bf16.msra.mxu0 %v1704
        %2300 = vmatprep.subr.bf16.mxu0 %v1701
        %2301 = vmatpush1.bf16.msra.mxu0 %v1700
        %2302 = vmatprep.subr.bf16.mxu0 %v1697
        %2303 = vmatpush1.bf16.msra.mxu0 %v1696
        %2304 = vmatprep.subr.bf16.mxu0 %v1693
        %2305 = vmatpush1.bf16.msra.mxu0 %v1692
        %2306 = vmatprep.subr.bf16.mxu0 %v1689
        %2307 = vmatpush1.bf16.msra.mxu0 %v1688
        %2308 = vmatprep.subr.bf16.mxu0 %v1685
        %2309 = vmatpush1.bf16.msra.mxu0 %v1684
        %2310 = vmatprep.subr.bf16.mxu0 %v1745
        %2311 = vmatpush2.bf16.msra.mxu0 %v1744
        %2312 = vmatprep.subr.bf16.mxu0 %v1741
        %2313 = vmatpush2.bf16.msra.mxu0 %v1740
        %2314 = vmatprep.subr.bf16.mxu0 %v1737
        %2315 = vmatpush2.bf16.msra.mxu0 %v1736
        %2316 = vmatprep.subr.bf16.mxu0 %v1733
        %2317 = vmatpush2.bf16.msra.mxu0 %v1732
        %2318 = vmatprep.subr.bf16.mxu0 %v1729
        %2319 = vmatpush2.bf16.msra.mxu0 %v1728
        %2320 = vmatprep.subr.bf16.mxu0 %v1725
        %2321 = vmatpush2.bf16.msra.mxu0 %v1724
        %2322 = vmatprep.subr.bf16.mxu0 %v1721
        %2323 = vmatpush2.bf16.msra.mxu0 %v1720
        %2324 = vmatprep.subr.bf16.mxu0 %v1717
        %2325 = vmatpush2.bf16.msra.mxu0 %v1716
        %2326 = vmatprep.mubr.bf16.mxu0 %v997
        %2327 = vmatmul.mubr.bf16.gmra.mxu0 %v996
        %v2328 = vpop.f32.mrf.mxu0
        %v2329 = vadd.f32 0.0, %v2328
        %v2330 = vpop.f32.mrf.mxu0
        %v2331 = vadd.f32 0.0, %v2330
        %v2332 = vpop.f32.mrf.mxu0
        %v2333 = vpop.f32.mrf.mxu0
        %2334 = vdwg.mxu0
        %2335 = vmatprep.subr.bf16.mxu0 %v1777
        %2336 = vmatpush1.bf16.msra.mxu0 %v1776
        %2337 = vmatprep.subr.bf16.mxu0 %v1773
        %2338 = vmatpush1.bf16.msra.mxu0 %v1772
        %2339 = vmatprep.subr.bf16.mxu0 %v1769
        %2340 = vmatpush1.bf16.msra.mxu0 %v1768
        %2341 = vmatprep.subr.bf16.mxu0 %v1765
        %2342 = vmatpush1.bf16.msra.mxu0 %v1764
        %2343 = vmatprep.subr.bf16.mxu0 %v1761
        %2344 = vmatpush1.bf16.msra.mxu0 %v1760
        %2345 = vmatprep.subr.bf16.mxu0 %v1757
        %2346 = vmatpush1.bf16.msra.mxu0 %v1756
        %2347 = vmatprep.subr.bf16.mxu0 %v1753
        %2348 = vmatpush1.bf16.msra.mxu0 %v1752
        %2349 = vmatprep.subr.bf16.mxu0 %v1749
        %2350 = vmatpush1.bf16.msra.mxu0 %v1748
        %2351 = vmatprep.subr.bf16.mxu0 %v1809
        %2352 = vmatpush2.bf16.msra.mxu0 %v1808
        %2353 = vmatprep.subr.bf16.mxu0 %v1805
        %2354 = vmatpush2.bf16.msra.mxu0 %v1804
        %2355 = vmatprep.subr.bf16.mxu0 %v1801
        %2356 = vmatpush2.bf16.msra.mxu0 %v1800
        %2357 = vmatprep.subr.bf16.mxu0 %v1797
        %2358 = vmatpush2.bf16.msra.mxu0 %v1796
        %2359 = vmatprep.subr.bf16.mxu0 %v1793
        %2360 = vmatpush2.bf16.msra.mxu0 %v1792
        %2361 = vmatprep.subr.bf16.mxu0 %v1789
        %2362 = vmatpush2.bf16.msra.mxu0 %v1788
        %2363 = vmatprep.subr.bf16.mxu0 %v1785
        %2364 = vmatpush2.bf16.msra.mxu0 %v1784
        %2365 = vmatprep.subr.bf16.mxu0 %v1781
        %2366 = vmatpush2.bf16.msra.mxu0 %v1780
        %2367 = vmatprep.mubr.bf16.mxu0 %v999
        %2368 = vmatmul.mubr.bf16.gmra.mxu0 %v998
        %v2369 = vpop.f32.mrf.mxu0
        %v2370 = vadd.f32 %v2329, %v2369
        %v2371 = vpop.f32.mrf.mxu0
        %v2372 = vadd.f32 %v2331, %v2371
        %v2373 = vpop.f32.mrf.mxu0
        %v2374 = vpop.f32.mrf.mxu0
        %2375 = vdwg.mxu0
        %2376 = vmatprep.subr.bf16.mxu0 %v1841
        %2377 = vmatpush1.bf16.msra.mxu0 %v1840
        %2378 = vmatprep.subr.bf16.mxu0 %v1837
        %2379 = vmatpush1.bf16.msra.mxu0 %v1836
        %2380 = vmatprep.subr.bf16.mxu0 %v1833
        %2381 = vmatpush1.bf16.msra.mxu0 %v1832
        %2382 = vmatprep.subr.bf16.mxu0 %v1829
        %2383 = vmatpush1.bf16.msra.mxu0 %v1828
        %2384 = vmatprep.subr.bf16.mxu0 %v1825
        %2385 = vmatpush1.bf16.msra.mxu0 %v1824
        %2386 = vmatprep.subr.bf16.mxu0 %v1821
        %2387 = vmatpush1.bf16.msra.mxu0 %v1820
        %2388 = vmatprep.subr.bf16.mxu0 %v1817
        %2389 = vmatpush1.bf16.msra.mxu0 %v1816
        %2390 = vmatprep.subr.bf16.mxu0 %v1813
        %2391 = vmatpush1.bf16.msra.mxu0 %v1812
        %2392 = vmatprep.subr.bf16.mxu0 %v1873
        %2393 = vmatpush2.bf16.msra.mxu0 %v1872
        %2394 = vmatprep.subr.bf16.mxu0 %v1869
        %2395 = vmatpush2.bf16.msra.mxu0 %v1868
        %2396 = vmatprep.subr.bf16.mxu0 %v1865
        %2397 = vmatpush2.bf16.msra.mxu0 %v1864
        %2398 = vmatprep.subr.bf16.mxu0 %v1861
        %2399 = vmatpush2.bf16.msra.mxu0 %v1860
        %2400 = vmatprep.subr.bf16.mxu0 %v1857
        %2401 = vmatpush2.bf16.msra.mxu0 %v1856
        %2402 = vmatprep.subr.bf16.mxu0 %v1853
        %2403 = vmatpush2.bf16.msra.mxu0 %v1852
        %2404 = vmatprep.subr.bf16.mxu0 %v1849
        %2405 = vmatpush2.bf16.msra.mxu0 %v1848
        %2406 = vmatprep.subr.bf16.mxu0 %v1845
        %2407 = vmatpush2.bf16.msra.mxu0 %v1844
        %2408 = vmatprep.mubr.bf16.mxu0 %v1001
        %2409 = vmatmul.mubr.bf16.gmra.mxu0 %v1000
        %v2410 = vpop.f32.mrf.mxu0
        %v2411 = vadd.f32 %v2370, %v2410
        %v2412 = vpop.f32.mrf.mxu0
        %v2413 = vadd.f32 %v2372, %v2412
        %v2414 = vpop.f32.mrf.mxu0
        %v2415 = vpop.f32.mrf.mxu0
        %2416 = vdwg.mxu0
        %2417 = vmatprep.subr.bf16.mxu0 %v1905
        %2418 = vmatpush1.bf16.msra.mxu0 %v1904
        %2419 = vmatprep.subr.bf16.mxu0 %v1901
        %2420 = vmatpush1.bf16.msra.mxu0 %v1900
        %2421 = vmatprep.subr.bf16.mxu0 %v1897
        %2422 = vmatpush1.bf16.msra.mxu0 %v1896
        %2423 = vmatprep.subr.bf16.mxu0 %v1893
        %2424 = vmatpush1.bf16.msra.mxu0 %v1892
        %2425 = vmatprep.subr.bf16.mxu0 %v1889
        %2426 = vmatpush1.bf16.msra.mxu0 %v1888
        %2427 = vmatprep.subr.bf16.mxu0 %v1885
        %2428 = vmatpush1.bf16.msra.mxu0 %v1884
        %2429 = vmatprep.subr.bf16.mxu0 %v1881
        %2430 = vmatpush1.bf16.msra.mxu0 %v1880
        %2431 = vmatprep.subr.bf16.mxu0 %v1877
        %2432 = vmatpush1.bf16.msra.mxu0 %v1876
        %2433 = vmatprep.subr.bf16.mxu0 0
        %2434 = vmatpush2.bf16.msra.mxu0 0
        %2435 = vmatprep.subr.bf16.mxu0 0
        %2436 = vmatpush2.bf16.msra.mxu0 0
        %2437 = vmatprep.subr.bf16.mxu0 0
        %2438 = vmatpush2.bf16.msra.mxu0 0
        %2439 = vmatprep.subr.bf16.mxu0 0
        %2440 = vmatpush2.bf16.msra.mxu0 0
        %2441 = vmatprep.subr.bf16.mxu0 0
        %2442 = vmatpush2.bf16.msra.mxu0 0
        %2443 = vmatprep.subr.bf16.mxu0 0
        %2444 = vmatpush2.bf16.msra.mxu0 0
        %2445 = vmatprep.subr.bf16.mxu0 0
        %2446 = vmatpush2.bf16.msra.mxu0 0
        %2447 = vmatprep.subr.bf16.mxu0 0
        %2448 = vmatpush2.bf16.msra.mxu0 0
        %2449 = vmatprep.mubr.bf16.mxu0 0
        %2450 = vmatmul.mubr.bf16.gmra.mxu0 %v1002
        %v2451 = vpop.f32.mrf.mxu0
        %v2452 = vadd.f32 %v2411, %v2451
        %v2453 = vpop.f32.mrf.mxu0
        %v2454 = vadd.f32 %v2413, %v2453
        %v2455 = vpop.f32.mrf.mxu0
        %v2456 = vpop.f32.mrf.mxu0
        %2457 = vdwg.mxu0
        %v2458 = vadd.f32 %v753, %v2288
        %v2459 = vadd.f32 %v754, %v2290
        %v2460 = vadd.f32 %v755, %v2452
        %v2461 = vadd.f32 %v756, %v2454
        %2462 = vst [vmem:[%s742] sm:$0xff] %v2458
        %2463 = vst [vmem:[%s742 + $0x8] sm:$0xff] %v2459
        %2464 = vst [vmem:[%s742 + $0x10] sm:$0xff] %v2460
        %2465 = vst [vmem:[%s742 + $0x18] sm:$0xff] %v2461
        %p2466 = scmp.eq.s32.totalorder %s20, 6
        // Predicated region
        $region64: #{encoder_forward.6} parent=54 // pred_check
          %p2467 = pneg %p2466
        $region65: #{encoder_forward.6} parent=54 // pred_check_branch
          %2469 = sbr.rel (%p2467) target = $region67
        $region66: #{encoder_forward.6} parent=54 // pred_region
          %v2470 = vld [vmem:[%s742] sm:$0xff]
          %v2471 = vld [vmem:[%s742 + $0x8] sm:$0xff]
          %v2472 = vld [vmem:[%s742 + $0x10] sm:$0xff]
          %v2473 = vld [vmem:[%s742 + $0x18] sm:$0xff]
          %v2474 = vlaneseq
          %v2475 = vshrl.u32 %v2474, 7
          %vm2476 = vcmp.lt.s32.totalorder %v2475, 2
          %v2477 = vsel %vm2476, 1, 0
          %v2478 = vcvt.s32.f32 %v2477
          %v2479 = vmul.f32 %v2470, %v2478
          %v2480 = vmul.f32 %v2471, %v2478
          %v2481 = vmul.f32 %v2472, %v2478
          %v2482 = vmul.f32 %v2473, %v2478
          %v2483 = vrot.slane %v2479, 4
          %v2484 = vadd.f32 %v2479, %v2483
          %v2485 = vrot.slane %v2484, 2
          %v2486 = vadd.f32 %v2484, %v2485
          %v2487 = vrot.slane %v2486, 1
          %v2488 = vadd.f32 %v2486, %v2487
          %v2489 = vrot.slane %v2480, 4
          %v2490 = vadd.f32 %v2480, %v2489
          %v2491 = vrot.slane %v2490, 2
          %v2492 = vadd.f32 %v2490, %v2491
          %v2493 = vrot.slane %v2492, 1
          %v2494 = vadd.f32 %v2492, %v2493
          %v2495 = vrot.slane %v2481, 4
          %v2496 = vadd.f32 %v2481, %v2495
          %v2497 = vrot.slane %v2496, 2
          %v2498 = vadd.f32 %v2496, %v2497
          %v2499 = vrot.slane %v2498, 1
          %v2500 = vadd.f32 %v2498, %v2499
          %v2501 = vrot.slane %v2482, 4
          %v2502 = vadd.f32 %v2482, %v2501
          %v2503 = vrot.slane %v2502, 2
          %v2504 = vadd.f32 %v2502, %v2503
          %v2505 = vrot.slane %v2504, 1
          %v2506 = vadd.f32 %v2504, %v2505
          %v2507 = vmul.f32 %v2470, %v2470
          %v2508 = vmul.f32 %v2471, %v2471
          %v2509 = vmul.f32 %v2472, %v2472
          %v2510 = vmul.f32 %v2473, %v2473
          %v2511 = vmul.f32 %v2507, %v2478
          %v2512 = vmul.f32 %v2508, %v2478
          %v2513 = vmul.f32 %v2509, %v2478
          %v2514 = vmul.f32 %v2510, %v2478
          %v2515 = vrot.slane %v2511, 4
          %v2516 = vadd.f32 %v2511, %v2515
          %v2517 = vrot.slane %v2516, 2
          %v2518 = vadd.f32 %v2516, %v2517
          %v2519 = vrot.slane %v2518, 1
          %v2520 = vadd.f32 %v2518, %v2519
          %v2521 = vrot.slane %v2512, 4
          %v2522 = vadd.f32 %v2512, %v2521
          %v2523 = vrot.slane %v2522, 2
          %v2524 = vadd.f32 %v2522, %v2523
          %v2525 = vrot.slane %v2524, 1
          %v2526 = vadd.f32 %v2524, %v2525
          %v2527 = vrot.slane %v2513, 4
          %v2528 = vadd.f32 %v2513, %v2527
          %v2529 = vrot.slane %v2528, 2
          %v2530 = vadd.f32 %v2528, %v2529
          %v2531 = vrot.slane %v2530, 1
          %v2532 = vadd.f32 %v2530, %v2531
          %v2533 = vrot.slane %v2514, 4
          %v2534 = vadd.f32 %v2514, %v2533
          %v2535 = vrot.slane %v2534, 2
          %v2536 = vadd.f32 %v2534, %v2535
          %v2537 = vrot.slane %v2536, 1
          %v2538 = vadd.f32 %v2536, %v2537
          %v2539 = vmul.f32 %v2488, 0.5
          %v2540 = vmul.f32 %v2494, 0.5
          %v2541 = vmul.f32 %v2500, 0.5
          %v2542 = vmul.f32 %v2506, 0.5
          %v2543 = vmul.f32 %v2520, 0.5
          %v2544 = vmul.f32 %v2526, 0.5
          %v2545 = vmul.f32 %v2532, 0.5
          %v2546 = vmul.f32 %v2538, 0.5
          %v2547 = vmul.f32 %v2539, %v2539
          %v2548 = vmul.f32 %v2540, %v2540
          %v2549 = vmul.f32 %v2541, %v2541
          %v2550 = vmul.f32 %v2542, %v2542
          %v2551 = vsub.f32 %v2543, %v2547
          %v2552 = vsub.f32 %v2544, %v2548
          %v2553 = vsub.f32 %v2545, %v2549
          %v2554 = vsub.f32 %v2546, %v2550
          %v2555 = vadd.f32 %v2551, 1e-05
          %v2556 = vadd.f32 %v2552, 1e-05
          %v2557 = vadd.f32 %v2553, 1e-05
          %v2558 = vadd.f32 %v2554, 1e-05
          %v2559 = vrsqrt.pop %v2555
          %v2560 = vrsqrt.pop %v2556
          %v2561 = vrsqrt.pop %v2557
          %v2562 = vrsqrt.pop %v2558
          %v2563 = vsub.f32 %v2470, %v2539
          %v2564 = vsub.f32 %v2471, %v2540
          %v2565 = vsub.f32 %v2472, %v2541
          %v2566 = vsub.f32 %v2473, %v2542
          %v2567 = vld [vmem:[%s731] sm:$0xf]
          %v2569 = vlaneseq
          %v2570 = vshrl.u32 %v2569, 7
          %v2571 = vsub.s32 0, %v2570
          %v2572 = vrot.slane %v2567, %v2571
          %v2573 = vlaneseq
          %v2574 = vshrl.u32 %v2573, 7
          %v2575 = vsub.s32 1, %v2574
          %v2576 = vrot.slane %v2567, %v2575
          %v2577 = vlaneseq
          %v2578 = vshrl.u32 %v2577, 7
          %v2579 = vsub.s32 2, %v2578
          %v2580 = vrot.slane %v2567, %v2579
          %v2581 = vlaneseq
          %v2582 = vshrl.u32 %v2581, 7
          %v2583 = vsub.s32 3, %v2582
          %v2584 = vrot.slane %v2567, %v2583
          %v2589 = vmul.f32 %v2559, %v2572
          %v2590 = vmul.f32 %v2560, %v2576
          %v2591 = vmul.f32 %v2561, %v2580
          %v2592 = vmul.f32 %v2562, %v2584
          %v2593 = vlaneseq
          %v2594 = vshrl.u32 %v2593, 7
          %v2595 = vsub.s32 0, %v2594
          %v2596 = vrot.slane %v2589, %v2595
          %v2597 = vlaneseq
          %v2598 = vshrl.u32 %v2597, 7
          %v2599 = vsub.s32 0, %v2598
          %v2600 = vrot.slane %v2590, %v2599
          %v2601 = vlaneseq
          %v2602 = vshrl.u32 %v2601, 7
          %v2603 = vsub.s32 0, %v2602
          %v2604 = vrot.slane %v2591, %v2603
          %v2605 = vlaneseq
          %v2606 = vshrl.u32 %v2605, 7
          %v2607 = vsub.s32 0, %v2606
          %v2608 = vrot.slane %v2592, %v2607
          %v2609 = vmul.f32 %v2563, %v2596
          %v2610 = vmul.f32 %v2564, %v2600
          %v2611 = vmul.f32 %v2565, %v2604
          %v2612 = vmul.f32 %v2566, %v2608
          %v2613 = vld [vmem:[%s736] sm:$0xf]
          %v2615 = vlaneseq
          %v2616 = vshrl.u32 %v2615, 7
          %v2617 = vsub.s32 0, %v2616
          %v2618 = vrot.slane %v2613, %v2617
          %v2619 = vlaneseq
          %v2620 = vshrl.u32 %v2619, 7
          %v2621 = vsub.s32 1, %v2620
          %v2622 = vrot.slane %v2613, %v2621
          %v2623 = vlaneseq
          %v2624 = vshrl.u32 %v2623, 7
          %v2625 = vsub.s32 2, %v2624
          %v2626 = vrot.slane %v2613, %v2625
          %v2627 = vlaneseq
          %v2628 = vshrl.u32 %v2627, 7
          %v2629 = vsub.s32 3, %v2628
          %v2630 = vrot.slane %v2613, %v2629
          %v2635 = vadd.f32 %v2609, %v2618
          %v2636 = vadd.f32 %v2610, %v2622
          %v2637 = vadd.f32 %v2611, %v2626
          %v2638 = vadd.f32 %v2612, %v2630
          %vm2639 = vcmp.ge.f32.partialorder %v2635, 0.0
          %vm2640 = vcmp.ge.f32.partialorder %v2636, 0.0
          %vm2641 = vcmp.ge.f32.partialorder %v2637, 0.0
          %vm2642 = vcmp.ge.f32.partialorder %v2638, 0.0
          %v2643 = vmul.f32 %v2635, 0.1
          %v2644 = vmul.f32 %v2636, 0.1
          %v2645 = vmul.f32 %v2637, 0.1
          %v2646 = vmul.f32 %v2638, 0.1
          %v2647 = vsel %vm2639, %v2635, %v2643
          %v2648 = vsel %vm2640, %v2636, %v2644
          %v2649 = vsel %vm2641, %v2637, %v2645
          %v2650 = vsel %vm2642, %v2638, %v2646
          %2651 = vst [vmem:[%s742] sm:$0xff] %v2647
          %2652 = vst [vmem:[%s742 + $0x8] sm:$0xff] %v2648
          %2653 = vst [vmem:[%s742 + $0x10] sm:$0xff] %v2649
          %2654 = vst [vmem:[%s742 + $0x18] sm:$0xff] %v2650
        $region67: #{encoder_forward.6} parent=54 // pred_fallthru
          _
        %s2655 = smul.u32 4, %s19
        %p2656 = scmp.lt.s32.totalorder %s2655, 7
        %s2657 = scalar_select %p2656, %s2655, 7
        %s2658 = smul.addr %s2657, 8
        %s2659 = scalar_lea.vmem %s4, %s2658
        // Predicated region
        $region68: #{encoder_forward.6} parent=54 // pred_check
          %p2660 = pneg %p151
        $region69: #{encoder_forward.6} parent=54 // pred_check_branch
          %2662 = sbr.rel (%p2660) target = $region71
        $region70: #{encoder_forward.6} parent=54 // pred_region
          %s2663 = smul.u32 4, %s19
        $region71: #{encoder_forward.6} parent=54 // pred_fallthru
          _
      $region55: #{encoder_forward.6} parent=5 // pred_fallthru
        _
      %p2664 = scmp.le.s32.totalorder 2, %s10
      // Predicated region
      $region72: #{encoder_forward.6} parent=5 // pred_check
        %p2665 = pneg %p2664
      $region73: #{encoder_forward.6} parent=5 // pred_check_branch
        %2667 = sbr.rel (%p2665) target = $region75
      $region74: #{encoder_forward.6} parent=5 // pred_region
        %s2668 = ssub.s32 %s10, 2
        // Predicated region
        $region76: #{encoder_forward.6} parent=74 // pred_check
          %p2669 = pneg %p157
        $region77: #{encoder_forward.6} parent=74 // pred_check_branch
          %2671 = sbr.rel (%p2669) target = $region79
        $region78: #{encoder_forward.6} parent=74 // pred_region
          %s2672 = smul.u32 4, %s21
          %p2673 = scmp.lt.s32.totalorder %s2672, 7
          %s2674 = scalar_select %p2673, %s2672, 7
          %s2675 = smul.addr %s2674, 8
          %s2676 = scalar_lea.vmem %s4, %s2675
        $region79: #{encoder_forward.6} parent=74 // pred_fallthru
          _
      $region75: #{encoder_forward.6} parent=5 // pred_fallthru
        _
    $region6: #{encoder_forward.6} parent=1 // loop_footer
      %s14 = sadd.s32 1, %s10
    $region7: #{encoder_forward.6} parent=1 // loop_footer_branch
      %9 = sbr.rel target = $region3
    $region8: #{encoder_forward.6} parent=1 // loop_exit
      _

// kernel: encoder_forward.7
$region0: #{encoder_forward.7}
  #allocation0 [shape = 'u32[]', space=smem, size = 0x4, offset = 0x4, fixed_abs, tag = 'smem constant byte address 0x4 - core index']
  #allocation1 [shape = 'u32[144,128]{1,0:T(1,128)}', space=vmem, size = 0x12000, scoped, tag = 'internal scratch']
  %s0 = inlined_call_operand.vmem [shape: bf16[8,1024], index: 0, kind: input, shape index: {}]
  %s1 = inlined_call_operand.vmem [shape: bf16[1024,256], index: 1, kind: input, shape index: {}]
  %s2 = inlined_call_operand.vmem [shape: f32[1,256], index: 2, kind: input, shape index: {}]
  %s3 = inlined_call_operand.vmem [shape: f32[8,256], index: 3, kind: output, shape index: {}]
  %s4 = sld [smem:[#allocation0]]
  $region30: #{encoder_forward.7} parent=0
    _
  %s6 = ssub.s32 1, %s4
  %s7 = scalar_select 0, %s6, %s4
  // Predicated region
  $region2: #{encoder_forward.7} parent=0 // pred_check
    _
  $region3: #{encoder_forward.7} parent=0 // pred_check_branch
    %9 = sbr.rel (0) target = $region5
  $region4: #{encoder_forward.7} parent=0 // pred_region
    _
  $region5: #{encoder_forward.7} parent=0 // pred_fallthru
    _
  // Predicated region
  $region6: #{encoder_forward.7} parent=0 // pred_check
    _
  $region7: #{encoder_forward.7} parent=0 // pred_check_branch
    %11 = sbr.rel (0) target = $region9
  $region8: #{encoder_forward.7} parent=0 // pred_region
    _
  $region9: #{encoder_forward.7} parent=0 // pred_fallthru
    _
  // Predicated region
  $region10: #{encoder_forward.7} parent=0 // pred_check
    _
  $region11: #{encoder_forward.7} parent=0 // pred_check_branch
    %13 = sbr.rel (0) target = $region13
  $region12: #{encoder_forward.7} parent=0 // pred_region
    _
  $region13: #{encoder_forward.7} parent=0 // pred_fallthru
    _
  %p14 = scmp.eq.s32.totalorder 0, 0
  // Predicated region
  $region14: #{encoder_forward.7} parent=0 // pred_check
    %p15 = pneg %p14
  $region15: #{encoder_forward.7} parent=0 // pred_check_branch
    %17 = sbr.rel (%p15) target = $region17
  $region16: #{encoder_forward.7} parent=0 // pred_region
    %18 = vst [vmem:[%s3] sm:$0xff] 0.0
    %19 = vst [vmem:[%s3 + $0x8] sm:$0xff] 0.0
  $region17: #{encoder_forward.7} parent=0 // pred_fallthru
    _
  %v20 = vld [vmem:[%s3] sm:$0xff]
  %v21 = vld [vmem:[%s3 + $0x8] sm:$0xff]
  %v22 = vld [vmem:[%s0] sm:$0xff]
  %v23 = vld [vmem:[%s0 + $0x8] sm:$0xff]
  %v24 = vld [vmem:[%s0 + $0x10] sm:$0xff]
  %v25 = vld [vmem:[%s0 + $0x18] sm:$0xff]
  %v26 = vld [vmem:[%s1] sm:$0xff]
  %v27 = vld [vmem:[%s1 + $0x8] sm:$0xff]
  %v28 = vld [vmem:[%s1 + $0x10] sm:$0xff]
  %v29 = vld [vmem:[%s1 + $0x18] sm:$0xff]
  %v30 = vld [vmem:[%s1 + $0x20] sm:$0xff]
  %v31 = vld [vmem:[%s1 + $0x28] sm:$0xff]
  %v32 = vld [vmem:[%s1 + $0x30] sm:$0xff]
  %v33 = vld [vmem:[%s1 + $0x38] sm:$0xff]
  %v34 = vld [vmem:[%s1 + $0x40] sm:$0xff]
  %v35 = vld [vmem:[%s1 + $0x48] sm:$0xff]
  %v36 = vld [vmem:[%s1 + $0x50] sm:$0xff]
  %v37 = vld [vmem:[%s1 + $0x58] sm:$0xff]
  %v38 = vld [vmem:[%s1 + $0x60] sm:$0xff]
  %v39 = vld [vmem:[%s1 + $0x68] sm:$0xff]
  %v40 = vld [vmem:[%s1 + $0x70] sm:$0xff]
  %v41 = vld [vmem:[%s1 + $0x78] sm:$0xff]
  %v42 = vld [vmem:[%s1 + $0x80] sm:$0xff]
  %v43 = vld [vmem:[%s1 + $0x88] sm:$0xff]
  %v44 = vld [vmem:[%s1 + $0x90] sm:$0xff]
  %v45 = vld [vmem:[%s1 + $0x98] sm:$0xff]
  %v46 = vld [vmem:[%s1 + $0xa0] sm:$0xff]
  %v47 = vld [vmem:[%s1 + $0xa8] sm:$0xff]
  %v48 = vld [vmem:[%s1 + $0xb0] sm:$0xff]
  %v49 = vld [vmem:[%s1 + $0xb8] sm:$0xff]
  %v50 = vld [vmem:[%s1 + $0xc0] sm:$0xff]
  %v51 = vld [vmem:[%s1 + $0xc8] sm:$0xff]
  %v52 = vld [vmem:[%s1 + $0xd0] sm:$0xff]
  %v53 = vld [vmem:[%s1 + $0xd8] sm:$0xff]
  %v54 = vld [vmem:[%s1 + $0xe0] sm:$0xff]
  %v55 = vld [vmem:[%s1 + $0xe8] sm:$0xff]
  %v56 = vld [vmem:[%s1 + $0xf0] sm:$0xff]
  %v57 = vld [vmem:[%s1 + $0xf8] sm:$0xff]
  %v58 = vld [vmem:[%s1 + $0x100] sm:$0xff]
  %v59 = vld [vmem:[%s1 + $0x108] sm:$0xff]
  %v60 = vld [vmem:[%s1 + $0x110] sm:$0xff]
  %v61 = vld [vmem:[%s1 + $0x118] sm:$0xff]
  %v62 = vld [vmem:[%s1 + $0x120] sm:$0xff]
  %v63 = vld [vmem:[%s1 + $0x128] sm:$0xff]
  %v64 = vld [vmem:[%s1 + $0x130] sm:$0xff]
  %v65 = vld [vmem:[%s1 + $0x138] sm:$0xff]
  %v66 = vld [vmem:[%s1 + $0x140] sm:$0xff]
  %v67 = vld [vmem:[%s1 + $0x148] sm:$0xff]
  %v68 = vld [vmem:[%s1 + $0x150] sm:$0xff]
  %v69 = vld [vmem:[%s1 + $0x158] sm:$0xff]
  %v70 = vld [vmem:[%s1 + $0x160] sm:$0xff]
  %v71 = vld [vmem:[%s1 + $0x168] sm:$0xff]
  %v72 = vld [vmem:[%s1 + $0x170] sm:$0xff]
  %v73 = vld [vmem:[%s1 + $0x178] sm:$0xff]
  %v74 = vld [vmem:[%s1 + $0x180] sm:$0xff]
  %v75 = vld [vmem:[%s1 + $0x188] sm:$0xff]
  %v76 = vld [vmem:[%s1 + $0x190] sm:$0xff]
  %v77 = vld [vmem:[%s1 + $0x198] sm:$0xff]
  %v78 = vld [vmem:[%s1 + $0x1a0] sm:$0xff]
  %v79 = vld [vmem:[%s1 + $0x1a8] sm:$0xff]
  %v80 = vld [vmem:[%s1 + $0x1b0] sm:$0xff]
  %v81 = vld [vmem:[%s1 + $0x1b8] sm:$0xff]
  %v82 = vld [vmem:[%s1 + $0x1c0] sm:$0xff]
  %v83 = vld [vmem:[%s1 + $0x1c8] sm:$0xff]
  %v84 = vld [vmem:[%s1 + $0x1d0] sm:$0xff]
  %v85 = vld [vmem:[%s1 + $0x1d8] sm:$0xff]
  %v86 = vld [vmem:[%s1 + $0x1e0] sm:$0xff]
  %v87 = vld [vmem:[%s1 + $0x1e8] sm:$0xff]
  %v88 = vld [vmem:[%s1 + $0x1f0] sm:$0xff]
  %v89 = vld [vmem:[%s1 + $0x1f8] sm:$0xff]
  %v90 = vld [vmem:[%s1 + $0x200] sm:$0xff]
  %v91 = vld [vmem:[%s1 + $0x208] sm:$0xff]
  %v92 = vld [vmem:[%s1 + $0x210] sm:$0xff]
  %v93 = vld [vmem:[%s1 + $0x218] sm:$0xff]
  %v94 = vld [vmem:[%s1 + $0x220] sm:$0xff]
  %v95 = vld [vmem:[%s1 + $0x228] sm:$0xff]
  %v96 = vld [vmem:[%s1 + $0x230] sm:$0xff]
  %v97 = vld [vmem:[%s1 + $0x238] sm:$0xff]
  %v98 = vld [vmem:[%s1 + $0x240] sm:$0xff]
  %v99 = vld [vmem:[%s1 + $0x248] sm:$0xff]
  %v100 = vld [vmem:[%s1 + $0x250] sm:$0xff]
  %v101 = vld [vmem:[%s1 + $0x258] sm:$0xff]
  %v102 = vld [vmem:[%s1 + $0x260] sm:$0xff]
  %v103 = vld [vmem:[%s1 + $0x268] sm:$0xff]
  %v104 = vld [vmem:[%s1 + $0x270] sm:$0xff]
  %v105 = vld [vmem:[%s1 + $0x278] sm:$0xff]
  %v106 = vld [vmem:[%s1 + $0x280] sm:$0xff]
  %v107 = vld [vmem:[%s1 + $0x288] sm:$0xff]
  %v108 = vld [vmem:[%s1 + $0x290] sm:$0xff]
  %v109 = vld [vmem:[%s1 + $0x298] sm:$0xff]
  %v110 = vld [vmem:[%s1 + $0x2a0] sm:$0xff]
  %v111 = vld [vmem:[%s1 + $0x2a8] sm:$0xff]
  %v112 = vld [vmem:[%s1 + $0x2b0] sm:$0xff]
  %v113 = vld [vmem:[%s1 + $0x2b8] sm:$0xff]
  %v114 = vld [vmem:[%s1 + $0x2c0] sm:$0xff]
  %v115 = vld [vmem:[%s1 + $0x2c8] sm:$0xff]
  %v116 = vld [vmem:[%s1 + $0x2d0] sm:$0xff]
  %v117 = vld [vmem:[%s1 + $0x2d8] sm:$0xff]
  %v118 = vld [vmem:[%s1 + $0x2e0] sm:$0xff]
  %v119 = vld [vmem:[%s1 + $0x2e8] sm:$0xff]
  %v120 = vld [vmem:[%s1 + $0x2f0] sm:$0xff]
  %v121 = vld [vmem:[%s1 + $0x2f8] sm:$0xff]
  %v122 = vld [vmem:[%s1 + $0x300] sm:$0xff]
  %v123 = vld [vmem:[%s1 + $0x308] sm:$0xff]
  %v124 = vld [vmem:[%s1 + $0x310] sm:$0xff]
  %v125 = vld [vmem:[%s1 + $0x318] sm:$0xff]
  %v126 = vld [vmem:[%s1 + $0x320] sm:$0xff]
  %v127 = vld [vmem:[%s1 + $0x328] sm:$0xff]
  %v128 = vld [vmem:[%s1 + $0x330] sm:$0xff]
  %v129 = vld [vmem:[%s1 + $0x338] sm:$0xff]
  %v130 = vld [vmem:[%s1 + $0x340] sm:$0xff]
  %v131 = vld [vmem:[%s1 + $0x348] sm:$0xff]
  %v132 = vld [vmem:[%s1 + $0x350] sm:$0xff]
  %v133 = vld [vmem:[%s1 + $0x358] sm:$0xff]
  %v134 = vld [vmem:[%s1 + $0x360] sm:$0xff]
  %v135 = vld [vmem:[%s1 + $0x368] sm:$0xff]
  %v136 = vld [vmem:[%s1 + $0x370] sm:$0xff]
  %v137 = vld [vmem:[%s1 + $0x378] sm:$0xff]
  %v138 = vld [vmem:[%s1 + $0x380] sm:$0xff]
  %v139 = vld [vmem:[%s1 + $0x388] sm:$0xff]
  %v140 = vld [vmem:[%s1 + $0x390] sm:$0xff]
  %v141 = vld [vmem:[%s1 + $0x398] sm:$0xff]
  %v142 = vld [vmem:[%s1 + $0x3a0] sm:$0xff]
  %v143 = vld [vmem:[%s1 + $0x3a8] sm:$0xff]
  %v144 = vld [vmem:[%s1 + $0x3b0] sm:$0xff]
  %v145 = vld [vmem:[%s1 + $0x3b8] sm:$0xff]
  %v146 = vld [vmem:[%s1 + $0x3c0] sm:$0xff]
  %v147 = vld [vmem:[%s1 + $0x3c8] sm:$0xff]
  %v148 = vld [vmem:[%s1 + $0x3d0] sm:$0xff]
  %v149 = vld [vmem:[%s1 + $0x3d8] sm:$0xff]
  %v150 = vld [vmem:[%s1 + $0x3e0] sm:$0xff]
  %v151 = vld [vmem:[%s1 + $0x3e8] sm:$0xff]
  %v152 = vld [vmem:[%s1 + $0x3f0] sm:$0xff]
  %v153 = vld [vmem:[%s1 + $0x3f8] sm:$0xff]
  %v158 = vunpack.c.l.b16 %v22
  %v159 = vunpack.c.h.b16 %v22
  %v160 = vunpack.c.l.b16 %v23
  %v161 = vunpack.c.h.b16 %v23
  %v162 = vunpack.c.l.b16 %v24
  %v163 = vunpack.c.h.b16 %v24
  %v164 = vunpack.c.l.b16 %v25
  %v165 = vunpack.c.h.b16 %v25
  %v166 = vpack.c.b16 %v158, %v158
  %v167 = vpack.c.b16 %v159, %v159
  %v168 = vpack.c.b16 %v160, %v160
  %v169 = vpack.c.b16 %v161, %v161
  %v170 = vpack.c.b16 %v162, %v162
  %v171 = vpack.c.b16 %v163, %v163
  %v172 = vpack.c.b16 %v164, %v164
  %v173 = vpack.c.b16 %v165, %v165
  %v310 = vunpack.c.l.b16 %v26
  %v311 = vunpack.c.h.b16 %v26
  %v312 = vunpack.c.l.b16 %v27
  %v313 = vunpack.c.h.b16 %v27
  %v314 = vunpack.c.l.b16 %v28
  %v315 = vunpack.c.h.b16 %v28
  %v316 = vunpack.c.l.b16 %v29
  %v317 = vunpack.c.h.b16 %v29
  %v318 = vunpack.c.l.b16 %v30
  %v319 = vunpack.c.h.b16 %v30
  %v320 = vunpack.c.l.b16 %v31
  %v321 = vunpack.c.h.b16 %v31
  %v322 = vunpack.c.l.b16 %v32
  %v323 = vunpack.c.h.b16 %v32
  %v324 = vunpack.c.l.b16 %v33
  %v325 = vunpack.c.h.b16 %v33
  %v326 = vunpack.c.l.b16 %v34
  %v327 = vunpack.c.h.b16 %v34
  %v328 = vunpack.c.l.b16 %v35
  %v329 = vunpack.c.h.b16 %v35
  %v330 = vunpack.c.l.b16 %v36
  %v331 = vunpack.c.h.b16 %v36
  %v332 = vunpack.c.l.b16 %v37
  %v333 = vunpack.c.h.b16 %v37
  %v334 = vunpack.c.l.b16 %v38
  %v335 = vunpack.c.h.b16 %v38
  %v336 = vunpack.c.l.b16 %v39
  %v337 = vunpack.c.h.b16 %v39
  %v338 = vunpack.c.l.b16 %v40
  %v339 = vunpack.c.h.b16 %v40
  %v340 = vunpack.c.l.b16 %v41
  %v341 = vunpack.c.h.b16 %v41
  %v342 = vunpack.c.l.b16 %v42
  %v343 = vunpack.c.h.b16 %v42
  %v344 = vunpack.c.l.b16 %v43
  %v345 = vunpack.c.h.b16 %v43
  %v346 = vunpack.c.l.b16 %v44
  %v347 = vunpack.c.h.b16 %v44
  %v348 = vunpack.c.l.b16 %v45
  %v349 = vunpack.c.h.b16 %v45
  %v350 = vunpack.c.l.b16 %v46
  %v351 = vunpack.c.h.b16 %v46
  %v352 = vunpack.c.l.b16 %v47
  %v353 = vunpack.c.h.b16 %v47
  %v354 = vunpack.c.l.b16 %v48
  %v355 = vunpack.c.h.b16 %v48
  %v356 = vunpack.c.l.b16 %v49
  %v357 = vunpack.c.h.b16 %v49
  %v358 = vunpack.c.l.b16 %v50
  %v359 = vunpack.c.h.b16 %v50
  %v360 = vunpack.c.l.b16 %v51
  %v361 = vunpack.c.h.b16 %v51
  %v362 = vunpack.c.l.b16 %v52
  %v363 = vunpack.c.h.b16 %v52
  %v364 = vunpack.c.l.b16 %v53
  %v365 = vunpack.c.h.b16 %v53
  %v366 = vunpack.c.l.b16 %v54
  %v367 = vunpack.c.h.b16 %v54
  %v368 = vunpack.c.l.b16 %v55
  %v369 = vunpack.c.h.b16 %v55
  %v370 = vunpack.c.l.b16 %v56
  %v371 = vunpack.c.h.b16 %v56
  %v372 = vunpack.c.l.b16 %v57
  %v373 = vunpack.c.h.b16 %v57
  %v374 = vunpack.c.l.b16 %v58
  %v375 = vunpack.c.h.b16 %v58
  %v376 = vunpack.c.l.b16 %v59
  %v377 = vunpack.c.h.b16 %v59
  %v378 = vunpack.c.l.b16 %v60
  %v379 = vunpack.c.h.b16 %v60
  %v380 = vunpack.c.l.b16 %v61
  %v381 = vunpack.c.h.b16 %v61
  %v382 = vunpack.c.l.b16 %v62
  %v383 = vunpack.c.h.b16 %v62
  %v384 = vunpack.c.l.b16 %v63
  %v385 = vunpack.c.h.b16 %v63
  %v386 = vunpack.c.l.b16 %v64
  %v387 = vunpack.c.h.b16 %v64
  %v388 = vunpack.c.l.b16 %v65
  %v389 = vunpack.c.h.b16 %v65
  %v390 = vunpack.c.l.b16 %v66
  %v391 = vunpack.c.h.b16 %v66
  %v392 = vunpack.c.l.b16 %v67
  %v393 = vunpack.c.h.b16 %v67
  %v394 = vunpack.c.l.b16 %v68
  %v395 = vunpack.c.h.b16 %v68
  %v396 = vunpack.c.l.b16 %v69
  %v397 = vunpack.c.h.b16 %v69
  %v398 = vunpack.c.l.b16 %v70
  %v399 = vunpack.c.h.b16 %v70
  %v400 = vunpack.c.l.b16 %v71
  %v401 = vunpack.c.h.b16 %v71
  %v402 = vunpack.c.l.b16 %v72
  %v403 = vunpack.c.h.b16 %v72
  %v404 = vunpack.c.l.b16 %v73
  %v405 = vunpack.c.h.b16 %v73
  %v406 = vunpack.c.l.b16 %v74
  %v407 = vunpack.c.h.b16 %v74
  %v408 = vunpack.c.l.b16 %v75
  %v409 = vunpack.c.h.b16 %v75
  %v410 = vunpack.c.l.b16 %v76
  %v411 = vunpack.c.h.b16 %v76
  %v412 = vunpack.c.l.b16 %v77
  %v413 = vunpack.c.h.b16 %v77
  %v414 = vunpack.c.l.b16 %v78
  %v415 = vunpack.c.h.b16 %v78
  %v416 = vunpack.c.l.b16 %v79
  %v417 = vunpack.c.h.b16 %v79
  %v418 = vunpack.c.l.b16 %v80
  %v419 = vunpack.c.h.b16 %v80
  %v420 = vunpack.c.l.b16 %v81
  %v421 = vunpack.c.h.b16 %v81
  %v422 = vunpack.c.l.b16 %v82
  %v423 = vunpack.c.h.b16 %v82
  %v424 = vunpack.c.l.b16 %v83
  %v425 = vunpack.c.h.b16 %v83
  %v426 = vunpack.c.l.b16 %v84
  %v427 = vunpack.c.h.b16 %v84
  %v428 = vunpack.c.l.b16 %v85
  %v429 = vunpack.c.h.b16 %v85
  %v430 = vunpack.c.l.b16 %v86
  %v431 = vunpack.c.h.b16 %v86
  %v432 = vunpack.c.l.b16 %v87
  %v433 = vunpack.c.h.b16 %v87
  %v434 = vunpack.c.l.b16 %v88
  %v435 = vunpack.c.h.b16 %v88
  %v436 = vunpack.c.l.b16 %v89
  %v437 = vunpack.c.h.b16 %v89
  %v438 = vunpack.c.l.b16 %v90
  %v439 = vunpack.c.h.b16 %v90
  %v440 = vunpack.c.l.b16 %v91
  %v441 = vunpack.c.h.b16 %v91
  %v442 = vunpack.c.l.b16 %v92
  %v443 = vunpack.c.h.b16 %v92
  %v444 = vunpack.c.l.b16 %v93
  %v445 = vunpack.c.h.b16 %v93
  %v446 = vunpack.c.l.b16 %v94
  %v447 = vunpack.c.h.b16 %v94
  %v448 = vunpack.c.l.b16 %v95
  %v449 = vunpack.c.h.b16 %v95
  %v450 = vunpack.c.l.b16 %v96
  %v451 = vunpack.c.h.b16 %v96
  %v452 = vunpack.c.l.b16 %v97
  %v453 = vunpack.c.h.b16 %v97
  %v454 = vunpack.c.l.b16 %v98
  %v455 = vunpack.c.h.b16 %v98
  %v456 = vunpack.c.l.b16 %v99
  %v457 = vunpack.c.h.b16 %v99
  %v458 = vunpack.c.l.b16 %v100
  %v459 = vunpack.c.h.b16 %v100
  %v460 = vunpack.c.l.b16 %v101
  %v461 = vunpack.c.h.b16 %v101
  %v462 = vunpack.c.l.b16 %v102
  %v463 = vunpack.c.h.b16 %v102
  %v464 = vunpack.c.l.b16 %v103
  %v465 = vunpack.c.h.b16 %v103
  %v466 = vunpack.c.l.b16 %v104
  %v467 = vunpack.c.h.b16 %v104
  %v468 = vunpack.c.l.b16 %v105
  %v469 = vunpack.c.h.b16 %v105
  %v470 = vunpack.c.l.b16 %v106
  %v471 = vunpack.c.h.b16 %v106
  %v472 = vunpack.c.l.b16 %v107
  %v473 = vunpack.c.h.b16 %v107
  %v474 = vunpack.c.l.b16 %v108
  %v475 = vunpack.c.h.b16 %v108
  %v476 = vunpack.c.l.b16 %v109
  %v477 = vunpack.c.h.b16 %v109
  %v478 = vunpack.c.l.b16 %v110
  %v479 = vunpack.c.h.b16 %v110
  %v480 = vunpack.c.l.b16 %v111
  %v481 = vunpack.c.h.b16 %v111
  %v482 = vunpack.c.l.b16 %v112
  %v483 = vunpack.c.h.b16 %v112
  %v484 = vunpack.c.l.b16 %v113
  %v485 = vunpack.c.h.b16 %v113
  %v486 = vunpack.c.l.b16 %v114
  %v487 = vunpack.c.h.b16 %v114
  %v488 = vunpack.c.l.b16 %v115
  %v489 = vunpack.c.h.b16 %v115
  %v490 = vunpack.c.l.b16 %v116
  %v491 = vunpack.c.h.b16 %v116
  %v492 = vunpack.c.l.b16 %v117
  %v493 = vunpack.c.h.b16 %v117
  %v494 = vunpack.c.l.b16 %v118
  %v495 = vunpack.c.h.b16 %v118
  %v496 = vunpack.c.l.b16 %v119
  %v497 = vunpack.c.h.b16 %v119
  %v498 = vunpack.c.l.b16 %v120
  %v499 = vunpack.c.h.b16 %v120
  %v500 = vunpack.c.l.b16 %v121
  %v501 = vunpack.c.h.b16 %v121
  %v502 = vunpack.c.l.b16 %v122
  %v503 = vunpack.c.h.b16 %v122
  %v504 = vunpack.c.l.b16 %v123
  %v505 = vunpack.c.h.b16 %v123
  %v506 = vunpack.c.l.b16 %v124
  %v507 = vunpack.c.h.b16 %v124
  %v508 = vunpack.c.l.b16 %v125
  %v509 = vunpack.c.h.b16 %v125
  %v510 = vunpack.c.l.b16 %v126
  %v511 = vunpack.c.h.b16 %v126
  %v512 = vunpack.c.l.b16 %v127
  %v513 = vunpack.c.h.b16 %v127
  %v514 = vunpack.c.l.b16 %v128
  %v515 = vunpack.c.h.b16 %v128
  %v516 = vunpack.c.l.b16 %v129
  %v517 = vunpack.c.h.b16 %v129
  %v518 = vunpack.c.l.b16 %v130
  %v519 = vunpack.c.h.b16 %v130
  %v520 = vunpack.c.l.b16 %v131
  %v521 = vunpack.c.h.b16 %v131
  %v522 = vunpack.c.l.b16 %v132
  %v523 = vunpack.c.h.b16 %v132
  %v524 = vunpack.c.l.b16 %v133
  %v525 = vunpack.c.h.b16 %v133
  %v526 = vunpack.c.l.b16 %v134
  %v527 = vunpack.c.h.b16 %v134
  %v528 = vunpack.c.l.b16 %v135
  %v529 = vunpack.c.h.b16 %v135
  %v530 = vunpack.c.l.b16 %v136
  %v531 = vunpack.c.h.b16 %v136
  %v532 = vunpack.c.l.b16 %v137
  %v533 = vunpack.c.h.b16 %v137
  %v534 = vunpack.c.l.b16 %v138
  %v535 = vunpack.c.h.b16 %v138
  %v536 = vunpack.c.l.b16 %v139
  %v537 = vunpack.c.h.b16 %v139
  %v538 = vunpack.c.l.b16 %v140
  %v539 = vunpack.c.h.b16 %v140
  %v540 = vunpack.c.l.b16 %v141
  %v541 = vunpack.c.h.b16 %v141
  %v542 = vunpack.c.l.b16 %v142
  %v543 = vunpack.c.h.b16 %v142
  %v544 = vunpack.c.l.b16 %v143
  %v545 = vunpack.c.h.b16 %v143
  %v546 = vunpack.c.l.b16 %v144
  %v547 = vunpack.c.h.b16 %v144
  %v548 = vunpack.c.l.b16 %v145
  %v549 = vunpack.c.h.b16 %v145
  %v550 = vunpack.c.l.b16 %v146
  %v551 = vunpack.c.h.b16 %v146
  %v552 = vunpack.c.l.b16 %v147
  %v553 = vunpack.c.h.b16 %v147
  %v554 = vunpack.c.l.b16 %v148
  %v555 = vunpack.c.h.b16 %v148
  %v556 = vunpack.c.l.b16 %v149
  %v557 = vunpack.c.h.b16 %v149
  %v558 = vunpack.c.l.b16 %v150
  %v559 = vunpack.c.h.b16 %v150
  %v560 = vunpack.c.l.b16 %v151
  %v561 = vunpack.c.h.b16 %v151
  %v562 = vunpack.c.l.b16 %v152
  %v563 = vunpack.c.h.b16 %v152
  %v564 = vunpack.c.l.b16 %v153
  %v565 = vunpack.c.h.b16 %v153
  %v566 = vpack.c.b16 %v312, %v310
  %v567 = vpack.c.b16 %v313, %v311
  %v568 = vpack.c.b16 %v316, %v314
  %v569 = vpack.c.b16 %v317, %v315
  %v570 = vpack.c.b16 %v320, %v318
  %v571 = vpack.c.b16 %v321, %v319
  %v572 = vpack.c.b16 %v324, %v322
  %v573 = vpack.c.b16 %v325, %v323
  %v574 = vpack.c.b16 %v328, %v326
  %v575 = vpack.c.b16 %v329, %v327
  %v576 = vpack.c.b16 %v332, %v330
  %v577 = vpack.c.b16 %v333, %v331
  %v578 = vpack.c.b16 %v336, %v334
  %v579 = vpack.c.b16 %v337, %v335
  %v580 = vpack.c.b16 %v340, %v338
  %v581 = vpack.c.b16 %v341, %v339
  %v582 = vpack.c.b16 %v344, %v342
  %v583 = vpack.c.b16 %v345, %v343
  %v584 = vpack.c.b16 %v348, %v346
  %v585 = vpack.c.b16 %v349, %v347
  %v586 = vpack.c.b16 %v352, %v350
  %v587 = vpack.c.b16 %v353, %v351
  %v588 = vpack.c.b16 %v356, %v354
  %v589 = vpack.c.b16 %v357, %v355
  %v590 = vpack.c.b16 %v360, %v358
  %v591 = vpack.c.b16 %v361, %v359
  %v592 = vpack.c.b16 %v364, %v362
  %v593 = vpack.c.b16 %v365, %v363
  %v594 = vpack.c.b16 %v368, %v366
  %v595 = vpack.c.b16 %v369, %v367
  %v596 = vpack.c.b16 %v372, %v370
  %v597 = vpack.c.b16 %v373, %v371
  %v598 = vpack.c.b16 %v376, %v374
  %v599 = vpack.c.b16 %v377, %v375
  %v600 = vpack.c.b16 %v380, %v378
  %v601 = vpack.c.b16 %v381, %v379
  %v602 = vpack.c.b16 %v384, %v382
  %v603 = vpack.c.b16 %v385, %v383
  %v604 = vpack.c.b16 %v388, %v386
  %v605 = vpack.c.b16 %v389, %v387
  %v606 = vpack.c.b16 %v392, %v390
  %v607 = vpack.c.b16 %v393, %v391
  %v608 = vpack.c.b16 %v396, %v394
  %v609 = vpack.c.b16 %v397, %v395
  %v610 = vpack.c.b16 %v400, %v398
  %v611 = vpack.c.b16 %v401, %v399
  %v612 = vpack.c.b16 %v404, %v402
  %v613 = vpack.c.b16 %v405, %v403
  %v614 = vpack.c.b16 %v408, %v406
  %v615 = vpack.c.b16 %v409, %v407
  %v616 = vpack.c.b16 %v412, %v410
  %v617 = vpack.c.b16 %v413, %v411
  %v618 = vpack.c.b16 %v416, %v414
  %v619 = vpack.c.b16 %v417, %v415
  %v620 = vpack.c.b16 %v420, %v418
  %v621 = vpack.c.b16 %v421, %v419
  %v622 = vpack.c.b16 %v424, %v422
  %v623 = vpack.c.b16 %v425, %v423
  %v624 = vpack.c.b16 %v428, %v426
  %v625 = vpack.c.b16 %v429, %v427
  %v626 = vpack.c.b16 %v432, %v430
  %v627 = vpack.c.b16 %v433, %v431
  %v628 = vpack.c.b16 %v436, %v434
  %v629 = vpack.c.b16 %v437, %v435
  %v630 = vpack.c.b16 %v440, %v438
  %v631 = vpack.c.b16 %v441, %v439
  %v632 = vpack.c.b16 %v444, %v442
  %v633 = vpack.c.b16 %v445, %v443
  %v634 = vpack.c.b16 %v448, %v446
  %v635 = vpack.c.b16 %v449, %v447
  %v636 = vpack.c.b16 %v452, %v450
  %v637 = vpack.c.b16 %v453, %v451
  %v638 = vpack.c.b16 %v456, %v454
  %v639 = vpack.c.b16 %v457, %v455
  %v640 = vpack.c.b16 %v460, %v458
  %v641 = vpack.c.b16 %v461, %v459
  %v642 = vpack.c.b16 %v464, %v462
  %v643 = vpack.c.b16 %v465, %v463
  %v644 = vpack.c.b16 %v468, %v466
  %v645 = vpack.c.b16 %v469, %v467
  %v646 = vpack.c.b16 %v472, %v470
  %v647 = vpack.c.b16 %v473, %v471
  %v648 = vpack.c.b16 %v476, %v474
  %v649 = vpack.c.b16 %v477, %v475
  %v650 = vpack.c.b16 %v480, %v478
  %v651 = vpack.c.b16 %v481, %v479
  %v652 = vpack.c.b16 %v484, %v482
  %v653 = vpack.c.b16 %v485, %v483
  %v654 = vpack.c.b16 %v488, %v486
  %v655 = vpack.c.b16 %v489, %v487
  %v656 = vpack.c.b16 %v492, %v490
  %v657 = vpack.c.b16 %v493, %v491
  %v658 = vpack.c.b16 %v496, %v494
  %v659 = vpack.c.b16 %v497, %v495
  %v660 = vpack.c.b16 %v500, %v498
  %v661 = vpack.c.b16 %v501, %v499
  %v662 = vpack.c.b16 %v504, %v502
  %v663 = vpack.c.b16 %v505, %v503
  %v664 = vpack.c.b16 %v508, %v506
  %v665 = vpack.c.b16 %v509, %v507
  %v666 = vpack.c.b16 %v512, %v510
  %v667 = vpack.c.b16 %v513, %v511
  %v668 = vpack.c.b16 %v516, %v514
  %v669 = vpack.c.b16 %v517, %v515
  %v670 = vpack.c.b16 %v520, %v518
  %v671 = vpack.c.b16 %v521, %v519
  %v672 = vpack.c.b16 %v524, %v522
  %v673 = vpack.c.b16 %v525, %v523
  %v674 = vpack.c.b16 %v528, %v526
  %v675 = vpack.c.b16 %v529, %v527
  %v676 = vpack.c.b16 %v532, %v530
  %v677 = vpack.c.b16 %v533, %v531
  %v678 = vpack.c.b16 %v536, %v534
  %v679 = vpack.c.b16 %v537, %v535
  %v680 = vpack.c.b16 %v540, %v538
  %v681 = vpack.c.b16 %v541, %v539
  %v682 = vpack.c.b16 %v544, %v542
  %v683 = vpack.c.b16 %v545, %v543
  %v684 = vpack.c.b16 %v548, %v546
  %v685 = vpack.c.b16 %v549, %v547
  %v686 = vpack.c.b16 %v552, %v550
  %v687 = vpack.c.b16 %v553, %v551
  %v688 = vpack.c.b16 %v556, %v554
  %v689 = vpack.c.b16 %v557, %v555
  %v690 = vpack.c.b16 %v560, %v558
  %v691 = vpack.c.b16 %v561, %v559
  %v692 = vpack.c.b16 %v564, %v562
  %v693 = vpack.c.b16 %v565, %v563
  %822 = vmatprep.subr.bf16.mxu0 %v581
  %823 = vmatpush1.bf16.msra.mxu0 %v580
  %824 = vmatprep.subr.bf16.mxu0 %v579
  %825 = vmatpush1.bf16.msra.mxu0 %v578
  %826 = vmatprep.subr.bf16.mxu0 %v577
  %827 = vmatpush1.bf16.msra.mxu0 %v576
  %828 = vmatprep.subr.bf16.mxu0 %v575
  %829 = vmatpush1.bf16.msra.mxu0 %v574
  %830 = vmatprep.subr.bf16.mxu0 %v573
  %831 = vmatpush1.bf16.msra.mxu0 %v572
  %832 = vmatprep.subr.bf16.mxu0 %v571
  %833 = vmatpush1.bf16.msra.mxu0 %v570
  %834 = vmatprep.subr.bf16.mxu0 %v569
  %835 = vmatpush1.bf16.msra.mxu0 %v568
  %836 = vmatprep.subr.bf16.mxu0 %v567
  %837 = vmatpush1.bf16.msra.mxu0 %v566
  %838 = vmatprep.subr.bf16.mxu0 %v597
  %839 = vmatpush2.bf16.msra.mxu0 %v596
  %840 = vmatprep.subr.bf16.mxu0 %v595
  %841 = vmatpush2.bf16.msra.mxu0 %v594
  %842 = vmatprep.subr.bf16.mxu0 %v593
  %843 = vmatpush2.bf16.msra.mxu0 %v592
  %844 = vmatprep.subr.bf16.mxu0 %v591
  %845 = vmatpush2.bf16.msra.mxu0 %v590
  %846 = vmatprep.subr.bf16.mxu0 %v589
  %847 = vmatpush2.bf16.msra.mxu0 %v588
  %848 = vmatprep.subr.bf16.mxu0 %v587
  %849 = vmatpush2.bf16.msra.mxu0 %v586
  %850 = vmatprep.subr.bf16.mxu0 %v585
  %851 = vmatpush2.bf16.msra.mxu0 %v584
  %852 = vmatprep.subr.bf16.mxu0 %v583
  %853 = vmatpush2.bf16.msra.mxu0 %v582
  %854 = vmatprep.mubr.bf16.mxu0 %v167
  %855 = vmatmul.mubr.bf16.gmra.mxu0 %v166
  %v856 = vpop.f32.mrf.mxu0
  %v857 = vadd.f32 0.0, %v856
  %v858 = vpop.f32.mrf.mxu0
  %v859 = vadd.f32 0.0, %v858
  %v860 = vpop.f32.mrf.mxu0
  %v861 = vpop.f32.mrf.mxu0
  %862 = vdwg.mxu0
  %863 = vmatprep.subr.bf16.mxu0 %v613
  %864 = vmatpush1.bf16.msra.mxu0 %v612
  %865 = vmatprep.subr.bf16.mxu0 %v611
  %866 = vmatpush1.bf16.msra.mxu0 %v610
  %867 = vmatprep.subr.bf16.mxu0 %v609
  %868 = vmatpush1.bf16.msra.mxu0 %v608
  %869 = vmatprep.subr.bf16.mxu0 %v607
  %870 = vmatpush1.bf16.msra.mxu0 %v606
  %871 = vmatprep.subr.bf16.mxu0 %v605
  %872 = vmatpush1.bf16.msra.mxu0 %v604
  %873 = vmatprep.subr.bf16.mxu0 %v603
  %874 = vmatpush1.bf16.msra.mxu0 %v602
  %875 = vmatprep.subr.bf16.mxu0 %v601
  %876 = vmatpush1.bf16.msra.mxu0 %v600
  %877 = vmatprep.subr.bf16.mxu0 %v599
  %878 = vmatpush1.bf16.msra.mxu0 %v598
  %879 = vmatprep.subr.bf16.mxu0 %v629
  %880 = vmatpush2.bf16.msra.mxu0 %v628
  %881 = vmatprep.subr.bf16.mxu0 %v627
  %882 = vmatpush2.bf16.msra.mxu0 %v626
  %883 = vmatprep.subr.bf16.mxu0 %v625
  %884 = vmatpush2.bf16.msra.mxu0 %v624
  %885 = vmatprep.subr.bf16.mxu0 %v623
  %886 = vmatpush2.bf16.msra.mxu0 %v622
  %887 = vmatprep.subr.bf16.mxu0 %v621
  %888 = vmatpush2.bf16.msra.mxu0 %v620
  %889 = vmatprep.subr.bf16.mxu0 %v619
  %890 = vmatpush2.bf16.msra.mxu0 %v618
  %891 = vmatprep.subr.bf16.mxu0 %v617
  %892 = vmatpush2.bf16.msra.mxu0 %v616
  %893 = vmatprep.subr.bf16.mxu0 %v615
  %894 = vmatpush2.bf16.msra.mxu0 %v614
  %895 = vmatprep.mubr.bf16.mxu0 %v169
  %896 = vmatmul.mubr.bf16.gmra.mxu0 %v168
  %v897 = vpop.f32.mrf.mxu0
  %v898 = vadd.f32 %v857, %v897
  %v899 = vpop.f32.mrf.mxu0
  %v900 = vadd.f32 %v859, %v899
  %v901 = vpop.f32.mrf.mxu0
  %v902 = vpop.f32.mrf.mxu0
  %903 = vdwg.mxu0
  %904 = vmatprep.subr.bf16.mxu0 %v645
  %905 = vmatpush1.bf16.msra.mxu0 %v644
  %906 = vmatprep.subr.bf16.mxu0 %v643
  %907 = vmatpush1.bf16.msra.mxu0 %v642
  %908 = vmatprep.subr.bf16.mxu0 %v641
  %909 = vmatpush1.bf16.msra.mxu0 %v640
  %910 = vmatprep.subr.bf16.mxu0 %v639
  %911 = vmatpush1.bf16.msra.mxu0 %v638
  %912 = vmatprep.subr.bf16.mxu0 %v637
  %913 = vmatpush1.bf16.msra.mxu0 %v636
  %914 = vmatprep.subr.bf16.mxu0 %v635
  %915 = vmatpush1.bf16.msra.mxu0 %v634
  %916 = vmatprep.subr.bf16.mxu0 %v633
  %917 = vmatpush1.bf16.msra.mxu0 %v632
  %918 = vmatprep.subr.bf16.mxu0 %v631
  %919 = vmatpush1.bf16.msra.mxu0 %v630
  %920 = vmatprep.subr.bf16.mxu0 %v661
  %921 = vmatpush2.bf16.msra.mxu0 %v660
  %922 = vmatprep.subr.bf16.mxu0 %v659
  %923 = vmatpush2.bf16.msra.mxu0 %v658
  %924 = vmatprep.subr.bf16.mxu0 %v657
  %925 = vmatpush2.bf16.msra.mxu0 %v656
  %926 = vmatprep.subr.bf16.mxu0 %v655
  %927 = vmatpush2.bf16.msra.mxu0 %v654
  %928 = vmatprep.subr.bf16.mxu0 %v653
  %929 = vmatpush2.bf16.msra.mxu0 %v652
  %930 = vmatprep.subr.bf16.mxu0 %v651
  %931 = vmatpush2.bf16.msra.mxu0 %v650
  %932 = vmatprep.subr.bf16.mxu0 %v649
  %933 = vmatpush2.bf16.msra.mxu0 %v648
  %934 = vmatprep.subr.bf16.mxu0 %v647
  %935 = vmatpush2.bf16.msra.mxu0 %v646
  %936 = vmatprep.mubr.bf16.mxu0 %v171
  %937 = vmatmul.mubr.bf16.gmra.mxu0 %v170
  %v938 = vpop.f32.mrf.mxu0
  %v939 = vadd.f32 %v898, %v938
  %v940 = vpop.f32.mrf.mxu0
  %v941 = vadd.f32 %v900, %v940
  %v942 = vpop.f32.mrf.mxu0
  %v943 = vpop.f32.mrf.mxu0
  %944 = vdwg.mxu0
  %945 = vmatprep.subr.bf16.mxu0 %v677
  %946 = vmatpush1.bf16.msra.mxu0 %v676
  %947 = vmatprep.subr.bf16.mxu0 %v675
  %948 = vmatpush1.bf16.msra.mxu0 %v674
  %949 = vmatprep.subr.bf16.mxu0 %v673
  %950 = vmatpush1.bf16.msra.mxu0 %v672
  %951 = vmatprep.subr.bf16.mxu0 %v671
  %952 = vmatpush1.bf16.msra.mxu0 %v670
  %953 = vmatprep.subr.bf16.mxu0 %v669
  %954 = vmatpush1.bf16.msra.mxu0 %v668
  %955 = vmatprep.subr.bf16.mxu0 %v667
  %956 = vmatpush1.bf16.msra.mxu0 %v666
  %957 = vmatprep.subr.bf16.mxu0 %v665
  %958 = vmatpush1.bf16.msra.mxu0 %v664
  %959 = vmatprep.subr.bf16.mxu0 %v663
  %960 = vmatpush1.bf16.msra.mxu0 %v662
  %961 = vmatprep.subr.bf16.mxu0 %v693
  %962 = vmatpush2.bf16.msra.mxu0 %v692
  %963 = vmatprep.subr.bf16.mxu0 %v691
  %964 = vmatpush2.bf16.msra.mxu0 %v690
  %965 = vmatprep.subr.bf16.mxu0 %v689
  %966 = vmatpush2.bf16.msra.mxu0 %v688
  %967 = vmatprep.subr.bf16.mxu0 %v687
  %968 = vmatpush2.bf16.msra.mxu0 %v686
  %969 = vmatprep.subr.bf16.mxu0 %v685
  %970 = vmatpush2.bf16.msra.mxu0 %v684
  %971 = vmatprep.subr.bf16.mxu0 %v683
  %972 = vmatpush2.bf16.msra.mxu0 %v682
  %973 = vmatprep.subr.bf16.mxu0 %v681
  %974 = vmatpush2.bf16.msra.mxu0 %v680
  %975 = vmatprep.subr.bf16.mxu0 %v679
  %976 = vmatpush2.bf16.msra.mxu0 %v678
  %977 = vmatprep.mubr.bf16.mxu0 %v173
  %978 = vmatmul.mubr.bf16.gmra.mxu0 %v172
  %v979 = vpop.f32.mrf.mxu0
  %v980 = vadd.f32 %v939, %v979
  %v981 = vpop.f32.mrf.mxu0
  %v982 = vadd.f32 %v941, %v981
  %v983 = vpop.f32.mrf.mxu0
  %v984 = vpop.f32.mrf.mxu0
  %985 = vdwg.mxu0
  %v986 = vadd.f32 %v20, %v980
  %v987 = vadd.f32 %v21, %v982
  %988 = vst [vmem:[%s3] sm:$0xff] %v986
  %989 = vst [vmem:[%s3 + $0x8] sm:$0xff] %v987
  // Predicated region
  $region18: #{encoder_forward.7} parent=0 // pred_check
    %p990 = pneg %p14
  $region19: #{encoder_forward.7} parent=0 // pred_check_branch
    %992 = sbr.rel (%p990) target = $region21
  $region20: #{encoder_forward.7} parent=0 // pred_region
    %v993 = vld [vmem:[%s3] sm:$0xff]
    %v994 = vld [vmem:[%s3 + $0x8] sm:$0xff]
    %v995 = vld [vmem:[%s2] sm:$0x3]
    %v997 = vlaneseq
    %v998 = vshrl.u32 %v997, 7
    %v999 = vsub.s32 0, %v998
    %v1000 = vrot.slane %v995, %v999
    %v1001 = vlaneseq
    %v1002 = vshrl.u32 %v1001, 7
    %v1003 = vsub.s32 1, %v1002
    %v1004 = vrot.slane %v995, %v1003
    %v1007 = vadd.f32 %v993, %v1000
    %v1008 = vadd.f32 %v994, %v1004
    %v1009 = vmax.f32 %v1007, 0.0
    %v1010 = vmax.f32 %v1008, 0.0
    %1011 = vst [vmem:[%s3] sm:$0xff] %v1009
    %1012 = vst [vmem:[%s3 + $0x8] sm:$0xff] %v1010
  $region21: #{encoder_forward.7} parent=0 // pred_fallthru
    _
  // Predicated region
  $region22: #{encoder_forward.7} parent=0 // pred_check
    _
  $region23: #{encoder_forward.7} parent=0 // pred_check_branch
    %1014 = sbr.rel (0) target = $region25
  $region24: #{encoder_forward.7} parent=0 // pred_region
    _
  $region25: #{encoder_forward.7} parent=0 // pred_fallthru
    _
  // Predicated region
  $region26: #{encoder_forward.7} parent=0 // pred_check
    _
  $region27: #{encoder_forward.7} parent=0 // pred_check_branch
    %1016 = sbr.rel (0) target = $region29
  $region28: #{encoder_forward.7} parent=0 // pred_region
    _
  $region29: #{encoder_forward.7} parent=0 // pred_fallthru
    _

</llo_original>
